<compile_context>
chip_gen: v7x
topology: tpu7x:2x2x1
jax: 0.10.0
libtpu: 0.0.40
codegen_flags: <defaults>
</compile_context>

<pallas_src>
import jax
import jax.numpy as jnp
from jax import lax
from jax.experimental import pallas as pl
from jax.experimental.pallas import tpu as pltpu


# ---------------------------------------------------------------------------
# helpers
# ---------------------------------------------------------------------------
def _pick_tile(dim, target, align):
    """Largest divisor of `dim` that is <= max(target, align) and a multiple of
    `align`.  Callers pad `dim` to a multiple of `align` first, so this never
    silently falls back to an unaligned or VMEM-oversized full-dim block."""
    if dim <= target:
        return dim
    t = max((target // align) * align, align)
    while t > align:
        if dim % t == 0:
            return t
        t -= align
    return align


def _pad_axis(x, axis, multiple):
    pad = (-x.shape[axis]) % multiple
    if pad == 0:
        return x
    widths = [(0, 0)] * x.ndim
    widths[axis] = (0, pad)
    return jnp.pad(x, widths)


# ---------------------------------------------------------------------------
# Tiled (M,K)@(K,N)+bias projection (vocab head).  M, N and K are all tiled;
# K is a trailing 'arbitrary' grid axis with an f32 VMEM accumulator, so no
# operand tile depends on full K/N and large hidden/vocab sizes stay inside
# v7x's 64 MiB VMEM.  Operands are padded to (8 / 128 / 128) multiples so all
# stores are lane-dense (no masked vst).
# ---------------------------------------------------------------------------
def _proj_kernel(x_ref, w_ref, b_ref, o_ref, acc_ref):
    k = pl.program_id(2)

    @pl.when(k == 0)
    def _():
        acc_ref[...] = jnp.zeros_like(acc_ref)

    x = x_ref[...]
    if x.dtype != w_ref.dtype:          # static dtypes; no-op when they match
        x = x.astype(w_ref.dtype)
    acc_ref[...] += jnp.dot(x, w_ref[...], preferred_element_type=jnp.float32)

    @pl.when(k == pl.num_programs(2) - 1)
    def _():
        o_ref[...] = (acc_ref[...] + b_ref[...].astype(jnp.float32)).astype(o_ref.dtype)


def _projection(x2d, w_t, bias, out_dtype=jnp.float32,
                tm_target=256, tn_target=512, tk_target=512):
    """(M, K) @ (K, N) + bias[N] as a tiled Pallas matmul (padded + K-tiled)."""
    M, K = x2d.shape
    N = w_t.shape[1]

    xp = _pad_axis(_pad_axis(x2d, 0, 8), 1, 128)
    wp = _pad_axis(_pad_axis(w_t, 0, 128), 1, 128)
    bp = _pad_axis(bias.reshape(1, N).astype(jnp.float32), 1, 128)
    Mp, Kp = xp.shape
    Np = wp.shape[1]

    tm = _pick_tile(Mp, tm_target, 8)
    tn = _pick_tile(Np, tn_target, 128)
    tk = _pick_tile(Kp, tk_target, 128)

    out = pl.pallas_call(
        _proj_kernel,
        out_shape=jax.ShapeDtypeStruct((Mp, Np), out_dtype),
        grid_spec=pltpu.PrefetchScalarGridSpec(
            num_scalar_prefetch=0,
            grid=(Mp // tm, Np // tn, Kp // tk),
            in_specs=[
                pl.BlockSpec((tm, tk), lambda i, j, k: (i, k)),   # activations
                pl.BlockSpec((tk, tn), lambda i, j, k: (k, j)),   # weights
                pl.BlockSpec((1, tn), lambda i, j, k: (0, j)),    # bias
            ],
            out_specs=pl.BlockSpec((tm, tn), lambda i, j, k: (i, j)),
            scratch_shapes=[pltpu.VMEM((tm, tn), jnp.float32)],
        ),
        compiler_params=pltpu.CompilerParams(
            dimension_semantics=("parallel", "parallel", "arbitrary")),
    )(xp, wp, bp)
    return out[:M, :N]


# ---------------------------------------------------------------------------
# Fused recurrence kernel.
#   prologue (per time chunk): xw = X_chunk @ W_ih^T + (b_ih + b_hh)  (one MXU matmul)
#   sequential:                h_t = tanh(xw_t + h_{t-1} @ W_hh^T)
# Grid = (batch_blocks [parallel], time_chunks [arbitrary]); hidden state is
# carried across time chunks in VMEM scratch, W_ih^T / W_hh^T stay VMEM-resident.
# ---------------------------------------------------------------------------
def _fused_rnn_kernel(x_ref, h0_ref, wih_ref, whh_ref, b_ref,
                      y_ref, hn_ref, h_scratch, xw_scratch):
    t = pl.program_id(1)

    @pl.when(t == 0)
    def _():
        h_scratch[...] = h0_ref[0].astype(jnp.float32)

    t_chunk, bb, input_size = x_ref.shape
    num_hiddens = whh_ref.shape[0]

    # (1) Fused chunk-level input projection: bias folded in, result lives only
    #     in VMEM scratch (no HBM round-trip of the xw intermediate).
    x2d = x_ref[...].reshape(t_chunk * bb, input_size)
    wih = wih_ref[...]
    if x2d.dtype != wih.dtype:
        x2d = x2d.astype(wih.dtype)
    xw = jnp.dot(x2d, wih, preferred_element_type=jnp.float32)
    xw = xw + b_ref[...].astype(jnp.float32)
    xw_scratch[...] = xw.reshape(t_chunk, bb, num_hiddens)

    # (2) Sequential recurrence: only h @ W_hh^T remains on the critical path.
    # TODO(synk): on v5e/v6e hold W_hh^T in MXU staging registers across the chunk
    # (pltpu.matmul_push_rhs / matmul_acc_lhs / matmul_pop) instead of re-pushing
    # the RHS every step via jnp.dot.
    whh = whh_ref[...]

    def step(i, h):
        lhs = h if h.dtype == whh.dtype else h.astype(whh.dtype)
        h_new = jnp.tanh(
            xw_scratch[i]
            + jnp.dot(lhs, whh, preferred_element_type=jnp.float32))
        y_ref[i] = h_new.astype(y_ref.dtype)
        return h_new

    # Fully-unrolled inner loop: LLO can pipeline the dot + tanh + store chain.
    h = lax.fori_loop(0, t_chunk, step, h_scratch[...], unroll=True)
    h_scratch[...] = h

    @pl.when(t == pl.num_programs(1) - 1)
    def _():
        hn_ref[0] = h.astype(hn_ref.dtype)


def rnn_model_forward(inputs, state, params, *, weight_dtype=jnp.float32,
                      inter_dtype=jnp.float32, t_chunk_target=16,
                      batch_block=None):
    """Pallas equivalent of RNNModel.forward(inputs, state) -> (output, state).

    weight_dtype=bf16 halves weight HBM/VMEM traffic and uses the native bf16 MXU
    path on v6e/v7x (accumulation + tanh stay f32; recurrence carry stays f32).
    inter_dtype=bf16 halves the HBM traffic of the Y intermediate feeding the
    vocab head.  Defaults stay f32 so the toy validation is bit-tight.
    The caller's `state` buffer is NOT donated / aliased.
    """
    seq_len, batch, input_size = inputs.shape
    num_hiddens = params["w_hh"].shape[0]
    vocab_size = params["w_lin"].shape[0]

    wih_t = params["w_ih"].T.astype(weight_dtype)       # (input, hidden)
    whh_t = params["w_hh"].T.astype(weight_dtype)       # (hidden, hidden)
    wlin_t = params["w_lin"].T.astype(weight_dtype)     # (hidden, vocab)
    b_rnn = (params["b_ih"] + params["b_hh"]).astype(jnp.float32).reshape(1, num_hiddens)
    b_lin = params["b_lin"].astype(jnp.float32)

    # TODO(synk): when `inputs` are one-hot token encodings, replace the fused
    # X @ W_ih^T matmul with an embedding row-gather (scalar-prefetch token ids +
    # pl.Element row index_map into W_ih) and drop the one-hot HBM reads entirely.

    t_chunk = _pick_tile(seq_len, t_chunk_target, 1)
    # Keep the full batch per step: the recurrence is latency-bound and the per-step
    # MXU LHS is tiny; only split (batch_block=batch//2) when batch//2 >= ~128 rows.
    bb = batch if batch_block is None else batch_block
    assert batch % bb == 0 and seq_len % t_chunk == 0
    grid = (batch // bb, seq_len // t_chunk)

    # Explicit VMEM budget: double-buffered x/y chunks + resident weights + scratch,
    # with 2x headroom (capped well under v7x's 64 MiB physical).
    itemsz = lambda dt: jnp.dtype(dt).itemsize
    vmem_bytes = (
        2 * t_chunk * bb * input_size * itemsz(inputs.dtype)      # x chunks
        + 2 * t_chunk * bb * num_hiddens * itemsz(inter_dtype)    # y chunks
        + input_size * num_hiddens * itemsz(weight_dtype)         # W_ih^T (resident)
        + num_hiddens * num_hiddens * itemsz(weight_dtype)        # W_hh^T (resident)
        + num_hiddens * 4                                         # bias
        + 4 * bb * num_hiddens * 4                                # h0 / hn blocks
        + (t_chunk + 1) * bb * num_hiddens * 4                    # xw + h scratch
    )
    vmem_limit = int(min(2 * vmem_bytes + (2 << 20), 96 << 20))

    y, h_n = pl.pallas_call(
        _fused_rnn_kernel,
        out_shape=(
            jax.ShapeDtypeStruct((seq_len, batch, num_hiddens), inter_dtype),
            jax.ShapeDtypeStruct((1, batch, num_hiddens), jnp.float32),
        ),
        grid_spec=pltpu.PrefetchScalarGridSpec(
            num_scalar_prefetch=0,
            grid=grid,
            in_specs=[
                pl.BlockSpec((t_chunk, bb, input_size), lambda b, t: (t, b, 0)),  # X chunk
                pl.BlockSpec((1, bb, num_hiddens), lambda b, t: (0, b, 0)),       # h0
                pl.BlockSpec((input_size, num_hiddens), lambda b, t: (0, 0)),     # W_ih^T
                pl.BlockSpec((num_hiddens, num_hiddens), lambda b, t: (0, 0)),    # W_hh^T
                pl.BlockSpec((1, num_hiddens), lambda b, t: (0, 0)),              # b_ih+b_hh
            ],
            out_specs=[
                pl.BlockSpec((t_chunk, bb, num_hiddens), lambda b, t: (t, b, 0)),  # Y chunk
                pl.BlockSpec((1, bb, num_hiddens), lambda b, t: (0, b, 0)),        # final h
            ],
            scratch_shapes=[
                pltpu.VMEM((bb, num_hiddens), jnp.float32),            # carried hidden state
                pltpu.VMEM((t_chunk, bb, num_hiddens), jnp.float32),   # fused xw chunk
            ],
        ),
        compiler_params=pltpu.CompilerParams(
            dimension_semantics=("parallel", "arbitrary"),
            vmem_limit_bytes=vmem_limit),
    )(inputs, state, wih_t, whh_t, b_rnn)

    # (3) Vocab head over (seq*batch, hidden) x (hidden, vocab), lane-dense & K-tiled.
    out = _projection(y.reshape(seq_len * batch, num_hiddens), wlin_t, b_lin,
                      out_dtype=jnp.float32)
    return out.reshape(seq_len, batch, vocab_size), h_n


# ---------------------------------------------------------------------------
# Parameters, reference, test
# ---------------------------------------------------------------------------
def init_params(key, input_size, num_hiddens, vocab_size):
    """Deterministic parameter init matching nn.RNN / nn.Linear shapes."""
    ks = jax.random.split(key, 6)
    k_rnn = 1.0 / jnp.sqrt(num_hiddens)
    k_lin = 1.0 / jnp.sqrt(num_hiddens)
    u = lambda k, shape, s: jax.random.uniform(k, shape, jnp.float32, -s, s)
    return {
        "w_ih": u(ks[0], (num_hiddens, input_size), k_rnn),
        "w_hh": u(ks[1], (num_hiddens, num_hiddens), k_rnn),
        "b_ih": u(ks[2], (num_hiddens,), k_rnn),
        "b_hh": u(ks[3], (num_hiddens,), k_rnn),
        "w_lin": u(ks[4], (vocab_size, num_hiddens), k_lin),
        "b_lin": u(ks[5], (vocab_size,), k_lin),
    }


def reference_forward(inputs, state, params):
    """Pure-JAX reference of the PyTorch forward pass (full-precision matmuls)."""
    hp = jax.lax.Precision.HIGHEST

    def step(h, x_t):
        h_new = jnp.tanh(
            jnp.dot(x_t, params["w_ih"].T, precision=hp) + params["b_ih"]
            + jnp.dot(h, params["w_hh"].T, precision=hp) + params["b_hh"])
        return h_new, h_new

    h_last, ys = jax.lax.scan(step, state[0], inputs)
    out = jnp.dot(ys, params["w_lin"].T, precision=hp) + params["b_lin"]
    return out, h_last[None]


if __name__ == "__main__":
    key = jax.random.PRNGKey(0)

    def run_case(seq_len, batch, input_size, num_hiddens, vocab_size, *, tol,
                 **fwd_kwargs):
        k_in, k_par = jax.random.split(jax.random.fold_in(key, seq_len))
        inputs = jax.random.normal(k_in, (seq_len, batch, input_size), jnp.float32)
        state = jnp.zeros((1, batch, num_hiddens), jnp.float32)   # begin_state
        params = init_params(k_par, input_size, num_hiddens, vocab_size)

        ref_out, ref_state = reference_forward(inputs, state, params)
        fwd = jax.jit(lambda i, s, p: rnn_model_forward(i, s, p, **fwd_kwargs))
        out, new_state = jax.block_until_ready(fwd(inputs, state, params))

        assert out.shape == (seq_len, batch, vocab_size)
        assert new_state.shape == (1, batch, num_hiddens)
        assert jnp.allclose(out, ref_out, atol=tol, rtol=tol), \
            float(jnp.max(jnp.abs(out - ref_out)))
        assert jnp.allclose(new_state, ref_state, atol=tol, rtol=tol), \
            float(jnp.max(jnp.abs(new_state - ref_state)))

    # Hardware-aligned toy case (batch mult of 8, hidden/vocab mult of 128).
    run_case(32, 8, 128, 128, 128, tol=2e-3)
    # Unaligned input_size / vocab exercise the padded, lane-dense head path.
    run_case(12, 8, 96, 128, 200, tol=5e-3)

    print("KERNEL_OK")
</pallas_src>

<mosaic_0001>
module attributes {stable_mosaic.version = 11 : i64} {
  func.func @_fused_rnn_kernel(%arg0: i32, %arg1: i32, %arg2: memref<16x8x128xf32, #tpu.memory_space<vmem>>, %arg3: memref<1x8x128xf32, #tpu.memory_space<vmem>>, %arg4: memref<128x128xf32, #tpu.memory_space<vmem>>, %arg5: memref<128x128xf32, #tpu.memory_space<vmem>>, %arg6: memref<1x128xf32, #tpu.memory_space<vmem>>, %arg7: memref<16x8x128xf32, #tpu.memory_space<vmem>>, %arg8: memref<1x8x128xf32, #tpu.memory_space<vmem>>, %arg9: memref<8x128xf32, #tpu.memory_space<vmem>>, %arg10: memref<16x8x128xf32, #tpu.memory_space<vmem>>) attributes {dimension_semantics = [#tpu.dimension_semantics<parallel>, #tpu.dimension_semantics<arbitrary>], iteration_bounds = array<i64: 1, 2>, scalar_prefetch = 0 : i64, scratch_operands = 2 : i64, tpu.core_type = #tpu.core_type<tc>, window_params = [{transform_indices = @transform_0, window_bounds = array<i64: 16, 8, 128>}, {transform_indices = @transform_1, window_bounds = array<i64: 1, 8, 128>}, {pipeline_mode = #tpu.pipeline_mode<synchronous>, transform_indices = @transform_2, window_bounds = array<i64: 128, 128>}, {pipeline_mode = #tpu.pipeline_mode<synchronous>, transform_indices = @transform_3, window_bounds = array<i64: 128, 128>}, {pipeline_mode = #tpu.pipeline_mode<synchronous>, transform_indices = @transform_4, window_bounds = array<i64: 1, 128>}, {transform_indices = @transform_5, window_bounds = array<i64: 16, 8, 128>}, {transform_indices = @transform_6, window_bounds = array<i64: 1, 8, 128>}]} {
    %c0_i32 = arith.constant 0 : i32
    %0 = arith.cmpi eq, %arg1, %c0_i32 : i32
    %1 = arith.extui %0 : i1 to i32
    %c0_i32_0 = arith.constant 0 : i32
    %2 = arith.cmpi ne, %1, %c0_i32_0 : i32
    scf.if %2 {
      %c0_99 = arith.constant 0 : index
      %c0_100 = arith.constant 0 : index
      %c0_101 = arith.constant 0 : index
      %178 = vector.load %arg3[%c0_99, %c0_100, %c0_101] : memref<1x8x128xf32, #tpu.memory_space<vmem>>, vector<1x8x128xf32>
      %179 = vector.shape_cast %178 : vector<1x8x128xf32> to vector<8x128xf32>
      %c0_102 = arith.constant 0 : index
      %c0_103 = arith.constant 0 : index
      %180 = vector.load %arg9[%c0_102, %c0_103] : memref<8x128xf32, #tpu.memory_space<vmem>>, vector<8x128xf32>
      tpu.vector_store %arg9[%c0_102, %c0_103], %179 {strides = array<i32>} : memref<8x128xf32, #tpu.memory_space<vmem>>, vector<8x128xf32>,
    } else {
    }
    %c0 = arith.constant 0 : index
    %c0_1 = arith.constant 0 : index
    %c0_2 = arith.constant 0 : index
    %3 = vector.load %arg2[%c0, %c0_1, %c0_2] : memref<16x8x128xf32, #tpu.memory_space<vmem>>, vector<16x8x128xf32>
    %4 = vector.shape_cast %3 : vector<16x8x128xf32> to vector<128x128xf32>
    %c0_3 = arith.constant 0 : index
    %c0_4 = arith.constant 0 : index
    %5 = vector.load %arg4[%c0_3, %c0_4] : memref<128x128xf32, #tpu.memory_space<vmem>>, vector<128x128xf32>
    %cst = arith.constant dense<0.000000e+00> : vector<128x128xf32>
    %6 = tpu.matmul %4, %5, %cst {dimension_numbers = #tpu.dot_dimension_numbers<[1], [0], [0], [1], [0, 0, 1, 1], [], []>} : vector<128x128xf32>, vector<128x128xf32>, vector<128x128xf32> -> vector<128x128xf32>
    %c0_5 = arith.constant 0 : index
    %c0_6 = arith.constant 0 : index
    %7 = vector.load %arg6[%c0_5, %c0_6] : memref<1x128xf32, #tpu.memory_space<vmem>>, vector<1x128xf32>
    %8 = vector.broadcast %7 : vector<1x128xf32> to vector<128x128xf32>
    %9 = arith.addf %6, %8 : vector<128x128xf32>
    %10 = vector.shape_cast %9 : vector<128x128xf32> to vector<16x8x128xf32>
    %c0_7 = arith.constant 0 : index
    %c0_8 = arith.constant 0 : index
    %c0_9 = arith.constant 0 : index
    %11 = vector.load %arg10[%c0_7, %c0_8, %c0_9] : memref<16x8x128xf32, #tpu.memory_space<vmem>>, vector<16x8x128xf32>
    tpu.vector_store %arg10[%c0_7, %c0_8, %c0_9], %10 {strides = array<i32>} : memref<16x8x128xf32, #tpu.memory_space<vmem>>, vector<16x8x128xf32>,
    %c0_10 = arith.constant 0 : index
    %c0_11 = arith.constant 0 : index
    %12 = vector.load %arg5[%c0_10, %c0_11] : memref<128x128xf32, #tpu.memory_space<vmem>>, vector<128x128xf32>
    %c0_12 = arith.constant 0 : index
    %c0_13 = arith.constant 0 : index
    %13 = vector.load %arg9[%c0_12, %c0_13] : memref<8x128xf32, #tpu.memory_space<vmem>>, vector<8x128xf32>
    %c0_i32_14 = arith.constant 0 : i32
    %14 = arith.index_cast %c0_i32_14 : i32 to index
    %c0_15 = arith.constant 0 : index
    %c0_16 = arith.constant 0 : index
    %15 = vector.load %arg10[%14, %c0_15, %c0_16] : memref<16x8x128xf32, #tpu.memory_space<vmem>>, vector<1x8x128xf32>
    %16 = vector.shape_cast %15 : vector<1x8x128xf32> to vector<8x128xf32>
    %cst_17 = arith.constant dense<0.000000e+00> : vector<8x128xf32>
    %17 = tpu.matmul %13, %12, %cst_17 {dimension_numbers = #tpu.dot_dimension_numbers<[1], [0], [0], [1], [0, 0, 1, 1], [], []>} : vector<8x128xf32>, vector<128x128xf32>, vector<8x128xf32> -> vector<8x128xf32>
    %18 = arith.addf %16, %17 : vector<8x128xf32>
    %19 = math.tanh %18 : vector<8x128xf32>
    %20 = arith.index_cast %c0_i32_14 : i32 to index
    %c0_18 = arith.constant 0 : index
    %c0_19 = arith.constant 0 : index
    %21 = vector.load %arg7[%20, %c0_18, %c0_19] : memref<16x8x128xf32, #tpu.memory_space<vmem>>, vector<1x8x128xf32>
    %22 = vector.shape_cast %21 : vector<1x8x128xf32> to vector<8x128xf32>
    %23 = vector.shape_cast %19 : vector<8x128xf32> to vector<1x8x128xf32>
    tpu.vector_store %arg7[%20, %c0_18, %c0_19], %23 {strides = array<i32>} : memref<16x8x128xf32, #tpu.memory_space<vmem>>, vector<1x8x128xf32>,
    %c1_i32 = arith.constant 1 : i32
    %24 = arith.index_cast %c1_i32 : i32 to index
    %c0_20 = arith.constant 0 : index
    %c0_21 = arith.constant 0 : index
    %25 = vector.load %arg10[%24, %c0_20, %c0_21] : memref<16x8x128xf32, #tpu.memory_space<vmem>>, vector<1x8x128xf32>
    %26 = vector.shape_cast %25 : vector<1x8x128xf32> to vector<8x128xf32>
    %cst_22 = arith.constant dense<0.000000e+00> : vector<8x128xf32>
    %27 = tpu.matmul %19, %12, %cst_22 {dimension_numbers = #tpu.dot_dimension_numbers<[1], [0], [0], [1], [0, 0, 1, 1], [], []>} : vector<8x128xf32>, vector<128x128xf32>, vector<8x128xf32> -> vector<8x128xf32>
    %28 = arith.addf %26, %27 : vector<8x128xf32>
    %29 = math.tanh %28 : vector<8x128xf32>
    %30 = arith.index_cast %c1_i32 : i32 to index
    %c0_23 = arith.constant 0 : index
    %c0_24 = arith.constant 0 : index
    %31 = vector.load %arg7[%30, %c0_23, %c0_24] : memref<16x8x128xf32, #tpu.memory_space<vmem>>, vector<1x8x128xf32>
    %32 = vector.shape_cast %31 : vector<1x8x128xf32> to vector<8x128xf32>
    %33 = vector.shape_cast %29 : vector<8x128xf32> to vector<1x8x128xf32>
    tpu.vector_store %arg7[%30, %c0_23, %c0_24], %33 {strides = array<i32>} : memref<16x8x128xf32, #tpu.memory_space<vmem>>, vector<1x8x128xf32>,
    %c2_i32 = arith.constant 2 : i32
    %34 = arith.index_cast %c2_i32 : i32 to index
    %c0_25 = arith.constant 0 : index
    %c0_26 = arith.constant 0 : index
    %35 = vector.load %arg10[%34, %c0_25, %c0_26] : memref<16x8x128xf32, #tpu.memory_space<vmem>>, vector<1x8x128xf32>
    %36 = vector.shape_cast %35 : vector<1x8x128xf32> to vector<8x128xf32>
    %cst_27 = arith.constant dense<0.000000e+00> : vector<8x128xf32>
    %37 = tpu.matmul %29, %12, %cst_27 {dimension_numbers = #tpu.dot_dimension_numbers<[1], [0], [0], [1], [0, 0, 1, 1], [], []>} : vector<8x128xf32>, vector<128x128xf32>, vector<8x128xf32> -> vector<8x128xf32>
    %38 = arith.addf %36, %37 : vector<8x128xf32>
    %39 = math.tanh %38 : vector<8x128xf32>
    %40 = arith.index_cast %c2_i32 : i32 to index
    %c0_28 = arith.constant 0 : index
    %c0_29 = arith.constant 0 : index
    %41 = vector.load %arg7[%40, %c0_28, %c0_29] : memref<16x8x128xf32, #tpu.memory_space<vmem>>, vector<1x8x128xf32>
    %42 = vector.shape_cast %41 : vector<1x8x128xf32> to vector<8x128xf32>
    %43 = vector.shape_cast %39 : vector<8x128xf32> to vector<1x8x128xf32>
    tpu.vector_store %arg7[%40, %c0_28, %c0_29], %43 {strides = array<i32>} : memref<16x8x128xf32, #tpu.memory_space<vmem>>, vector<1x8x128xf32>,
    %c3_i32 = arith.constant 3 : i32
    %44 = arith.index_cast %c3_i32 : i32 to index
    %c0_30 = arith.constant 0 : index
    %c0_31 = arith.constant 0 : index
    %45 = vector.load %arg10[%44, %c0_30, %c0_31] : memref<16x8x128xf32, #tpu.memory_space<vmem>>, vector<1x8x128xf32>
    %46 = vector.shape_cast %45 : vector<1x8x128xf32> to vector<8x128xf32>
    %cst_32 = arith.constant dense<0.000000e+00> : vector<8x128xf32>
    %47 = tpu.matmul %39, %12, %cst_32 {dimension_numbers = #tpu.dot_dimension_numbers<[1], [0], [0], [1], [0, 0, 1, 1], [], []>} : vector<8x128xf32>, vector<128x128xf32>, vector<8x128xf32> -> vector<8x128xf32>
    %48 = arith.addf %46, %47 : vector<8x128xf32>
    %49 = math.tanh %48 : vector<8x128xf32>
    %50 = arith.index_cast %c3_i32 : i32 to index
    %c0_33 = arith.constant 0 : index
    %c0_34 = arith.constant 0 : index
    %51 = vector.load %arg7[%50, %c0_33, %c0_34] : memref<16x8x128xf32, #tpu.memory_space<vmem>>, vector<1x8x128xf32>
    %52 = vector.shape_cast %51 : vector<1x8x128xf32> to vector<8x128xf32>
    %53 = vector.shape_cast %49 : vector<8x128xf32> to vector<1x8x128xf32>
    tpu.vector_store %arg7[%50, %c0_33, %c0_34], %53 {strides = array<i32>} : memref<16x8x128xf32, #tpu.memory_space<vmem>>, vector<1x8x128xf32>,
    %c4_i32 = arith.constant 4 : i32
    %54 = arith.index_cast %c4_i32 : i32 to index
    %c0_35 = arith.constant 0 : index
    %c0_36 = arith.constant 0 : index
    %55 = vector.load %arg10[%54, %c0_35, %c0_36] : memref<16x8x128xf32, #tpu.memory_space<vmem>>, vector<1x8x128xf32>
    %56 = vector.shape_cast %55 : vector<1x8x128xf32> to vector<8x128xf32>
    %cst_37 = arith.constant dense<0.000000e+00> : vector<8x128xf32>
    %57 = tpu.matmul %49, %12, %cst_37 {dimension_numbers = #tpu.dot_dimension_numbers<[1], [0], [0], [1], [0, 0, 1, 1], [], []>} : vector<8x128xf32>, vector<128x128xf32>, vector<8x128xf32> -> vector<8x128xf32>
    %58 = arith.addf %56, %57 : vector<8x128xf32>
    %59 = math.tanh %58 : vector<8x128xf32>
    %60 = arith.index_cast %c4_i32 : i32 to index
    %c0_38 = arith.constant 0 : index
    %c0_39 = arith.constant 0 : index
    %61 = vector.load %arg7[%60, %c0_38, %c0_39] : memref<16x8x128xf32, #tpu.memory_space<vmem>>, vector<1x8x128xf32>
    %62 = vector.shape_cast %61 : vector<1x8x128xf32> to vector<8x128xf32>
    %63 = vector.shape_cast %59 : vector<8x128xf32> to vector<1x8x128xf32>
    tpu.vector_store %arg7[%60, %c0_38, %c0_39], %63 {strides = array<i32>} : memref<16x8x128xf32, #tpu.memory_space<vmem>>, vector<1x8x128xf32>,
    %c5_i32 = arith.constant 5 : i32
    %64 = arith.index_cast %c5_i32 : i32 to index
    %c0_40 = arith.constant 0 : index
    %c0_41 = arith.constant 0 : index
    %65 = vector.load %arg10[%64, %c0_40, %c0_41] : memref<16x8x128xf32, #tpu.memory_space<vmem>>, vector<1x8x128xf32>
    %66 = vector.shape_cast %65 : vector<1x8x128xf32> to vector<8x128xf32>
    %cst_42 = arith.constant dense<0.000000e+00> : vector<8x128xf32>
    %67 = tpu.matmul %59, %12, %cst_42 {dimension_numbers = #tpu.dot_dimension_numbers<[1], [0], [0], [1], [0, 0, 1, 1], [], []>} : vector<8x128xf32>, vector<128x128xf32>, vector<8x128xf32> -> vector<8x128xf32>
    %68 = arith.addf %66, %67 : vector<8x128xf32>
    %69 = math.tanh %68 : vector<8x128xf32>
    %70 = arith.index_cast %c5_i32 : i32 to index
    %c0_43 = arith.constant 0 : index
    %c0_44 = arith.constant 0 : index
    %71 = vector.load %arg7[%70, %c0_43, %c0_44] : memref<16x8x128xf32, #tpu.memory_space<vmem>>, vector<1x8x128xf32>
    %72 = vector.shape_cast %71 : vector<1x8x128xf32> to vector<8x128xf32>
    %73 = vector.shape_cast %69 : vector<8x128xf32> to vector<1x8x128xf32>
    tpu.vector_store %arg7[%70, %c0_43, %c0_44], %73 {strides = array<i32>} : memref<16x8x128xf32, #tpu.memory_space<vmem>>, vector<1x8x128xf32>,
    %c6_i32 = arith.constant 6 : i32
    %74 = arith.index_cast %c6_i32 : i32 to index
    %c0_45 = arith.constant 0 : index
    %c0_46 = arith.constant 0 : index
    %75 = vector.load %arg10[%74, %c0_45, %c0_46] : memref<16x8x128xf32, #tpu.memory_space<vmem>>, vector<1x8x128xf32>
    %76 = vector.shape_cast %75 : vector<1x8x128xf32> to vector<8x128xf32>
    %cst_47 = arith.constant dense<0.000000e+00> : vector<8x128xf32>
    %77 = tpu.matmul %69, %12, %cst_47 {dimension_numbers = #tpu.dot_dimension_numbers<[1], [0], [0], [1], [0, 0, 1, 1], [], []>} : vector<8x128xf32>, vector<128x128xf32>, vector<8x128xf32> -> vector<8x128xf32>
    %78 = arith.addf %76, %77 : vector<8x128xf32>
    %79 = math.tanh %78 : vector<8x128xf32>
    %80 = arith.index_cast %c6_i32 : i32 to index
    %c0_48 = arith.constant 0 : index
    %c0_49 = arith.constant 0 : index
    %81 = vector.load %arg7[%80, %c0_48, %c0_49] : memref<16x8x128xf32, #tpu.memory_space<vmem>>, vector<1x8x128xf32>
    %82 = vector.shape_cast %81 : vector<1x8x128xf32> to vector<8x128xf32>
    %83 = vector.shape_cast %79 : vector<8x128xf32> to vector<1x8x128xf32>
    tpu.vector_store %arg7[%80, %c0_48, %c0_49], %83 {strides = array<i32>} : memref<16x8x128xf32, #tpu.memory_space<vmem>>, vector<1x8x128xf32>,
    %c7_i32 = arith.constant 7 : i32
    %84 = arith.index_cast %c7_i32 : i32 to index
    %c0_50 = arith.constant 0 : index
    %c0_51 = arith.constant 0 : index
    %85 = vector.load %arg10[%84, %c0_50, %c0_51] : memref<16x8x128xf32, #tpu.memory_space<vmem>>, vector<1x8x128xf32>
    %86 = vector.shape_cast %85 : vector<1x8x128xf32> to vector<8x128xf32>
    %cst_52 = arith.constant dense<0.000000e+00> : vector<8x128xf32>
    %87 = tpu.matmul %79, %12, %cst_52 {dimension_numbers = #tpu.dot_dimension_numbers<[1], [0], [0], [1], [0, 0, 1, 1], [], []>} : vector<8x128xf32>, vector<128x128xf32>, vector<8x128xf32> -> vector<8x128xf32>
    %88 = arith.addf %86, %87 : vector<8x128xf32>
    %89 = math.tanh %88 : vector<8x128xf32>
    %90 = arith.index_cast %c7_i32 : i32 to index
    %c0_53 = arith.constant 0 : index
    %c0_54 = arith.constant 0 : index
    %91 = vector.load %arg7[%90, %c0_53, %c0_54] : memref<16x8x128xf32, #tpu.memory_space<vmem>>, vector<1x8x128xf32>
    %92 = vector.shape_cast %91 : vector<1x8x128xf32> to vector<8x128xf32>
    %93 = vector.shape_cast %89 : vector<8x128xf32> to vector<1x8x128xf32>
    tpu.vector_store %arg7[%90, %c0_53, %c0_54], %93 {strides = array<i32>} : memref<16x8x128xf32, #tpu.memory_space<vmem>>, vector<1x8x128xf32>,
    %c8_i32 = arith.constant 8 : i32
    %94 = arith.index_cast %c8_i32 : i32 to index
    %c0_55 = arith.constant 0 : index
    %c0_56 = arith.constant 0 : index
    %95 = vector.load %arg10[%94, %c0_55, %c0_56] : memref<16x8x128xf32, #tpu.memory_space<vmem>>, vector<1x8x128xf32>
    %96 = vector.shape_cast %95 : vector<1x8x128xf32> to vector<8x128xf32>
    %cst_57 = arith.constant dense<0.000000e+00> : vector<8x128xf32>
    %97 = tpu.matmul %89, %12, %cst_57 {dimension_numbers = #tpu.dot_dimension_numbers<[1], [0], [0], [1], [0, 0, 1, 1], [], []>} : vector<8x128xf32>, vector<128x128xf32>, vector<8x128xf32> -> vector<8x128xf32>
    %98 = arith.addf %96, %97 : vector<8x128xf32>
    %99 = math.tanh %98 : vector<8x128xf32>
    %100 = arith.index_cast %c8_i32 : i32 to index
    %c0_58 = arith.constant 0 : index
    %c0_59 = arith.constant 0 : index
    %101 = vector.load %arg7[%100, %c0_58, %c0_59] : memref<16x8x128xf32, #tpu.memory_space<vmem>>, vector<1x8x128xf32>
    %102 = vector.shape_cast %101 : vector<1x8x128xf32> to vector<8x128xf32>
    %103 = vector.shape_cast %99 : vector<8x128xf32> to vector<1x8x128xf32>
    tpu.vector_store %arg7[%100, %c0_58, %c0_59], %103 {strides = array<i32>} : memref<16x8x128xf32, #tpu.memory_space<vmem>>, vector<1x8x128xf32>,
    %c9_i32 = arith.constant 9 : i32
    %104 = arith.index_cast %c9_i32 : i32 to index
    %c0_60 = arith.constant 0 : index
    %c0_61 = arith.constant 0 : index
    %105 = vector.load %arg10[%104, %c0_60, %c0_61] : memref<16x8x128xf32, #tpu.memory_space<vmem>>, vector<1x8x128xf32>
    %106 = vector.shape_cast %105 : vector<1x8x128xf32> to vector<8x128xf32>
    %cst_62 = arith.constant dense<0.000000e+00> : vector<8x128xf32>
    %107 = tpu.matmul %99, %12, %cst_62 {dimension_numbers = #tpu.dot_dimension_numbers<[1], [0], [0], [1], [0, 0, 1, 1], [], []>} : vector<8x128xf32>, vector<128x128xf32>, vector<8x128xf32> -> vector<8x128xf32>
    %108 = arith.addf %106, %107 : vector<8x128xf32>
    %109 = math.tanh %108 : vector<8x128xf32>
    %110 = arith.index_cast %c9_i32 : i32 to index
    %c0_63 = arith.constant 0 : index
    %c0_64 = arith.constant 0 : index
    %111 = vector.load %arg7[%110, %c0_63, %c0_64] : memref<16x8x128xf32, #tpu.memory_space<vmem>>, vector<1x8x128xf32>
    %112 = vector.shape_cast %111 : vector<1x8x128xf32> to vector<8x128xf32>
    %113 = vector.shape_cast %109 : vector<8x128xf32> to vector<1x8x128xf32>
    tpu.vector_store %arg7[%110, %c0_63, %c0_64], %113 {strides = array<i32>} : memref<16x8x128xf32, #tpu.memory_space<vmem>>, vector<1x8x128xf32>,
    %c10_i32 = arith.constant 10 : i32
    %114 = arith.index_cast %c10_i32 : i32 to index
    %c0_65 = arith.constant 0 : index
    %c0_66 = arith.constant 0 : index
    %115 = vector.load %arg10[%114, %c0_65, %c0_66] : memref<16x8x128xf32, #tpu.memory_space<vmem>>, vector<1x8x128xf32>
    %116 = vector.shape_cast %115 : vector<1x8x128xf32> to vector<8x128xf32>
    %cst_67 = arith.constant dense<0.000000e+00> : vector<8x128xf32>
    %117 = tpu.matmul %109, %12, %cst_67 {dimension_numbers = #tpu.dot_dimension_numbers<[1], [0], [0], [1], [0, 0, 1, 1], [], []>} : vector<8x128xf32>, vector<128x128xf32>, vector<8x128xf32> -> vector<8x128xf32>
    %118 = arith.addf %116, %117 : vector<8x128xf32>
    %119 = math.tanh %118 : vector<8x128xf32>
    %120 = arith.index_cast %c10_i32 : i32 to index
    %c0_68 = arith.constant 0 : index
    %c0_69 = arith.constant 0 : index
    %121 = vector.load %arg7[%120, %c0_68, %c0_69] : memref<16x8x128xf32, #tpu.memory_space<vmem>>, vector<1x8x128xf32>
    %122 = vector.shape_cast %121 : vector<1x8x128xf32> to vector<8x128xf32>
    %123 = vector.shape_cast %119 : vector<8x128xf32> to vector<1x8x128xf32>
    tpu.vector_store %arg7[%120, %c0_68, %c0_69], %123 {strides = array<i32>} : memref<16x8x128xf32, #tpu.memory_space<vmem>>, vector<1x8x128xf32>,
    %c11_i32 = arith.constant 11 : i32
    %124 = arith.index_cast %c11_i32 : i32 to index
    %c0_70 = arith.constant 0 : index
    %c0_71 = arith.constant 0 : index
    %125 = vector.load %arg10[%124, %c0_70, %c0_71] : memref<16x8x128xf32, #tpu.memory_space<vmem>>, vector<1x8x128xf32>
    %126 = vector.shape_cast %125 : vector<1x8x128xf32> to vector<8x128xf32>
    %cst_72 = arith.constant dense<0.000000e+00> : vector<8x128xf32>
    %127 = tpu.matmul %119, %12, %cst_72 {dimension_numbers = #tpu.dot_dimension_numbers<[1], [0], [0], [1], [0, 0, 1, 1], [], []>} : vector<8x128xf32>, vector<128x128xf32>, vector<8x128xf32> -> vector<8x128xf32>
    %128 = arith.addf %126, %127 : vector<8x128xf32>
    %129 = math.tanh %128 : vector<8x128xf32>
    %130 = arith.index_cast %c11_i32 : i32 to index
    %c0_73 = arith.constant 0 : index
    %c0_74 = arith.constant 0 : index
    %131 = vector.load %arg7[%130, %c0_73, %c0_74] : memref<16x8x128xf32, #tpu.memory_space<vmem>>, vector<1x8x128xf32>
    %132 = vector.shape_cast %131 : vector<1x8x128xf32> to vector<8x128xf32>
    %133 = vector.shape_cast %129 : vector<8x128xf32> to vector<1x8x128xf32>
    tpu.vector_store %arg7[%130, %c0_73, %c0_74], %133 {strides = array<i32>} : memref<16x8x128xf32, #tpu.memory_space<vmem>>, vector<1x8x128xf32>,
    %c12_i32 = arith.constant 12 : i32
    %134 = arith.index_cast %c12_i32 : i32 to index
    %c0_75 = arith.constant 0 : index
    %c0_76 = arith.constant 0 : index
    %135 = vector.load %arg10[%134, %c0_75, %c0_76] : memref<16x8x128xf32, #tpu.memory_space<vmem>>, vector<1x8x128xf32>
    %136 = vector.shape_cast %135 : vector<1x8x128xf32> to vector<8x128xf32>
    %cst_77 = arith.constant dense<0.000000e+00> : vector<8x128xf32>
    %137 = tpu.matmul %129, %12, %cst_77 {dimension_numbers = #tpu.dot_dimension_numbers<[1], [0], [0], [1], [0, 0, 1, 1], [], []>} : vector<8x128xf32>, vector<128x128xf32>, vector<8x128xf32> -> vector<8x128xf32>
    %138 = arith.addf %136, %137 : vector<8x128xf32>
    %139 = math.tanh %138 : vector<8x128xf32>
    %140 = arith.index_cast %c12_i32 : i32 to index
    %c0_78 = arith.constant 0 : index
    %c0_79 = arith.constant 0 : index
    %141 = vector.load %arg7[%140, %c0_78, %c0_79] : memref<16x8x128xf32, #tpu.memory_space<vmem>>, vector<1x8x128xf32>
    %142 = vector.shape_cast %141 : vector<1x8x128xf32> to vector<8x128xf32>
    %143 = vector.shape_cast %139 : vector<8x128xf32> to vector<1x8x128xf32>
    tpu.vector_store %arg7[%140, %c0_78, %c0_79], %143 {strides = array<i32>} : memref<16x8x128xf32, #tpu.memory_space<vmem>>, vector<1x8x128xf32>,
    %c13_i32 = arith.constant 13 : i32
    %144 = arith.index_cast %c13_i32 : i32 to index
    %c0_80 = arith.constant 0 : index
    %c0_81 = arith.constant 0 : index
    %145 = vector.load %arg10[%144, %c0_80, %c0_81] : memref<16x8x128xf32, #tpu.memory_space<vmem>>, vector<1x8x128xf32>
    %146 = vector.shape_cast %145 : vector<1x8x128xf32> to vector<8x128xf32>
    %cst_82 = arith.constant dense<0.000000e+00> : vector<8x128xf32>
    %147 = tpu.matmul %139, %12, %cst_82 {dimension_numbers = #tpu.dot_dimension_numbers<[1], [0], [0], [1], [0, 0, 1, 1], [], []>} : vector<8x128xf32>, vector<128x128xf32>, vector<8x128xf32> -> vector<8x128xf32>
    %148 = arith.addf %146, %147 : vector<8x128xf32>
    %149 = math.tanh %148 : vector<8x128xf32>
    %150 = arith.index_cast %c13_i32 : i32 to index
    %c0_83 = arith.constant 0 : index
    %c0_84 = arith.constant 0 : index
    %151 = vector.load %arg7[%150, %c0_83, %c0_84] : memref<16x8x128xf32, #tpu.memory_space<vmem>>, vector<1x8x128xf32>
    %152 = vector.shape_cast %151 : vector<1x8x128xf32> to vector<8x128xf32>
    %153 = vector.shape_cast %149 : vector<8x128xf32> to vector<1x8x128xf32>
    tpu.vector_store %arg7[%150, %c0_83, %c0_84], %153 {strides = array<i32>} : memref<16x8x128xf32, #tpu.memory_space<vmem>>, vector<1x8x128xf32>,
    %c14_i32 = arith.constant 14 : i32
    %154 = arith.index_cast %c14_i32 : i32 to index
    %c0_85 = arith.constant 0 : index
    %c0_86 = arith.constant 0 : index
    %155 = vector.load %arg10[%154, %c0_85, %c0_86] : memref<16x8x128xf32, #tpu.memory_space<vmem>>, vector<1x8x128xf32>
    %156 = vector.shape_cast %155 : vector<1x8x128xf32> to vector<8x128xf32>
    %cst_87 = arith.constant dense<0.000000e+00> : vector<8x128xf32>
    %157 = tpu.matmul %149, %12, %cst_87 {dimension_numbers = #tpu.dot_dimension_numbers<[1], [0], [0], [1], [0, 0, 1, 1], [], []>} : vector<8x128xf32>, vector<128x128xf32>, vector<8x128xf32> -> vector<8x128xf32>
    %158 = arith.addf %156, %157 : vector<8x128xf32>
    %159 = math.tanh %158 : vector<8x128xf32>
    %160 = arith.index_cast %c14_i32 : i32 to index
    %c0_88 = arith.constant 0 : index
    %c0_89 = arith.constant 0 : index
    %161 = vector.load %arg7[%160, %c0_88, %c0_89] : memref<16x8x128xf32, #tpu.memory_space<vmem>>, vector<1x8x128xf32>
    %162 = vector.shape_cast %161 : vector<1x8x128xf32> to vector<8x128xf32>
    %163 = vector.shape_cast %159 : vector<8x128xf32> to vector<1x8x128xf32>
    tpu.vector_store %arg7[%160, %c0_88, %c0_89], %163 {strides = array<i32>} : memref<16x8x128xf32, #tpu.memory_space<vmem>>, vector<1x8x128xf32>,
    %c15_i32 = arith.constant 15 : i32
    %164 = arith.index_cast %c15_i32 : i32 to index
    %c0_90 = arith.constant 0 : index
    %c0_91 = arith.constant 0 : index
    %165 = vector.load %arg10[%164, %c0_90, %c0_91] : memref<16x8x128xf32, #tpu.memory_space<vmem>>, vector<1x8x128xf32>
    %166 = vector.shape_cast %165 : vector<1x8x128xf32> to vector<8x128xf32>
    %cst_92 = arith.constant dense<0.000000e+00> : vector<8x128xf32>
    %167 = tpu.matmul %159, %12, %cst_92 {dimension_numbers = #tpu.dot_dimension_numbers<[1], [0], [0], [1], [0, 0, 1, 1], [], []>} : vector<8x128xf32>, vector<128x128xf32>, vector<8x128xf32> -> vector<8x128xf32>
    %168 = arith.addf %166, %167 : vector<8x128xf32>
    %169 = math.tanh %168 : vector<8x128xf32>
    %170 = arith.index_cast %c15_i32 : i32 to index
    %c0_93 = arith.constant 0 : index
    %c0_94 = arith.constant 0 : index
    %171 = vector.load %arg7[%170, %c0_93, %c0_94] : memref<16x8x128xf32, #tpu.memory_space<vmem>>, vector<1x8x128xf32>
    %172 = vector.shape_cast %171 : vector<1x8x128xf32> to vector<8x128xf32>
    %173 = vector.shape_cast %169 : vector<8x128xf32> to vector<1x8x128xf32>
    tpu.vector_store %arg7[%170, %c0_93, %c0_94], %173 {strides = array<i32>} : memref<16x8x128xf32, #tpu.memory_space<vmem>>, vector<1x8x128xf32>,
    %c16_i32 = arith.constant 16 : i32
    %c0_95 = arith.constant 0 : index
    %c0_96 = arith.constant 0 : index
    %174 = vector.load %arg9[%c0_95, %c0_96] : memref<8x128xf32, #tpu.memory_space<vmem>>, vector<8x128xf32>
    tpu.vector_store %arg9[%c0_95, %c0_96], %169 {strides = array<i32>} : memref<8x128xf32, #tpu.memory_space<vmem>>, vector<8x128xf32>,
    %c1_i32_97 = arith.constant 1 : i32
    %175 = arith.cmpi eq, %arg1, %c1_i32_97 : i32
    %176 = arith.extui %175 : i1 to i32
    %c0_i32_98 = arith.constant 0 : i32
    %177 = arith.cmpi ne, %176, %c0_i32_98 : i32
    scf.if %177 {
      %c0_99 = arith.constant 0 : index
      %c0_100 = arith.constant 0 : index
      %c0_101 = arith.constant 0 : index
      %178 = vector.load %arg8[%c0_99, %c0_100, %c0_101] : memref<1x8x128xf32, #tpu.memory_space<vmem>>, vector<1x8x128xf32>
      %179 = vector.shape_cast %178 : vector<1x8x128xf32> to vector<8x128xf32>
      %180 = vector.shape_cast %169 : vector<8x128xf32> to vector<1x8x128xf32>
      tpu.vector_store %arg8[%c0_99, %c0_100, %c0_101], %180 {strides = array<i32>} : memref<1x8x128xf32, #tpu.memory_space<vmem>>, vector<1x8x128xf32>,
    } else {
    }
    return
  }
  func.func @transform_0(%arg0: i32, %arg1: i32) -> (i32, i32, i32) {
    %c0_i32 = arith.constant 0 : i32
    %c0_i32_0 = arith.constant 0 : i32
    return %arg1, %arg0, %c0_i32 : i32, i32, i32
  }
  func.func @transform_1(%arg0: i32, %arg1: i32) -> (i32, i32, i32) {
    %c0_i32 = arith.constant 0 : i32
    %c0_i32_0 = arith.constant 0 : i32
    %c0_i32_1 = arith.constant 0 : i32
    return %c0_i32, %arg0, %c0_i32_0 : i32, i32, i32
  }
  func.func @transform_2(%arg0: i32, %arg1: i32) -> (i32, i32) {
    %c0_i32 = arith.constant 0 : i32
    %c0_i32_0 = arith.constant 0 : i32
    %c0_i32_1 = arith.constant 0 : i32
    return %c0_i32, %c0_i32_0 : i32, i32
  }
  func.func @transform_3(%arg0: i32, %arg1: i32) -> (i32, i32) {
    %c0_i32 = arith.constant 0 : i32
    %c0_i32_0 = arith.constant 0 : i32
    %c0_i32_1 = arith.constant 0 : i32
    return %c0_i32, %c0_i32_0 : i32, i32
  }
  func.func @transform_4(%arg0: i32, %arg1: i32) -> (i32, i32) {
    %c0_i32 = arith.constant 0 : i32
    %c0_i32_0 = arith.constant 0 : i32
    %c0_i32_1 = arith.constant 0 : i32
    return %c0_i32, %c0_i32_0 : i32, i32
  }
  func.func @transform_5(%arg0: i32, %arg1: i32) -> (i32, i32, i32) {
    %c0_i32 = arith.constant 0 : i32
    %c0_i32_0 = arith.constant 0 : i32
    return %arg1, %arg0, %c0_i32 : i32, i32, i32
  }
  func.func @transform_6(%arg0: i32, %arg1: i32) -> (i32, i32, i32) {
    %c0_i32 = arith.constant 0 : i32
    %c0_i32_0 = arith.constant 0 : i32
    %c0_i32_1 = arith.constant 0 : i32
    return %c0_i32, %arg0, %c0_i32_0 : i32, i32, i32
  }
}

module attributes {stable_mosaic.version = 11 : i64} {
  func.func @_proj_kernel(%arg0: i32, %arg1: i32, %arg2: i32, %arg3: memref<256x128xf32, #tpu.memory_space<vmem>>, %arg4: memref<128x128xf32, #tpu.memory_space<vmem>>, %arg5: memref<1x128xf32, #tpu.memory_space<vmem>>, %arg6: memref<256x128xf32, #tpu.memory_space<vmem>>, %arg7: memref<256x128xf32, #tpu.memory_space<vmem>>) attributes {dimension_semantics = [#tpu.dimension_semantics<parallel>, #tpu.dimension_semantics<parallel>, #tpu.dimension_semantics<arbitrary>], iteration_bounds = array<i64: 1, 1, 1>, scalar_prefetch = 0 : i64, scratch_operands = 1 : i64, tpu.core_type = #tpu.core_type<tc>, window_params = [{transform_indices = @transform_0, window_bounds = array<i64: 256, 128>}, {transform_indices = @transform_1, window_bounds = array<i64: 128, 128>}, {transform_indices = @transform_2, window_bounds = array<i64: 1, 128>}, {transform_indices = @transform_3, window_bounds = array<i64: 256, 128>}]} {
    %c0_i32 = arith.constant 0 : i32
    %0 = arith.cmpi eq, %arg2, %c0_i32 : i32
    %1 = arith.extui %0 : i1 to i32
    %c0_i32_0 = arith.constant 0 : i32
    %2 = arith.cmpi ne, %1, %c0_i32_0 : i32
    scf.if %2 {
      %cst_10 = arith.constant 0.000000e+00 : f32
      %12 = vector.broadcast %cst_10 : f32 to vector<256x128xf32>
      %c0_11 = arith.constant 0 : index
      %c0_12 = arith.constant 0 : index
      %13 = vector.load %arg7[%c0_11, %c0_12] : memref<256x128xf32, #tpu.memory_space<vmem>>, vector<256x128xf32>
      tpu.vector_store %arg7[%c0_11, %c0_12], %12 {strides = array<i32>} : memref<256x128xf32, #tpu.memory_space<vmem>>, vector<256x128xf32>,
    } else {
    }
    %c0 = arith.constant 0 : index
    %c0_1 = arith.constant 0 : index
    %3 = vector.load %arg3[%c0, %c0_1] : memref<256x128xf32, #tpu.memory_space<vmem>>, vector<256x128xf32>
    %c0_2 = arith.constant 0 : index
    %c0_3 = arith.constant 0 : index
    %4 = vector.load %arg7[%c0_2, %c0_3] : memref<256x128xf32, #tpu.memory_space<vmem>>, vector<256x128xf32>
    %c0_4 = arith.constant 0 : index
    %c0_5 = arith.constant 0 : index
    %5 = vector.load %arg4[%c0_4, %c0_5] : memref<128x128xf32, #tpu.memory_space<vmem>>, vector<128x128xf32>
    %cst = arith.constant dense<0.000000e+00> : vector<256x128xf32>
    %6 = tpu.matmul %3, %5, %cst {dimension_numbers = #tpu.dot_dimension_numbers<[1], [0], [0], [1], [0, 0, 1, 1], [], []>} : vector<256x128xf32>, vector<128x128xf32>, vector<256x128xf32> -> vector<256x128xf32>
    %7 = arith.addf %4, %6 : vector<256x128xf32>
    %c0_6 = arith.constant 0 : index
    %c0_7 = arith.constant 0 : index
    %8 = vector.load %arg7[%c0_6, %c0_7] : memref<256x128xf32, #tpu.memory_space<vmem>>, vector<256x128xf32>
    tpu.vector_store %arg7[%c0_6, %c0_7], %7 {strides = array<i32>} : memref<256x128xf32, #tpu.memory_space<vmem>>, vector<256x128xf32>,
    %c0_i32_8 = arith.constant 0 : i32
    %9 = arith.cmpi eq, %arg2, %c0_i32_8 : i32
    %10 = arith.extui %9 : i1 to i32
    %c0_i32_9 = arith.constant 0 : i32
    %11 = arith.cmpi ne, %10, %c0_i32_9 : i32
    scf.if %11 {
      %c0_10 = arith.constant 0 : index
      %c0_11 = arith.constant 0 : index
      %12 = vector.load %arg7[%c0_10, %c0_11] : memref<256x128xf32, #tpu.memory_space<vmem>>, vector<256x128xf32>
      %c0_12 = arith.constant 0 : index
      %c0_13 = arith.constant 0 : index
      %13 = vector.load %arg5[%c0_12, %c0_13] : memref<1x128xf32, #tpu.memory_space<vmem>>, vector<1x128xf32>
      %14 = vector.broadcast %13 : vector<1x128xf32> to vector<256x128xf32>
      %15 = arith.addf %12, %14 : vector<256x128xf32>
      %c0_14 = arith.constant 0 : index
      %c0_15 = arith.constant 0 : index
      %16 = vector.load %arg6[%c0_14, %c0_15] : memref<256x128xf32, #tpu.memory_space<vmem>>, vector<256x128xf32>
      tpu.vector_store %arg6[%c0_14, %c0_15], %15 {strides = array<i32>} : memref<256x128xf32, #tpu.memory_space<vmem>>, vector<256x128xf32>,
    } else {
    }
    return
  }
  func.func @transform_0(%arg0: i32, %arg1: i32, %arg2: i32) -> (i32, i32) {
    %c0_i32 = arith.constant 0 : i32
    return %arg0, %arg2 : i32, i32
  }
  func.func @transform_1(%arg0: i32, %arg1: i32, %arg2: i32) -> (i32, i32) {
    %c0_i32 = arith.constant 0 : i32
    return %arg2, %arg1 : i32, i32
  }
  func.func @transform_2(%arg0: i32, %arg1: i32, %arg2: i32) -> (i32, i32) {
    %c0_i32 = arith.constant 0 : i32
    %c0_i32_0 = arith.constant 0 : i32
    return %c0_i32, %arg1 : i32, i32
  }
  func.func @transform_3(%arg0: i32, %arg1: i32, %arg2: i32) -> (i32, i32) {
    %c0_i32 = arith.constant 0 : i32
    return %arg0, %arg1 : i32, i32
  }
}

</mosaic_0001>

<llo_original>
// kernel: _lambda_.3
$region0: #{_lambda_.3}
  #allocation0 [shape = 'u32[]', space=smem, size = 0x4, offset = 0x4, fixed_abs, tag = 'smem constant byte address 0x4 - core index']
  #allocation1 [shape = 'u32[144,128]{1,0:T(1,128)}', space=vmem, size = 0x12000, scoped, tag = 'internal scratch']
  #allocation2 [shape = 'f32[256,128]{1,0:T(8,128)}', space=vmem, size = 0x20000, scoped, tag = 'scratch operand']
  %s0 = inlined_call_operand.vmem [shape: f32[256,128], index: 0, kind: input, shape index: {}]
  %s1 = inlined_call_operand.vmem [shape: f32[128,128], index: 1, kind: input, shape index: {}]
  %s2 = inlined_call_operand.vmem [shape: f32[1,128], index: 2, kind: input, shape index: {}]
  %s3 = inlined_call_operand.hbm [shape: f32[256,128], index: 3, kind: output, shape index: {}]
  %s4 = sld [smem:[#allocation0]]
  $region30: #{_lambda_.3} parent=0
    _
  %s6 = ssub.s32 1, %s4
  %s7 = scalar_select 0, %s6, %s4
  $region1: #{_lambda_.3} parent=0
    #allocation3 [shape = 'u8[131072]{0}', space=vmem, size = 0x20000, scoped, tag = 'output window, operand 0, single buffered']
    #allocation4 [shape = 's32[1]{0}', space=sflag, size = 0x4, scoped, tag = 'scoped memory for _lambda_.3']
    %8 = vsyncpa [#allocation4], 0
    // Predicated region
    $region2: #{_lambda_.3} parent=1 // pred_check
      _
    $region3: #{_lambda_.3} parent=1 // pred_check_branch
      %10 = sbr.rel (0) target = $region5
    $region4: #{_lambda_.3} parent=1 // pred_region
      _
    $region5: #{_lambda_.3} parent=1 // pred_fallthru
      _
    // Predicated region
    $region6: #{_lambda_.3} parent=1 // pred_check
      _
    $region7: #{_lambda_.3} parent=1 // pred_check_branch
      %12 = sbr.rel (0) target = $region9
    $region8: #{_lambda_.3} parent=1 // pred_region
      _
    $region9: #{_lambda_.3} parent=1 // pred_fallthru
      _
    // Predicated region
    $region10: #{_lambda_.3} parent=1 // pred_check
      _
    $region11: #{_lambda_.3} parent=1 // pred_check_branch
      %14 = sbr.rel (0) target = $region13
    $region12: #{_lambda_.3} parent=1 // pred_region
      _
    $region13: #{_lambda_.3} parent=1 // pred_fallthru
      _
    %p15 = scmp.eq.s32.totalorder 0, 0
    // Predicated region
    $region14: #{_lambda_.3} parent=1 // pred_check
      %p16 = pneg %p15
    $region15: #{_lambda_.3} parent=1 // pred_check_branch
      %18 = sbr.rel (%p16) target = $region17
    $region16: #{_lambda_.3} parent=1 // pred_region
      %19 = vst [vmem:[#allocation2] sm:$0xff] 0.0
      %20 = vst [vmem:[#allocation2 + $0x8] sm:$0xff] 0.0
      %21 = vst [vmem:[#allocation2 + $0x10] sm:$0xff] 0.0
      %22 = vst [vmem:[#allocation2 + $0x18] sm:$0xff] 0.0
      %23 = vst [vmem:[#allocation2 + $0x20] sm:$0xff] 0.0
      %24 = vst [vmem:[#allocation2 + $0x28] sm:$0xff] 0.0
      %25 = vst [vmem:[#allocation2 + $0x30] sm:$0xff] 0.0
      %26 = vst [vmem:[#allocation2 + $0x38] sm:$0xff] 0.0
      %27 = vst [vmem:[#allocation2 + $0x40] sm:$0xff] 0.0
      %28 = vst [vmem:[#allocation2 + $0x48] sm:$0xff] 0.0
      %29 = vst [vmem:[#allocation2 + $0x50] sm:$0xff] 0.0
      %30 = vst [vmem:[#allocation2 + $0x58] sm:$0xff] 0.0
      %31 = vst [vmem:[#allocation2 + $0x60] sm:$0xff] 0.0
      %32 = vst [vmem:[#allocation2 + $0x68] sm:$0xff] 0.0
      %33 = vst [vmem:[#allocation2 + $0x70] sm:$0xff] 0.0
      %34 = vst [vmem:[#allocation2 + $0x78] sm:$0xff] 0.0
      %35 = vst [vmem:[#allocation2 + $0x80] sm:$0xff] 0.0
      %36 = vst [vmem:[#allocation2 + $0x88] sm:$0xff] 0.0
      %37 = vst [vmem:[#allocation2 + $0x90] sm:$0xff] 0.0
      %38 = vst [vmem:[#allocation2 + $0x98] sm:$0xff] 0.0
      %39 = vst [vmem:[#allocation2 + $0xa0] sm:$0xff] 0.0
      %40 = vst [vmem:[#allocation2 + $0xa8] sm:$0xff] 0.0
      %41 = vst [vmem:[#allocation2 + $0xb0] sm:$0xff] 0.0
      %42 = vst [vmem:[#allocation2 + $0xb8] sm:$0xff] 0.0
      %43 = vst [vmem:[#allocation2 + $0xc0] sm:$0xff] 0.0
      %44 = vst [vmem:[#allocation2 + $0xc8] sm:$0xff] 0.0
      %45 = vst [vmem:[#allocation2 + $0xd0] sm:$0xff] 0.0
      %46 = vst [vmem:[#allocation2 + $0xd8] sm:$0xff] 0.0
      %47 = vst [vmem:[#allocation2 + $0xe0] sm:$0xff] 0.0
      %48 = vst [vmem:[#allocation2 + $0xe8] sm:$0xff] 0.0
      %49 = vst [vmem:[#allocation2 + $0xf0] sm:$0xff] 0.0
      %50 = vst [vmem:[#allocation2 + $0xf8] sm:$0xff] 0.0
    $region17: #{_lambda_.3} parent=1 // pred_fallthru
      _
    %v51 = vld [vmem:[%s0] sm:$0xff]
    %v52 = vld [vmem:[%s0 + $0x8] sm:$0xff]
    %v53 = vld [vmem:[%s0 + $0x10] sm:$0xff]
    %v54 = vld [vmem:[%s0 + $0x18] sm:$0xff]
    %v55 = vld [vmem:[%s0 + $0x20] sm:$0xff]
    %v56 = vld [vmem:[%s0 + $0x28] sm:$0xff]
    %v57 = vld [vmem:[%s0 + $0x30] sm:$0xff]
    %v58 = vld [vmem:[%s0 + $0x38] sm:$0xff]
    %v59 = vld [vmem:[%s0 + $0x40] sm:$0xff]
    %v60 = vld [vmem:[%s0 + $0x48] sm:$0xff]
    %v61 = vld [vmem:[%s0 + $0x50] sm:$0xff]
    %v62 = vld [vmem:[%s0 + $0x58] sm:$0xff]
    %v63 = vld [vmem:[%s0 + $0x60] sm:$0xff]
    %v64 = vld [vmem:[%s0 + $0x68] sm:$0xff]
    %v65 = vld [vmem:[%s0 + $0x70] sm:$0xff]
    %v66 = vld [vmem:[%s0 + $0x78] sm:$0xff]
    %v67 = vld [vmem:[%s0 + $0x80] sm:$0xff]
    %v68 = vld [vmem:[%s0 + $0x88] sm:$0xff]
    %v69 = vld [vmem:[%s0 + $0x90] sm:$0xff]
    %v70 = vld [vmem:[%s0 + $0x98] sm:$0xff]
    %v71 = vld [vmem:[%s0 + $0xa0] sm:$0xff]
    %v72 = vld [vmem:[%s0 + $0xa8] sm:$0xff]
    %v73 = vld [vmem:[%s0 + $0xb0] sm:$0xff]
    %v74 = vld [vmem:[%s0 + $0xb8] sm:$0xff]
    %v75 = vld [vmem:[%s0 + $0xc0] sm:$0xff]
    %v76 = vld [vmem:[%s0 + $0xc8] sm:$0xff]
    %v77 = vld [vmem:[%s0 + $0xd0] sm:$0xff]
    %v78 = vld [vmem:[%s0 + $0xd8] sm:$0xff]
    %v79 = vld [vmem:[%s0 + $0xe0] sm:$0xff]
    %v80 = vld [vmem:[%s0 + $0xe8] sm:$0xff]
    %v81 = vld [vmem:[%s0 + $0xf0] sm:$0xff]
    %v82 = vld [vmem:[%s0 + $0xf8] sm:$0xff]
    %v83 = vld [vmem:[#allocation2] sm:$0xff]
    %v84 = vld [vmem:[#allocation2 + $0x8] sm:$0xff]
    %v85 = vld [vmem:[#allocation2 + $0x10] sm:$0xff]
    %v86 = vld [vmem:[#allocation2 + $0x18] sm:$0xff]
    %v87 = vld [vmem:[#allocation2 + $0x20] sm:$0xff]
    %v88 = vld [vmem:[#allocation2 + $0x28] sm:$0xff]
    %v89 = vld [vmem:[#allocation2 + $0x30] sm:$0xff]
    %v90 = vld [vmem:[#allocation2 + $0x38] sm:$0xff]
    %v91 = vld [vmem:[#allocation2 + $0x40] sm:$0xff]
    %v92 = vld [vmem:[#allocation2 + $0x48] sm:$0xff]
    %v93 = vld [vmem:[#allocation2 + $0x50] sm:$0xff]
    %v94 = vld [vmem:[#allocation2 + $0x58] sm:$0xff]
    %v95 = vld [vmem:[#allocation2 + $0x60] sm:$0xff]
    %v96 = vld [vmem:[#allocation2 + $0x68] sm:$0xff]
    %v97 = vld [vmem:[#allocation2 + $0x70] sm:$0xff]
    %v98 = vld [vmem:[#allocation2 + $0x78] sm:$0xff]
    %v99 = vld [vmem:[#allocation2 + $0x80] sm:$0xff]
    %v100 = vld [vmem:[#allocation2 + $0x88] sm:$0xff]
    %v101 = vld [vmem:[#allocation2 + $0x90] sm:$0xff]
    %v102 = vld [vmem:[#allocation2 + $0x98] sm:$0xff]
    %v103 = vld [vmem:[#allocation2 + $0xa0] sm:$0xff]
    %v104 = vld [vmem:[#allocation2 + $0xa8] sm:$0xff]
    %v105 = vld [vmem:[#allocation2 + $0xb0] sm:$0xff]
    %v106 = vld [vmem:[#allocation2 + $0xb8] sm:$0xff]
    %v107 = vld [vmem:[#allocation2 + $0xc0] sm:$0xff]
    %v108 = vld [vmem:[#allocation2 + $0xc8] sm:$0xff]
    %v109 = vld [vmem:[#allocation2 + $0xd0] sm:$0xff]
    %v110 = vld [vmem:[#allocation2 + $0xd8] sm:$0xff]
    %v111 = vld [vmem:[#allocation2 + $0xe0] sm:$0xff]
    %v112 = vld [vmem:[#allocation2 + $0xe8] sm:$0xff]
    %v113 = vld [vmem:[#allocation2 + $0xf0] sm:$0xff]
    %v114 = vld [vmem:[#allocation2 + $0xf8] sm:$0xff]
    %v115 = vld [vmem:[%s1] sm:$0xff]
    %v116 = vld [vmem:[%s1 + $0x8] sm:$0xff]
    %v117 = vld [vmem:[%s1 + $0x10] sm:$0xff]
    %v118 = vld [vmem:[%s1 + $0x18] sm:$0xff]
    %v119 = vld [vmem:[%s1 + $0x20] sm:$0xff]
    %v120 = vld [vmem:[%s1 + $0x28] sm:$0xff]
    %v121 = vld [vmem:[%s1 + $0x30] sm:$0xff]
    %v122 = vld [vmem:[%s1 + $0x38] sm:$0xff]
    %v123 = vld [vmem:[%s1 + $0x40] sm:$0xff]
    %v124 = vld [vmem:[%s1 + $0x48] sm:$0xff]
    %v125 = vld [vmem:[%s1 + $0x50] sm:$0xff]
    %v126 = vld [vmem:[%s1 + $0x58] sm:$0xff]
    %v127 = vld [vmem:[%s1 + $0x60] sm:$0xff]
    %v128 = vld [vmem:[%s1 + $0x68] sm:$0xff]
    %v129 = vld [vmem:[%s1 + $0x70] sm:$0xff]
    %v130 = vld [vmem:[%s1 + $0x78] sm:$0xff]
    %131 = vmatprep.subr.mxu0 0.0
    %132 = vmatpush1.msra.mxu0 %v115
    %133 = vmatprep.subr.mxu0 0.0
    %134 = vmatpush1.msra.mxu0 %v116
    %135 = vmatprep.subr.mxu0 0.0
    %136 = vmatpush1.msra.mxu0 %v117
    %137 = vmatprep.subr.mxu0 0.0
    %138 = vmatpush1.msra.mxu0 %v118
    %139 = vmatprep.subr.mxu0 0.0
    %140 = vmatpush1.msra.mxu0 %v119
    %141 = vmatprep.subr.mxu0 0.0
    %142 = vmatpush1.msra.mxu0 %v120
    %143 = vmatprep.subr.mxu0 0.0
    %144 = vmatpush1.msra.mxu0 %v121
    %145 = vmatprep.subr.mxu0 0.0
    %146 = vmatpush1.msra.mxu0 %v122
    %147 = vmatprep.subr.mxu0 0.0
    %148 = vmatpush1.msra.mxu0 %v123
    %149 = vmatprep.subr.mxu0 0.0
    %150 = vmatpush1.msra.mxu0 %v124
    %151 = vmatprep.subr.mxu0 0.0
    %152 = vmatpush1.msra.mxu0 %v125
    %153 = vmatprep.subr.mxu0 0.0
    %154 = vmatpush1.msra.mxu0 %v126
    %155 = vmatprep.subr.mxu0 0.0
    %156 = vmatpush1.msra.mxu0 %v127
    %157 = vmatprep.subr.mxu0 0.0
    %158 = vmatpush1.msra.mxu0 %v128
    %159 = vmatprep.subr.mxu0 0.0
    %160 = vmatpush1.msra.mxu0 %v129
    %161 = vmatprep.subr.mxu0 0.0
    %162 = vmatpush1.msra.mxu0 %v130
    %163 = vmatprep.subr.mxu0 0.0
    %164 = vmatpush1.msra.mxu0 0.0
    %165 = vmatprep.subr.mxu0 0.0
    %166 = vmatpush1.msra.mxu0 0.0
    %167 = vmatprep.subr.mxu0 0.0
    %168 = vmatpush1.msra.mxu0 0.0
    %169 = vmatprep.subr.mxu0 0.0
    %170 = vmatpush1.msra.mxu0 0.0
    %171 = vmatprep.subr.mxu0 0.0
    %172 = vmatpush1.msra.mxu0 0.0
    %173 = vmatprep.subr.mxu0 0.0
    %174 = vmatpush1.msra.mxu0 0.0
    %175 = vmatprep.subr.mxu0 0.0
    %176 = vmatpush1.msra.mxu0 0.0
    %177 = vmatprep.subr.mxu0 0.0
    %178 = vmatpush1.msra.mxu0 0.0
    %179 = vmatprep.subr.mxu0 0.0
    %180 = vmatpush1.msra.mxu0 0.0
    %181 = vmatprep.subr.mxu0 0.0
    %182 = vmatpush1.msra.mxu0 0.0
    %183 = vmatprep.subr.mxu0 0.0
    %184 = vmatpush1.msra.mxu0 0.0
    %185 = vmatprep.subr.mxu0 0.0
    %186 = vmatpush1.msra.mxu0 0.0
    %187 = vmatprep.subr.mxu0 0.0
    %188 = vmatpush1.msra.mxu0 0.0
    %189 = vmatprep.subr.mxu0 0.0
    %190 = vmatpush1.msra.mxu0 0.0
    %191 = vmatprep.subr.mxu0 0.0
    %192 = vmatpush1.msra.mxu0 0.0
    %193 = vmatprep.subr.mxu0 0.0
    %194 = vmatpush1.msra.mxu0 0.0
    %195 = vmatprep.mubr.f32.mxu0 0.0
    %196 = vmatmul.mubr.f32.gmra.mrb[0].mxu0 %v51
    %v197 = vpop.f32.mrb[0].mxu0
    %v198 = vadd.f32 0.0, %v197
    %v199 = vpop.f32.mrb[0].mxu0
    %200 = vmatprep.mubr.f32.mxu0 0.0
    %201 = vmatmul.mubr.f32.gmra.mrb[0].mxu0 %v52
    %v202 = vpop.f32.mrb[0].mxu0
    %v203 = vadd.f32 0.0, %v202
    %v204 = vpop.f32.mrb[0].mxu0
    %205 = vmatprep.mubr.f32.mxu0 0.0
    %206 = vmatmul.mubr.f32.gmra.mrb[0].mxu0 %v53
    %v207 = vpop.f32.mrb[0].mxu0
    %v208 = vadd.f32 0.0, %v207
    %v209 = vpop.f32.mrb[0].mxu0
    %210 = vmatprep.mubr.f32.mxu0 0.0
    %211 = vmatmul.mubr.f32.gmra.mrb[0].mxu0 %v54
    %v212 = vpop.f32.mrb[0].mxu0
    %v213 = vadd.f32 0.0, %v212
    %v214 = vpop.f32.mrb[0].mxu0
    %215 = vmatprep.mubr.f32.mxu0 0.0
    %216 = vmatmul.mubr.f32.gmra.mrb[0].mxu0 %v55
    %v217 = vpop.f32.mrb[0].mxu0
    %v218 = vadd.f32 0.0, %v217
    %v219 = vpop.f32.mrb[0].mxu0
    %220 = vmatprep.mubr.f32.mxu0 0.0
    %221 = vmatmul.mubr.f32.gmra.mrb[0].mxu0 %v56
    %v222 = vpop.f32.mrb[0].mxu0
    %v223 = vadd.f32 0.0, %v222
    %v224 = vpop.f32.mrb[0].mxu0
    %225 = vmatprep.mubr.f32.mxu0 0.0
    %226 = vmatmul.mubr.f32.gmra.mrb[0].mxu0 %v57
    %v227 = vpop.f32.mrb[0].mxu0
    %v228 = vadd.f32 0.0, %v227
    %v229 = vpop.f32.mrb[0].mxu0
    %230 = vmatprep.mubr.f32.mxu0 0.0
    %231 = vmatmul.mubr.f32.gmra.mrb[0].mxu0 %v58
    %v232 = vpop.f32.mrb[0].mxu0
    %v233 = vadd.f32 0.0, %v232
    %v234 = vpop.f32.mrb[0].mxu0
    %235 = vmatprep.mubr.f32.mxu0 0.0
    %236 = vmatmul.mubr.f32.gmra.mrb[0].mxu0 %v59
    %v237 = vpop.f32.mrb[0].mxu0
    %v238 = vadd.f32 0.0, %v237
    %v239 = vpop.f32.mrb[0].mxu0
    %240 = vmatprep.mubr.f32.mxu0 0.0
    %241 = vmatmul.mubr.f32.gmra.mrb[0].mxu0 %v60
    %v242 = vpop.f32.mrb[0].mxu0
    %v243 = vadd.f32 0.0, %v242
    %v244 = vpop.f32.mrb[0].mxu0
    %245 = vmatprep.mubr.f32.mxu0 0.0
    %246 = vmatmul.mubr.f32.gmra.mrb[0].mxu0 %v61
    %v247 = vpop.f32.mrb[0].mxu0
    %v248 = vadd.f32 0.0, %v247
    %v249 = vpop.f32.mrb[0].mxu0
    %250 = vmatprep.mubr.f32.mxu0 0.0
    %251 = vmatmul.mubr.f32.gmra.mrb[0].mxu0 %v62
    %v252 = vpop.f32.mrb[0].mxu0
    %v253 = vadd.f32 0.0, %v252
    %v254 = vpop.f32.mrb[0].mxu0
    %255 = vmatprep.mubr.f32.mxu0 0.0
    %256 = vmatmul.mubr.f32.gmra.mrb[0].mxu0 %v63
    %v257 = vpop.f32.mrb[0].mxu0
    %v258 = vadd.f32 0.0, %v257
    %v259 = vpop.f32.mrb[0].mxu0
    %260 = vmatprep.mubr.f32.mxu0 0.0
    %261 = vmatmul.mubr.f32.gmra.mrb[0].mxu0 %v64
    %v262 = vpop.f32.mrb[0].mxu0
    %v263 = vadd.f32 0.0, %v262
    %v264 = vpop.f32.mrb[0].mxu0
    %265 = vmatprep.mubr.f32.mxu0 0.0
    %266 = vmatmul.mubr.f32.gmra.mrb[0].mxu0 %v65
    %v267 = vpop.f32.mrb[0].mxu0
    %v268 = vadd.f32 0.0, %v267
    %v269 = vpop.f32.mrb[0].mxu0
    %270 = vmatprep.mubr.f32.mxu0 0.0
    %271 = vmatmul.mubr.f32.gmra.mrb[0].mxu0 %v66
    %v272 = vpop.f32.mrb[0].mxu0
    %v273 = vadd.f32 0.0, %v272
    %v274 = vpop.f32.mrb[0].mxu0
    %275 = vmatprep.mubr.f32.mxu0 0.0
    %276 = vmatmul.mubr.f32.gmra.mrb[0].mxu0 %v67
    %v277 = vpop.f32.mrb[0].mxu0
    %v278 = vadd.f32 0.0, %v277
    %v279 = vpop.f32.mrb[0].mxu0
    %280 = vmatprep.mubr.f32.mxu0 0.0
    %281 = vmatmul.mubr.f32.gmra.mrb[0].mxu0 %v68
    %v282 = vpop.f32.mrb[0].mxu0
    %v283 = vadd.f32 0.0, %v282
    %v284 = vpop.f32.mrb[0].mxu0
    %285 = vmatprep.mubr.f32.mxu0 0.0
    %286 = vmatmul.mubr.f32.gmra.mrb[0].mxu0 %v69
    %v287 = vpop.f32.mrb[0].mxu0
    %v288 = vadd.f32 0.0, %v287
    %v289 = vpop.f32.mrb[0].mxu0
    %290 = vmatprep.mubr.f32.mxu0 0.0
    %291 = vmatmul.mubr.f32.gmra.mrb[0].mxu0 %v70
    %v292 = vpop.f32.mrb[0].mxu0
    %v293 = vadd.f32 0.0, %v292
    %v294 = vpop.f32.mrb[0].mxu0
    %295 = vmatprep.mubr.f32.mxu0 0.0
    %296 = vmatmul.mubr.f32.gmra.mrb[0].mxu0 %v71
    %v297 = vpop.f32.mrb[0].mxu0
    %v298 = vadd.f32 0.0, %v297
    %v299 = vpop.f32.mrb[0].mxu0
    %300 = vmatprep.mubr.f32.mxu0 0.0
    %301 = vmatmul.mubr.f32.gmra.mrb[0].mxu0 %v72
    %v302 = vpop.f32.mrb[0].mxu0
    %v303 = vadd.f32 0.0, %v302
    %v304 = vpop.f32.mrb[0].mxu0
    %305 = vmatprep.mubr.f32.mxu0 0.0
    %306 = vmatmul.mubr.f32.gmra.mrb[0].mxu0 %v73
    %v307 = vpop.f32.mrb[0].mxu0
    %v308 = vadd.f32 0.0, %v307
    %v309 = vpop.f32.mrb[0].mxu0
    %310 = vmatprep.mubr.f32.mxu0 0.0
    %311 = vmatmul.mubr.f32.gmra.mrb[0].mxu0 %v74
    %v312 = vpop.f32.mrb[0].mxu0
    %v313 = vadd.f32 0.0, %v312
    %v314 = vpop.f32.mrb[0].mxu0
    %315 = vmatprep.mubr.f32.mxu0 0.0
    %316 = vmatmul.mubr.f32.gmra.mrb[0].mxu0 %v75
    %v317 = vpop.f32.mrb[0].mxu0
    %v318 = vadd.f32 0.0, %v317
    %v319 = vpop.f32.mrb[0].mxu0
    %320 = vmatprep.mubr.f32.mxu0 0.0
    %321 = vmatmul.mubr.f32.gmra.mrb[0].mxu0 %v76
    %v322 = vpop.f32.mrb[0].mxu0
    %v323 = vadd.f32 0.0, %v322
    %v324 = vpop.f32.mrb[0].mxu0
    %325 = vmatprep.mubr.f32.mxu0 0.0
    %326 = vmatmul.mubr.f32.gmra.mrb[0].mxu0 %v77
    %v327 = vpop.f32.mrb[0].mxu0
    %v328 = vadd.f32 0.0, %v327
    %v329 = vpop.f32.mrb[0].mxu0
    %330 = vmatprep.mubr.f32.mxu0 0.0
    %331 = vmatmul.mubr.f32.gmra.mrb[0].mxu0 %v78
    %v332 = vpop.f32.mrb[0].mxu0
    %v333 = vadd.f32 0.0, %v332
    %v334 = vpop.f32.mrb[0].mxu0
    %335 = vmatprep.mubr.f32.mxu0 0.0
    %336 = vmatmul.mubr.f32.gmra.mrb[0].mxu0 %v79
    %v337 = vpop.f32.mrb[0].mxu0
    %v338 = vadd.f32 0.0, %v337
    %v339 = vpop.f32.mrb[0].mxu0
    %340 = vmatprep.mubr.f32.mxu0 0.0
    %341 = vmatmul.mubr.f32.gmra.mrb[0].mxu0 %v80
    %v342 = vpop.f32.mrb[0].mxu0
    %v343 = vadd.f32 0.0, %v342
    %v344 = vpop.f32.mrb[0].mxu0
    %345 = vmatprep.mubr.f32.mxu0 0.0
    %346 = vmatmul.mubr.f32.gmra.mrb[0].mxu0 %v81
    %v347 = vpop.f32.mrb[0].mxu0
    %v348 = vadd.f32 0.0, %v347
    %v349 = vpop.f32.mrb[0].mxu0
    %350 = vmatprep.mubr.f32.mxu0 0.0
    %351 = vmatmul.mubr.f32.gmra.mrb[0].mxu0 %v82
    %v352 = vpop.f32.mrb[0].mxu0
    %v353 = vadd.f32 0.0, %v352
    %v354 = vpop.f32.mrb[0].mxu0
    %355 = vdwg.mxu0
    %v356 = vadd.f32 %v83, %v198
    %v357 = vadd.f32 %v84, %v203
    %v358 = vadd.f32 %v85, %v208
    %v359 = vadd.f32 %v86, %v213
    %v360 = vadd.f32 %v87, %v218
    %v361 = vadd.f32 %v88, %v223
    %v362 = vadd.f32 %v89, %v228
    %v363 = vadd.f32 %v90, %v233
    %v364 = vadd.f32 %v91, %v238
    %v365 = vadd.f32 %v92, %v243
    %v366 = vadd.f32 %v93, %v248
    %v367 = vadd.f32 %v94, %v253
    %v368 = vadd.f32 %v95, %v258
    %v369 = vadd.f32 %v96, %v263
    %v370 = vadd.f32 %v97, %v268
    %v371 = vadd.f32 %v98, %v273
    %v372 = vadd.f32 %v99, %v278
    %v373 = vadd.f32 %v100, %v283
    %v374 = vadd.f32 %v101, %v288
    %v375 = vadd.f32 %v102, %v293
    %v376 = vadd.f32 %v103, %v298
    %v377 = vadd.f32 %v104, %v303
    %v378 = vadd.f32 %v105, %v308
    %v379 = vadd.f32 %v106, %v313
    %v380 = vadd.f32 %v107, %v318
    %v381 = vadd.f32 %v108, %v323
    %v382 = vadd.f32 %v109, %v328
    %v383 = vadd.f32 %v110, %v333
    %v384 = vadd.f32 %v111, %v338
    %v385 = vadd.f32 %v112, %v343
    %v386 = vadd.f32 %v113, %v348
    %v387 = vadd.f32 %v114, %v353
    %388 = vst [vmem:[#allocation2] sm:$0xff] %v356
    %389 = vst [vmem:[#allocation2 + $0x8] sm:$0xff] %v357
    %390 = vst [vmem:[#allocation2 + $0x10] sm:$0xff] %v358
    %391 = vst [vmem:[#allocation2 + $0x18] sm:$0xff] %v359
    %392 = vst [vmem:[#allocation2 + $0x20] sm:$0xff] %v360
    %393 = vst [vmem:[#allocation2 + $0x28] sm:$0xff] %v361
    %394 = vst [vmem:[#allocation2 + $0x30] sm:$0xff] %v362
    %395 = vst [vmem:[#allocation2 + $0x38] sm:$0xff] %v363
    %396 = vst [vmem:[#allocation2 + $0x40] sm:$0xff] %v364
    %397 = vst [vmem:[#allocation2 + $0x48] sm:$0xff] %v365
    %398 = vst [vmem:[#allocation2 + $0x50] sm:$0xff] %v366
    %399 = vst [vmem:[#allocation2 + $0x58] sm:$0xff] %v367
    %400 = vst [vmem:[#allocation2 + $0x60] sm:$0xff] %v368
    %401 = vst [vmem:[#allocation2 + $0x68] sm:$0xff] %v369
    %402 = vst [vmem:[#allocation2 + $0x70] sm:$0xff] %v370
    %403 = vst [vmem:[#allocation2 + $0x78] sm:$0xff] %v371
    %404 = vst [vmem:[#allocation2 + $0x80] sm:$0xff] %v372
    %405 = vst [vmem:[#allocation2 + $0x88] sm:$0xff] %v373
    %406 = vst [vmem:[#allocation2 + $0x90] sm:$0xff] %v374
    %407 = vst [vmem:[#allocation2 + $0x98] sm:$0xff] %v375
    %408 = vst [vmem:[#allocation2 + $0xa0] sm:$0xff] %v376
    %409 = vst [vmem:[#allocation2 + $0xa8] sm:$0xff] %v377
    %410 = vst [vmem:[#allocation2 + $0xb0] sm:$0xff] %v378
    %411 = vst [vmem:[#allocation2 + $0xb8] sm:$0xff] %v379
    %412 = vst [vmem:[#allocation2 + $0xc0] sm:$0xff] %v380
    %413 = vst [vmem:[#allocation2 + $0xc8] sm:$0xff] %v381
    %414 = vst [vmem:[#allocation2 + $0xd0] sm:$0xff] %v382
    %415 = vst [vmem:[#allocation2 + $0xd8] sm:$0xff] %v383
    %416 = vst [vmem:[#allocation2 + $0xe0] sm:$0xff] %v384
    %417 = vst [vmem:[#allocation2 + $0xe8] sm:$0xff] %v385
    %418 = vst [vmem:[#allocation2 + $0xf0] sm:$0xff] %v386
    %419 = vst [vmem:[#allocation2 + $0xf8] sm:$0xff] %v387
    // Predicated region
    $region18: #{_lambda_.3} parent=1 // pred_check
      %p420 = pneg %p15
    $region19: #{_lambda_.3} parent=1 // pred_check_branch
      %422 = sbr.rel (%p420) target = $region21
    $region20: #{_lambda_.3} parent=1 // pred_region
      %v423 = vld [vmem:[#allocation2] sm:$0xff]
      %v424 = vld [vmem:[#allocation2 + $0x8] sm:$0xff]
      %v425 = vld [vmem:[#allocation2 + $0x10] sm:$0xff]
      %v426 = vld [vmem:[#allocation2 + $0x18] sm:$0xff]
      %v427 = vld [vmem:[#allocation2 + $0x20] sm:$0xff]
      %v428 = vld [vmem:[#allocation2 + $0x28] sm:$0xff]
      %v429 = vld [vmem:[#allocation2 + $0x30] sm:$0xff]
      %v430 = vld [vmem:[#allocation2 + $0x38] sm:$0xff]
      %v431 = vld [vmem:[#allocation2 + $0x40] sm:$0xff]
      %v432 = vld [vmem:[#allocation2 + $0x48] sm:$0xff]
      %v433 = vld [vmem:[#allocation2 + $0x50] sm:$0xff]
      %v434 = vld [vmem:[#allocation2 + $0x58] sm:$0xff]
      %v435 = vld [vmem:[#allocation2 + $0x60] sm:$0xff]
      %v436 = vld [vmem:[#allocation2 + $0x68] sm:$0xff]
      %v437 = vld [vmem:[#allocation2 + $0x70] sm:$0xff]
      %v438 = vld [vmem:[#allocation2 + $0x78] sm:$0xff]
      %v439 = vld [vmem:[#allocation2 + $0x80] sm:$0xff]
      %v440 = vld [vmem:[#allocation2 + $0x88] sm:$0xff]
      %v441 = vld [vmem:[#allocation2 + $0x90] sm:$0xff]
      %v442 = vld [vmem:[#allocation2 + $0x98] sm:$0xff]
      %v443 = vld [vmem:[#allocation2 + $0xa0] sm:$0xff]
      %v444 = vld [vmem:[#allocation2 + $0xa8] sm:$0xff]
      %v445 = vld [vmem:[#allocation2 + $0xb0] sm:$0xff]
      %v446 = vld [vmem:[#allocation2 + $0xb8] sm:$0xff]
      %v447 = vld [vmem:[#allocation2 + $0xc0] sm:$0xff]
      %v448 = vld [vmem:[#allocation2 + $0xc8] sm:$0xff]
      %v449 = vld [vmem:[#allocation2 + $0xd0] sm:$0xff]
      %v450 = vld [vmem:[#allocation2 + $0xd8] sm:$0xff]
      %v451 = vld [vmem:[#allocation2 + $0xe0] sm:$0xff]
      %v452 = vld [vmem:[#allocation2 + $0xe8] sm:$0xff]
      %v453 = vld [vmem:[#allocation2 + $0xf0] sm:$0xff]
      %v454 = vld [vmem:[#allocation2 + $0xf8] sm:$0xff]
      %v455 = vld [vmem:[%s2] sm:$0x1]
      %v457 = vlaneseq
      %v458 = vshrl.u32 %v457, 7
      %v459 = vsub.s32 0, %v458
      %v460 = vrot.slane %v455, %v459
      %v462 = vadd.f32 %v423, %v460
      %v463 = vadd.f32 %v424, %v460
      %v464 = vadd.f32 %v425, %v460
      %v465 = vadd.f32 %v426, %v460
      %v466 = vadd.f32 %v427, %v460
      %v467 = vadd.f32 %v428, %v460
      %v468 = vadd.f32 %v429, %v460
      %v469 = vadd.f32 %v430, %v460
      %v470 = vadd.f32 %v431, %v460
      %v471 = vadd.f32 %v432, %v460
      %v472 = vadd.f32 %v433, %v460
      %v473 = vadd.f32 %v434, %v460
      %v474 = vadd.f32 %v435, %v460
      %v475 = vadd.f32 %v436, %v460
      %v476 = vadd.f32 %v437, %v460
      %v477 = vadd.f32 %v438, %v460
      %v478 = vadd.f32 %v439, %v460
      %v479 = vadd.f32 %v440, %v460
      %v480 = vadd.f32 %v441, %v460
      %v481 = vadd.f32 %v442, %v460
      %v482 = vadd.f32 %v443, %v460
      %v483 = vadd.f32 %v444, %v460
      %v484 = vadd.f32 %v445, %v460
      %v485 = vadd.f32 %v446, %v460
      %v486 = vadd.f32 %v447, %v460
      %v487 = vadd.f32 %v448, %v460
      %v488 = vadd.f32 %v449, %v460
      %v489 = vadd.f32 %v450, %v460
      %v490 = vadd.f32 %v451, %v460
      %v491 = vadd.f32 %v452, %v460
      %v492 = vadd.f32 %v453, %v460
      %v493 = vadd.f32 %v454, %v460
      %494 = vst [vmem:[#allocation3] sm:$0xff] %v462
      %495 = vst [vmem:[#allocation3 + $0x8] sm:$0xff] %v463
      %496 = vst [vmem:[#allocation3 + $0x10] sm:$0xff] %v464
      %497 = vst [vmem:[#allocation3 + $0x18] sm:$0xff] %v465
      %498 = vst [vmem:[#allocation3 + $0x20] sm:$0xff] %v466
      %499 = vst [vmem:[#allocation3 + $0x28] sm:$0xff] %v467
      %500 = vst [vmem:[#allocation3 + $0x30] sm:$0xff] %v468
      %501 = vst [vmem:[#allocation3 + $0x38] sm:$0xff] %v469
      %502 = vst [vmem:[#allocation3 + $0x40] sm:$0xff] %v470
      %503 = vst [vmem:[#allocation3 + $0x48] sm:$0xff] %v471
      %504 = vst [vmem:[#allocation3 + $0x50] sm:$0xff] %v472
      %505 = vst [vmem:[#allocation3 + $0x58] sm:$0xff] %v473
      %506 = vst [vmem:[#allocation3 + $0x60] sm:$0xff] %v474
      %507 = vst [vmem:[#allocation3 + $0x68] sm:$0xff] %v475
      %508 = vst [vmem:[#allocation3 + $0x70] sm:$0xff] %v476
      %509 = vst [vmem:[#allocation3 + $0x78] sm:$0xff] %v477
      %510 = vst [vmem:[#allocation3 + $0x80] sm:$0xff] %v478
      %511 = vst [vmem:[#allocation3 + $0x88] sm:$0xff] %v479
      %512 = vst [vmem:[#allocation3 + $0x90] sm:$0xff] %v480
      %513 = vst [vmem:[#allocation3 + $0x98] sm:$0xff] %v481
      %514 = vst [vmem:[#allocation3 + $0xa0] sm:$0xff] %v482
      %515 = vst [vmem:[#allocation3 + $0xa8] sm:$0xff] %v483
      %516 = vst [vmem:[#allocation3 + $0xb0] sm:$0xff] %v484
      %517 = vst [vmem:[#allocation3 + $0xb8] sm:$0xff] %v485
      %518 = vst [vmem:[#allocation3 + $0xc0] sm:$0xff] %v486
      %519 = vst [vmem:[#allocation3 + $0xc8] sm:$0xff] %v487
      %520 = vst [vmem:[#allocation3 + $0xd0] sm:$0xff] %v488
      %521 = vst [vmem:[#allocation3 + $0xd8] sm:$0xff] %v489
      %522 = vst [vmem:[#allocation3 + $0xe0] sm:$0xff] %v490
      %523 = vst [vmem:[#allocation3 + $0xe8] sm:$0xff] %v491
      %524 = vst [vmem:[#allocation3 + $0xf0] sm:$0xff] %v492
      %525 = vst [vmem:[#allocation3 + $0xf8] sm:$0xff] %v493
    $region21: #{_lambda_.3} parent=1 // pred_fallthru
      _
    // Predicated region
    $region22: #{_lambda_.3} parent=1 // pred_check
      _
    $region23: #{_lambda_.3} parent=1 // pred_check_branch
      %527 = sbr.rel (0) target = $region25
    $region24: #{_lambda_.3} parent=1 // pred_region
      %s529 = ssub.s32 4096, 4096
      %530 = vsyncadd [#allocation4], %s529
      %s531 = sshll.u32 [#allocation3], 4
      %s532 = int_to_ptr.vmem [resolvable:$true] %s531
      %537 = dma.vmem_to_hbm [thread:$0]  %s532, 4096, %s3, [#allocation4], 128, 128, 8
    $region25: #{_lambda_.3} parent=1 // pred_fallthru
      _
    // Predicated region
    $region26: #{_lambda_.3} parent=1 // pred_check
      _
    $region27: #{_lambda_.3} parent=1 // pred_check_branch
      %539 = sbr.rel (0) target = $region29
    $region28: #{_lambda_.3} parent=1 // pred_region
      %540 = dma.done [#allocation4], 4096
    $region29: #{_lambda_.3} parent=1 // pred_fallthru
      _
    %541 = vsyncpa [#allocation4], 1

// kernel: _lambda_.2
$region0: #{_lambda_.2}
  #allocation0 [shape = 'u32[]', space=smem, size = 0x4, offset = 0x4, fixed_abs, tag = 'smem constant byte address 0x4 - core index']
  #allocation1 [shape = 'u32[144,128]{1,0:T(1,128)}', space=vmem, size = 0x12000, scoped, tag = 'internal scratch']
  #allocation2 [shape = 'f32[8,128]{1,0:T(8,128)}', space=vmem, size = 0x1000, scoped, tag = 'scratch operand']
  #allocation3 [shape = 'f32[16,8,128]{2,1,0:T(8,128)}', space=vmem, size = 0x10000, scoped, tag = 'scratch operand']
  %s0 = inlined_call_operand.vmem [shape: f32[32,8,128], index: 0, kind: input, shape index: {}]
  %s1 = inlined_call_operand.vmem [shape: f32[1,8,128], index: 1, kind: input, shape index: {}]
  %s2 = inlined_call_operand.vmem [shape: f32[128,128], index: 2, kind: input, shape index: {}]
  %s3 = inlined_call_operand.vmem [shape: f32[128,128], index: 3, kind: input, shape index: {}]
  %s4 = inlined_call_operand.vmem [shape: f32[1,128], index: 4, kind: input, shape index: {}]
  %s5 = inlined_call_operand.vmem [shape: f32[32,8,128], index: 5, kind: output, shape index: {0}]
  %s6 = inlined_call_operand.hbm [shape: f32[1,8,128], index: 6, kind: output, shape index: {1}]
  %7 = xla_tuple %s5, %s6
  %s8 = sld [smem:[#allocation0]]
  $region69: #{_lambda_.2} parent=0
    _
  %s10 = ssub.s32 1, %s8
  %s11 = scalar_select 0, %s10, %s8
  $region1: #{_lambda_.2} parent=0
    #allocation4 [shape = 'u8[4096]{0}', space=vmem, size = 0x1000, scoped, tag = 'output window, operand 1, single buffered']
    #allocation5 [shape = 's32[2]{0}', space=sflag, size = 0x8, scoped, tag = 'scoped memory for _lambda_.2']
    %12 = vsyncpa [#allocation5], 0
    loop: start=0, step=1, limit=4
    $region2: #{_lambda_.2} parent=1 // loop_pre_header
      _
    $region3: #{_lambda_.2} parent=1 // loop_header
      %s14 = sphi 0, %s18
      %p15 = scmp.ge.s32.totalorder %s14, 4
      %s21 = sphi 0, %s33
      %s22 = sphi 0, %s29
      %s23 = sphi 0, %s21
      %s24 = sphi 0, %s22
      %s25 = sphi 0, %s23
      %s26 = sphi 0, %s24
      %s38 = sphi 0, %s40
      %s41 = sphi 0, %s38
      %s42 = sphi 0, %s41
      %s58 = sphi 0, %s42
      %s64 = sphi 0, %s66
      %s67 = sphi 0, %s64
      %s68 = sphi 0, %s67
      %s84 = sphi 0, %s68
      %s88 = sphi 0, %s88
      %s90 = sphi 0, %s88
      %s91 = sphi 0, %s90
      %s105 = sphi 0, %s91
      %s109 = sphi 0, %s109
      %s111 = sphi 0, %s109
      %s112 = sphi 0, %s111
      %s126 = sphi 0, %s112
      %s130 = sphi 0, %s130
      %s132 = sphi 0, %s130
      %s133 = sphi 0, %s132
      %s147 = sphi 0, %s133
      %s155 = sphi 0, %s157
      %s158 = sphi 0, %s155
      %s159 = sphi 0, %s158
      %s175 = sphi 0, %s159
      %s181 = sphi 0, %s183
      %s184 = sphi 0, %s181
      %s185 = sphi 0, %s184
      %s201 = sphi 0, %s185
    $region4: #{_lambda_.2} parent=1 // loop_header_branch
      %17 = sbr.rel (%p15) target = $region8
    $region5: #{_lambda_.2} parent=1 // loop_body
      %s19 = ssub.s32 %s14, 1
      %s20 = ssub.s32 %s14, 2
      %s27 = sadd.s32 1, %s22
      %p28 = scmp.ge.s32.totalorder %s27, 2
      %s29 = scalar_select %p28, 0, %s27
      %s30 = sadd.s32 1, %s21
      %s31 = scalar_select %p28, %s30, %s21
      %p32 = scmp.ge.s32.totalorder %s31, 1
      %s33 = scalar_select %p32, 0, %s31
      %s34 = ssub.s32 %s22, %s29
      %s35 = ssub.s32 %s21, %s33
      %s36 = sor.u32 %s34, %s35
      %p37 = scmp.eq.s32.totalorder %s36, 0
      %s39 = sadd.s32 %s38, 1
      %s40 = scalar_select %p37, %s38, %s39
      %p43 = pneg %p37
      %p44 = scmp.eq.s32.totalorder %s14, 1
      %p45 = por %p43, %p44
      %p46 = scmp.ne.s32.totalorder %s38, %s41
      %p47 = scmp.eq.s32.totalorder %s14, 0
      %p48 = por %p46, %p47
      %p49 = scmp.ne.s32.totalorder %s38, %s41
      %p50 = scmp.eq.s32.totalorder %s19, 1
      %p51 = por %p49, %p50
      %p52 = scmp.ne.s32.totalorder %s41, %s42
      %p53 = scmp.eq.s32.totalorder %s19, 0
      %p54 = por %p52, %p53
      %p55 = scmp.ne.s32.totalorder %s41, %s42
      %p56 = scmp.eq.s32.totalorder %s20, 1
      %p57 = por %p55, %p56
      %p59 = scmp.ne.s32.totalorder %s42, %s58
      %p60 = scmp.eq.s32.totalorder %s20, 0
      %p61 = por %p59, %p60
      %s62 = ssub.s32 %s21, %s33
      %p63 = scmp.eq.s32.totalorder %s62, 0
      %s65 = sadd.s32 %s64, 1
      %s66 = scalar_select %p63, %s64, %s65
      %p69 = pneg %p63
      %p70 = scmp.eq.s32.totalorder %s14, 1
      %p71 = por %p69, %p70
      %p72 = scmp.ne.s32.totalorder %s64, %s67
      %p73 = scmp.eq.s32.totalorder %s14, 0
      %p74 = por %p72, %p73
      %p75 = scmp.ne.s32.totalorder %s64, %s67
      %p76 = scmp.eq.s32.totalorder %s19, 1
      %p77 = por %p75, %p76
      %p78 = scmp.ne.s32.totalorder %s67, %s68
      %p79 = scmp.eq.s32.totalorder %s19, 0
      %p80 = por %p78, %p79
      %p81 = scmp.ne.s32.totalorder %s67, %s68
      %p82 = scmp.eq.s32.totalorder %s20, 1
      %p83 = por %p81, %p82
      %p85 = scmp.ne.s32.totalorder %s68, %s84
      %p86 = scmp.eq.s32.totalorder %s20, 0
      %p87 = por %p85, %p86
      %s89 = sadd.s32 %s88, 1
      %p92 = scmp.eq.s32.totalorder %s14, 1
      %p93 = scmp.ne.s32.totalorder %s88, %s90
      %p94 = scmp.eq.s32.totalorder %s14, 0
      %p95 = por %p93, %p94
      %p96 = scmp.ne.s32.totalorder %s88, %s90
      %p97 = scmp.eq.s32.totalorder %s19, 1
      %p98 = por %p96, %p97
      %p99 = scmp.ne.s32.totalorder %s90, %s91
      %p100 = scmp.eq.s32.totalorder %s19, 0
      %p101 = por %p99, %p100
      %p102 = scmp.ne.s32.totalorder %s90, %s91
      %p103 = scmp.eq.s32.totalorder %s20, 1
      %p104 = por %p102, %p103
      %p106 = scmp.ne.s32.totalorder %s91, %s105
      %p107 = scmp.eq.s32.totalorder %s20, 0
      %p108 = por %p106, %p107
      %s110 = sadd.s32 %s109, 1
      %p113 = scmp.eq.s32.totalorder %s14, 1
      %p114 = scmp.ne.s32.totalorder %s109, %s111
      %p115 = scmp.eq.s32.totalorder %s14, 0
      %p116 = por %p114, %p115
      %p117 = scmp.ne.s32.totalorder %s109, %s111
      %p118 = scmp.eq.s32.totalorder %s19, 1
      %p119 = por %p117, %p118
      %p120 = scmp.ne.s32.totalorder %s111, %s112
      %p121 = scmp.eq.s32.totalorder %s19, 0
      %p122 = por %p120, %p121
      %p123 = scmp.ne.s32.totalorder %s111, %s112
      %p124 = scmp.eq.s32.totalorder %s20, 1
      %p125 = por %p123, %p124
      %p127 = scmp.ne.s32.totalorder %s112, %s126
      %p128 = scmp.eq.s32.totalorder %s20, 0
      %p129 = por %p127, %p128
      %s131 = sadd.s32 %s130, 1
      %p134 = scmp.eq.s32.totalorder %s14, 1
      %p135 = scmp.ne.s32.totalorder %s130, %s132
      %p136 = scmp.eq.s32.totalorder %s14, 0
      %p137 = por %p135, %p136
      %p138 = scmp.ne.s32.totalorder %s130, %s132
      %p139 = scmp.eq.s32.totalorder %s19, 1
      %p140 = por %p138, %p139
      %p141 = scmp.ne.s32.totalorder %s132, %s133
      %p142 = scmp.eq.s32.totalorder %s19, 0
      %p143 = por %p141, %p142
      %p144 = scmp.ne.s32.totalorder %s132, %s133
      %p145 = scmp.eq.s32.totalorder %s20, 1
      %p146 = por %p144, %p145
      %p148 = scmp.ne.s32.totalorder %s133, %s147
      %p149 = scmp.eq.s32.totalorder %s20, 0
      %p150 = por %p148, %p149
      %s151 = ssub.s32 %s22, %s29
      %s152 = ssub.s32 %s21, %s33
      %s153 = sor.u32 %s151, %s152
      %p154 = scmp.eq.s32.totalorder %s153, 0
      %s156 = sadd.s32 %s155, 1
      %s157 = scalar_select %p154, %s155, %s156
      %p160 = pneg %p154
      %p161 = scmp.eq.s32.totalorder %s14, 1
      %p162 = por %p160, %p161
      %p163 = scmp.ne.s32.totalorder %s155, %s158
      %p164 = scmp.eq.s32.totalorder %s14, 0
      %p165 = por %p163, %p164
      %p166 = scmp.ne.s32.totalorder %s155, %s158
      %p167 = scmp.eq.s32.totalorder %s19, 1
      %p168 = por %p166, %p167
      %p169 = scmp.ne.s32.totalorder %s158, %s159
      %p170 = scmp.eq.s32.totalorder %s19, 0
      %p171 = por %p169, %p170
      %p172 = scmp.ne.s32.totalorder %s158, %s159
      %p173 = scmp.eq.s32.totalorder %s20, 1
      %p174 = por %p172, %p173
      %p176 = scmp.ne.s32.totalorder %s159, %s175
      %p177 = scmp.eq.s32.totalorder %s20, 0
      %p178 = por %p176, %p177
      %s179 = ssub.s32 %s21, %s33
      %p180 = scmp.eq.s32.totalorder %s179, 0
      %s182 = sadd.s32 %s181, 1
      %s183 = scalar_select %p180, %s181, %s182
      %p186 = pneg %p180
      %p187 = scmp.eq.s32.totalorder %s14, 1
      %p188 = por %p186, %p187
      %p189 = scmp.ne.s32.totalorder %s181, %s184
      %p190 = scmp.eq.s32.totalorder %s14, 0
      %p191 = por %p189, %p190
      %p192 = scmp.ne.s32.totalorder %s181, %s184
      %p193 = scmp.eq.s32.totalorder %s19, 1
      %p194 = por %p192, %p193
      %p195 = scmp.ne.s32.totalorder %s184, %s185
      %p196 = scmp.eq.s32.totalorder %s19, 0
      %p197 = por %p195, %p196
      %p198 = scmp.ne.s32.totalorder %s184, %s185
      %p199 = scmp.eq.s32.totalorder %s20, 1
      %p200 = por %p198, %p199
      %p202 = scmp.ne.s32.totalorder %s185, %s201
      %p203 = scmp.eq.s32.totalorder %s20, 0
      %p204 = por %p202, %p203
      %p205 = scmp.le.s32.totalorder 1, %s14
      %p206 = scmp.lt.s32.totalorder %s14, 3
      %p207 = pnand %p205, %p206
      %p208 = pneg %p207
      // Predicated region
      $region9: #{_lambda_.2} parent=5 // pred_check
        _
      $region10: #{_lambda_.2} parent=5 // pred_check_branch
        %210 = sbr.rel (%p207) target = $region12
      $region11: #{_lambda_.2} parent=5 // pred_region
        %s211 = ssub.s32 %s14, 1
        // Predicated region
        $region13: #{_lambda_.2} parent=11 // pred_check
          %p212 = pneg %p80
        $region14: #{_lambda_.2} parent=11 // pred_check_branch
          %214 = sbr.rel (%p212) target = $region16
        $region15: #{_lambda_.2} parent=11 // pred_region
          %p215 = scmp.lt.s32.totalorder %s23, 0
          %s216 = scalar_select %p215, %s23, 0
          %s217 = smul.addr %s216, 8
          %s218 = scalar_lea.vmem %s1, %s217
        $region16: #{_lambda_.2} parent=11 // pred_fallthru
          _
        // Predicated region
        $region17: #{_lambda_.2} parent=11 // pred_check
          %p219 = pneg %p101
        $region18: #{_lambda_.2} parent=11 // pred_check_branch
          %221 = sbr.rel (%p219) target = $region20
        $region19: #{_lambda_.2} parent=11 // pred_region
          _
        $region20: #{_lambda_.2} parent=11 // pred_fallthru
          _
        // Predicated region
        $region21: #{_lambda_.2} parent=11 // pred_check
          %p222 = pneg %p122
        $region22: #{_lambda_.2} parent=11 // pred_check_branch
          %224 = sbr.rel (%p222) target = $region24
        $region23: #{_lambda_.2} parent=11 // pred_region
          _
        $region24: #{_lambda_.2} parent=11 // pred_fallthru
          _
        // Predicated region
        $region25: #{_lambda_.2} parent=11 // pred_check
          %p225 = pneg %p143
        $region26: #{_lambda_.2} parent=11 // pred_check_branch
          %227 = sbr.rel (%p225) target = $region28
        $region27: #{_lambda_.2} parent=11 // pred_region
          _
        $region28: #{_lambda_.2} parent=11 // pred_fallthru
          _
      $region12: #{_lambda_.2} parent=5 // pred_fallthru
        _
      %p228 = scmp.lt.s32.totalorder %s14, 2
      // Predicated region
      $region29: #{_lambda_.2} parent=5 // pred_check
        %p229 = pneg %p228
      $region30: #{_lambda_.2} parent=5 // pred_check_branch
        %231 = sbr.rel (%p229) target = $region32
      $region31: #{_lambda_.2} parent=5 // pred_region
        // Predicated region
        $region33: #{_lambda_.2} parent=31 // pred_check
          %p232 = pneg %p48
        $region34: #{_lambda_.2} parent=31 // pred_check_branch
          %234 = sbr.rel (%p232) target = $region36
        $region35: #{_lambda_.2} parent=31 // pred_region
          %s235 = smul.u32 16, %s22
          %p236 = scmp.lt.s32.totalorder %s235, 31
          %s237 = scalar_select %p236, %s235, 31
          %p238 = scmp.lt.s32.totalorder %s21, 0
          %s239 = scalar_select %p238, %s21, 0
          %s240 = sadd.s32 %s239, %s237
          %s241 = smul.addr %s240, 8
          %s242 = scalar_lea.vmem %s0, %s241
          %s243 = smul.u32 16, %s22
        $region36: #{_lambda_.2} parent=31 // pred_fallthru
          _
      $region32: #{_lambda_.2} parent=5 // pred_fallthru
        _
      %p244 = scmp.le.s32.totalorder 1, %s14
      %p245 = scmp.lt.s32.totalorder %s14, 3
      %p246 = pnand %p244, %p245
      %p247 = pneg %p246
      // Predicated region
      $region37: #{_lambda_.2} parent=5 // pred_check
        _
      $region38: #{_lambda_.2} parent=5 // pred_check_branch
        %249 = sbr.rel (%p246) target = $region40
      $region39: #{_lambda_.2} parent=5 // pred_region
        %s250 = ssub.s32 %s14, 1
        %s251 = smul.u32 16, %s24
        %p252 = scmp.lt.s32.totalorder %s251, 31
        %s253 = scalar_select %p252, %s251, 31
        %p254 = scmp.lt.s32.totalorder %s23, 0
        %s255 = scalar_select %p254, %s23, 0
        %s256 = sadd.s32 %s255, %s253
        %s257 = smul.addr %s256, 8
        %s258 = scalar_lea.vmem %s0, %s257
        %p259 = pneg %p54
        %p260 = pneg %p51
        %p261 = scmp.lt.s32.totalorder %s23, 0
        %s262 = scalar_select %p261, %s23, 0
        %s263 = smul.addr %s262, 8
        %s264 = scalar_lea.vmem %s1, %s263
        %p265 = pneg %p80
        %p266 = pneg %p77
        %p267 = pneg %p101
        %p268 = pneg %p98
        %p269 = pneg %p122
        %p270 = pneg %p119
        %p271 = pneg %p143
        %p272 = pneg %p140
        %p273 = pneg %p171
        %p274 = pneg %p168
        %s275 = smul.u32 16, %s24
        %p276 = scmp.lt.s32.totalorder %s275, 31
        %s277 = scalar_select %p276, %s275, 31
        %p278 = scmp.lt.s32.totalorder %s23, 0
        %s279 = scalar_select %p278, %s23, 0
        %s280 = sadd.s32 %s279, %s277
        %s281 = smul.addr %s280, 8
        %s282 = scalar_lea.vmem %s5, %s281
        %p283 = pneg %p197
        %p284 = pneg %p194
        %s285 = smul.u32 16, %s24
        %p286 = scmp.lt.s32.totalorder %s285, 31
        %s287 = scalar_select %p286, %s285, 31
        %p288 = scmp.lt.s32.totalorder %s23, 0
        %s289 = scalar_select %p288, %s23, 0
        %s290 = sadd.s32 %s289, %s287
        %s291 = smul.addr %s290, 8
        %s292 = scalar_lea.vmem %s0, %s291
        %s293 = smul.u32 16, %s24
        %p294 = scmp.lt.s32.totalorder %s23, 0
        %s295 = scalar_select %p294, %s23, 0
        %s296 = smul.addr %s295, 8
        %s297 = scalar_lea.vmem %s1, %s296
        %s298 = smul.u32 16, %s24
        %p299 = scmp.lt.s32.totalorder %s298, 31
        %s300 = scalar_select %p299, %s298, 31
        %p301 = scmp.lt.s32.totalorder %s23, 0
        %s302 = scalar_select %p301, %s23, 0
        %s303 = sadd.s32 %s302, %s300
        %s304 = smul.addr %s303, 8
        %s305 = scalar_lea.vmem %s5, %s304
        %s306 = smul.u32 16, %s24
        %p307 = scmp.eq.s32.totalorder %s24, 0
        // Predicated region
        $region41: #{_lambda_.2} parent=39 // pred_check
          %p308 = pneg %p307
        $region42: #{_lambda_.2} parent=39 // pred_check_branch
          %310 = sbr.rel (%p308) target = $region44
        $region43: #{_lambda_.2} parent=39 // pred_region
          %v311 = vld [vmem:[%s297] sm:$0xff]
          %312 = vst [vmem:[#allocation2] sm:$0xff] %v311
        $region44: #{_lambda_.2} parent=39 // pred_fallthru
          _
        %v313 = vld [vmem:[%s292] sm:$0xff]
        %v314 = vld [vmem:[%s292 + $0x8] sm:$0xff]
        %v315 = vld [vmem:[%s292 + $0x10] sm:$0xff]
        %v316 = vld [vmem:[%s292 + $0x18] sm:$0xff]
        %v317 = vld [vmem:[%s292 + $0x20] sm:$0xff]
        %v318 = vld [vmem:[%s292 + $0x28] sm:$0xff]
        %v319 = vld [vmem:[%s292 + $0x30] sm:$0xff]
        %v320 = vld [vmem:[%s292 + $0x38] sm:$0xff]
        %v321 = vld [vmem:[%s292 + $0x40] sm:$0xff]
        %v322 = vld [vmem:[%s292 + $0x48] sm:$0xff]
        %v323 = vld [vmem:[%s292 + $0x50] sm:$0xff]
        %v324 = vld [vmem:[%s292 + $0x58] sm:$0xff]
        %v325 = vld [vmem:[%s292 + $0x60] sm:$0xff]
        %v326 = vld [vmem:[%s292 + $0x68] sm:$0xff]
        %v327 = vld [vmem:[%s292 + $0x70] sm:$0xff]
        %v328 = vld [vmem:[%s292 + $0x78] sm:$0xff]
        %v329 = vld [vmem:[%s2] sm:$0xff]
        %v330 = vld [vmem:[%s2 + $0x8] sm:$0xff]
        %v331 = vld [vmem:[%s2 + $0x10] sm:$0xff]
        %v332 = vld [vmem:[%s2 + $0x18] sm:$0xff]
        %v333 = vld [vmem:[%s2 + $0x20] sm:$0xff]
        %v334 = vld [vmem:[%s2 + $0x28] sm:$0xff]
        %v335 = vld [vmem:[%s2 + $0x30] sm:$0xff]
        %v336 = vld [vmem:[%s2 + $0x38] sm:$0xff]
        %v337 = vld [vmem:[%s2 + $0x40] sm:$0xff]
        %v338 = vld [vmem:[%s2 + $0x48] sm:$0xff]
        %v339 = vld [vmem:[%s2 + $0x50] sm:$0xff]
        %v340 = vld [vmem:[%s2 + $0x58] sm:$0xff]
        %v341 = vld [vmem:[%s2 + $0x60] sm:$0xff]
        %v342 = vld [vmem:[%s2 + $0x68] sm:$0xff]
        %v343 = vld [vmem:[%s2 + $0x70] sm:$0xff]
        %v344 = vld [vmem:[%s2 + $0x78] sm:$0xff]
        %v345 = vld [vmem:[%s4] sm:$0x1]
        %v347 = vlaneseq
        %v348 = vshrl.u32 %v347, 7
        %v349 = vsub.s32 0, %v348
        %v350 = vrot.slane %v345, %v349
        %352 = vmatprep.subr.mxu0 0.0
        %353 = vmatpush1.msra.mxu0 %v329
        %354 = vmatprep.subr.mxu0 0.0
        %355 = vmatpush1.msra.mxu0 %v330
        %356 = vmatprep.subr.mxu0 0.0
        %357 = vmatpush1.msra.mxu0 %v331
        %358 = vmatprep.subr.mxu0 0.0
        %359 = vmatpush1.msra.mxu0 %v332
        %360 = vmatprep.subr.mxu0 0.0
        %361 = vmatpush1.msra.mxu0 %v333
        %362 = vmatprep.subr.mxu0 0.0
        %363 = vmatpush1.msra.mxu0 %v334
        %364 = vmatprep.subr.mxu0 0.0
        %365 = vmatpush1.msra.mxu0 %v335
        %366 = vmatprep.subr.mxu0 0.0
        %367 = vmatpush1.msra.mxu0 %v336
        %368 = vmatprep.subr.mxu0 0.0
        %369 = vmatpush1.msra.mxu0 %v337
        %370 = vmatprep.subr.mxu0 0.0
        %371 = vmatpush1.msra.mxu0 %v338
        %372 = vmatprep.subr.mxu0 0.0
        %373 = vmatpush1.msra.mxu0 %v339
        %374 = vmatprep.subr.mxu0 0.0
        %375 = vmatpush1.msra.mxu0 %v340
        %376 = vmatprep.subr.mxu0 0.0
        %377 = vmatpush1.msra.mxu0 %v341
        %378 = vmatprep.subr.mxu0 0.0
        %379 = vmatpush1.msra.mxu0 %v342
        %380 = vmatprep.subr.mxu0 0.0
        %381 = vmatpush1.msra.mxu0 %v343
        %382 = vmatprep.subr.mxu0 0.0
        %383 = vmatpush1.msra.mxu0 %v344
        %384 = vmatprep.subr.mxu0 0.0
        %385 = vmatpush1.msra.mxu0 0.0
        %386 = vmatprep.subr.mxu0 0.0
        %387 = vmatpush1.msra.mxu0 0.0
        %388 = vmatprep.subr.mxu0 0.0
        %389 = vmatpush1.msra.mxu0 0.0
        %390 = vmatprep.subr.mxu0 0.0
        %391 = vmatpush1.msra.mxu0 0.0
        %392 = vmatprep.subr.mxu0 0.0
        %393 = vmatpush1.msra.mxu0 0.0
        %394 = vmatprep.subr.mxu0 0.0
        %395 = vmatpush1.msra.mxu0 0.0
        %396 = vmatprep.subr.mxu0 0.0
        %397 = vmatpush1.msra.mxu0 0.0
        %398 = vmatprep.subr.mxu0 0.0
        %399 = vmatpush1.msra.mxu0 0.0
        %400 = vmatprep.subr.mxu0 0.0
        %401 = vmatpush1.msra.mxu0 0.0
        %402 = vmatprep.subr.mxu0 0.0
        %403 = vmatpush1.msra.mxu0 0.0
        %404 = vmatprep.subr.mxu0 0.0
        %405 = vmatpush1.msra.mxu0 0.0
        %406 = vmatprep.subr.mxu0 0.0
        %407 = vmatpush1.msra.mxu0 0.0
        %408 = vmatprep.subr.mxu0 0.0
        %409 = vmatpush1.msra.mxu0 0.0
        %410 = vmatprep.subr.mxu0 0.0
        %411 = vmatpush1.msra.mxu0 0.0
        %412 = vmatprep.subr.mxu0 0.0
        %413 = vmatpush1.msra.mxu0 0.0
        %414 = vmatprep.subr.mxu0 0.0
        %415 = vmatpush1.msra.mxu0 0.0
        %416 = vmatprep.mubr.f32.mxu0 0.0
        %417 = vmatmul.mubr.f32.gmra.mrb[0].mxu0 %v313
        %v418 = vpop.f32.mrb[0].mxu0
        %v419 = vadd.f32 %v350, %v418
        %v420 = vpop.f32.mrb[0].mxu0
        %421 = vmatprep.mubr.f32.mxu0 0.0
        %422 = vmatmul.mubr.f32.gmra.mrb[0].mxu0 %v314
        %v423 = vpop.f32.mrb[0].mxu0
        %v424 = vadd.f32 %v350, %v423
        %v425 = vpop.f32.mrb[0].mxu0
        %426 = vmatprep.mubr.f32.mxu0 0.0
        %427 = vmatmul.mubr.f32.gmra.mrb[0].mxu0 %v315
        %v428 = vpop.f32.mrb[0].mxu0
        %v429 = vadd.f32 %v350, %v428
        %v430 = vpop.f32.mrb[0].mxu0
        %431 = vmatprep.mubr.f32.mxu0 0.0
        %432 = vmatmul.mubr.f32.gmra.mrb[0].mxu0 %v316
        %v433 = vpop.f32.mrb[0].mxu0
        %v434 = vadd.f32 %v350, %v433
        %v435 = vpop.f32.mrb[0].mxu0
        %436 = vmatprep.mubr.f32.mxu0 0.0
        %437 = vmatmul.mubr.f32.gmra.mrb[0].mxu0 %v317
        %v438 = vpop.f32.mrb[0].mxu0
        %v439 = vadd.f32 %v350, %v438
        %v440 = vpop.f32.mrb[0].mxu0
        %441 = vmatprep.mubr.f32.mxu0 0.0
        %442 = vmatmul.mubr.f32.gmra.mrb[0].mxu0 %v318
        %v443 = vpop.f32.mrb[0].mxu0
        %v444 = vadd.f32 %v350, %v443
        %v445 = vpop.f32.mrb[0].mxu0
        %446 = vmatprep.mubr.f32.mxu0 0.0
        %447 = vmatmul.mubr.f32.gmra.mrb[0].mxu0 %v319
        %v448 = vpop.f32.mrb[0].mxu0
        %v449 = vadd.f32 %v350, %v448
        %v450 = vpop.f32.mrb[0].mxu0
        %451 = vmatprep.mubr.f32.mxu0 0.0
        %452 = vmatmul.mubr.f32.gmra.mrb[0].mxu0 %v320
        %v453 = vpop.f32.mrb[0].mxu0
        %v454 = vadd.f32 %v350, %v453
        %v455 = vpop.f32.mrb[0].mxu0
        %456 = vmatprep.mubr.f32.mxu0 0.0
        %457 = vmatmul.mubr.f32.gmra.mrb[0].mxu0 %v321
        %v458 = vpop.f32.mrb[0].mxu0
        %v459 = vadd.f32 %v350, %v458
        %v460 = vpop.f32.mrb[0].mxu0
        %461 = vmatprep.mubr.f32.mxu0 0.0
        %462 = vmatmul.mubr.f32.gmra.mrb[0].mxu0 %v322
        %v463 = vpop.f32.mrb[0].mxu0
        %v464 = vadd.f32 %v350, %v463
        %v465 = vpop.f32.mrb[0].mxu0
        %466 = vmatprep.mubr.f32.mxu0 0.0
        %467 = vmatmul.mubr.f32.gmra.mrb[0].mxu0 %v323
        %v468 = vpop.f32.mrb[0].mxu0
        %v469 = vadd.f32 %v350, %v468
        %v470 = vpop.f32.mrb[0].mxu0
        %471 = vmatprep.mubr.f32.mxu0 0.0
        %472 = vmatmul.mubr.f32.gmra.mrb[0].mxu0 %v324
        %v473 = vpop.f32.mrb[0].mxu0
        %v474 = vadd.f32 %v350, %v473
        %v475 = vpop.f32.mrb[0].mxu0
        %476 = vmatprep.mubr.f32.mxu0 0.0
        %477 = vmatmul.mubr.f32.gmra.mrb[0].mxu0 %v325
        %v478 = vpop.f32.mrb[0].mxu0
        %v479 = vadd.f32 %v350, %v478
        %v480 = vpop.f32.mrb[0].mxu0
        %481 = vmatprep.mubr.f32.mxu0 0.0
        %482 = vmatmul.mubr.f32.gmra.mrb[0].mxu0 %v326
        %v483 = vpop.f32.mrb[0].mxu0
        %v484 = vadd.f32 %v350, %v483
        %v485 = vpop.f32.mrb[0].mxu0
        %486 = vmatprep.mubr.f32.mxu0 0.0
        %487 = vmatmul.mubr.f32.gmra.mrb[0].mxu0 %v327
        %v488 = vpop.f32.mrb[0].mxu0
        %v489 = vadd.f32 %v350, %v488
        %v490 = vpop.f32.mrb[0].mxu0
        %491 = vmatprep.mubr.f32.mxu0 0.0
        %492 = vmatmul.mubr.f32.gmra.mrb[0].mxu0 %v328
        %v493 = vpop.f32.mrb[0].mxu0
        %v494 = vadd.f32 %v350, %v493
        %v495 = vpop.f32.mrb[0].mxu0
        %496 = vdwg.mxu0
        %497 = vst [vmem:[#allocation3] sm:$0xff] %v419
        %498 = vst [vmem:[#allocation3 + $0x8] sm:$0xff] %v424
        %499 = vst [vmem:[#allocation3 + $0x10] sm:$0xff] %v429
        %500 = vst [vmem:[#allocation3 + $0x18] sm:$0xff] %v434
        %501 = vst [vmem:[#allocation3 + $0x20] sm:$0xff] %v439
        %502 = vst [vmem:[#allocation3 + $0x28] sm:$0xff] %v444
        %503 = vst [vmem:[#allocation3 + $0x30] sm:$0xff] %v449
        %504 = vst [vmem:[#allocation3 + $0x38] sm:$0xff] %v454
        %505 = vst [vmem:[#allocation3 + $0x40] sm:$0xff] %v459
        %506 = vst [vmem:[#allocation3 + $0x48] sm:$0xff] %v464
        %507 = vst [vmem:[#allocation3 + $0x50] sm:$0xff] %v469
        %508 = vst [vmem:[#allocation3 + $0x58] sm:$0xff] %v474
        %509 = vst [vmem:[#allocation3 + $0x60] sm:$0xff] %v479
        %510 = vst [vmem:[#allocation3 + $0x68] sm:$0xff] %v484
        %511 = vst [vmem:[#allocation3 + $0x70] sm:$0xff] %v489
        %512 = vst [vmem:[#allocation3 + $0x78] sm:$0xff] %v494
        %v513 = vld [vmem:[%s3] sm:$0xff]
        %v514 = vld [vmem:[%s3 + $0x8] sm:$0xff]
        %v515 = vld [vmem:[%s3 + $0x10] sm:$0xff]
        %v516 = vld [vmem:[%s3 + $0x18] sm:$0xff]
        %v517 = vld [vmem:[%s3 + $0x20] sm:$0xff]
        %v518 = vld [vmem:[%s3 + $0x28] sm:$0xff]
        %v519 = vld [vmem:[%s3 + $0x30] sm:$0xff]
        %v520 = vld [vmem:[%s3 + $0x38] sm:$0xff]
        %v521 = vld [vmem:[%s3 + $0x40] sm:$0xff]
        %v522 = vld [vmem:[%s3 + $0x48] sm:$0xff]
        %v523 = vld [vmem:[%s3 + $0x50] sm:$0xff]
        %v524 = vld [vmem:[%s3 + $0x58] sm:$0xff]
        %v525 = vld [vmem:[%s3 + $0x60] sm:$0xff]
        %v526 = vld [vmem:[%s3 + $0x68] sm:$0xff]
        %v527 = vld [vmem:[%s3 + $0x70] sm:$0xff]
        %v528 = vld [vmem:[%s3 + $0x78] sm:$0xff]
        %v529 = vld [vmem:[#allocation2] sm:$0xff]
        %v530 = vld [vmem:[#allocation3] sm:$0xff]
        %531 = vmatprep.subr.mxu0 0.0
        %532 = vmatpush1.msra.mxu0 %v513
        %533 = vmatprep.subr.mxu0 0.0
        %534 = vmatpush1.msra.mxu0 %v514
        %535 = vmatprep.subr.mxu0 0.0
        %536 = vmatpush1.msra.mxu0 %v515
        %537 = vmatprep.subr.mxu0 0.0
        %538 = vmatpush1.msra.mxu0 %v516
        %539 = vmatprep.subr.mxu0 0.0
        %540 = vmatpush1.msra.mxu0 %v517
        %541 = vmatprep.subr.mxu0 0.0
        %542 = vmatpush1.msra.mxu0 %v518
        %543 = vmatprep.subr.mxu0 0.0
        %544 = vmatpush1.msra.mxu0 %v519
        %545 = vmatprep.subr.mxu0 0.0
        %546 = vmatpush1.msra.mxu0 %v520
        %547 = vmatprep.subr.mxu0 0.0
        %548 = vmatpush1.msra.mxu0 %v521
        %549 = vmatprep.subr.mxu0 0.0
        %550 = vmatpush1.msra.mxu0 %v522
        %551 = vmatprep.subr.mxu0 0.0
        %552 = vmatpush1.msra.mxu0 %v523
        %553 = vmatprep.subr.mxu0 0.0
        %554 = vmatpush1.msra.mxu0 %v524
        %555 = vmatprep.subr.mxu0 0.0
        %556 = vmatpush1.msra.mxu0 %v525
        %557 = vmatprep.subr.mxu0 0.0
        %558 = vmatpush1.msra.mxu0 %v526
        %559 = vmatprep.subr.mxu0 0.0
        %560 = vmatpush1.msra.mxu0 %v527
        %561 = vmatprep.subr.mxu0 0.0
        %562 = vmatpush1.msra.mxu0 %v528
        %563 = vmatprep.subr.mxu0 0.0
        %564 = vmatpush1.msra.mxu0 0.0
        %565 = vmatprep.subr.mxu0 0.0
        %566 = vmatpush1.msra.mxu0 0.0
        %567 = vmatprep.subr.mxu0 0.0
        %568 = vmatpush1.msra.mxu0 0.0
        %569 = vmatprep.subr.mxu0 0.0
        %570 = vmatpush1.msra.mxu0 0.0
        %571 = vmatprep.subr.mxu0 0.0
        %572 = vmatpush1.msra.mxu0 0.0
        %573 = vmatprep.subr.mxu0 0.0
        %574 = vmatpush1.msra.mxu0 0.0
        %575 = vmatprep.subr.mxu0 0.0
        %576 = vmatpush1.msra.mxu0 0.0
        %577 = vmatprep.subr.mxu0 0.0
        %578 = vmatpush1.msra.mxu0 0.0
        %579 = vmatprep.subr.mxu0 0.0
        %580 = vmatpush1.msra.mxu0 0.0
        %581 = vmatprep.subr.mxu0 0.0
        %582 = vmatpush1.msra.mxu0 0.0
        %583 = vmatprep.subr.mxu0 0.0
        %584 = vmatpush1.msra.mxu0 0.0
        %585 = vmatprep.subr.mxu0 0.0
        %586 = vmatpush1.msra.mxu0 0.0
        %587 = vmatprep.subr.mxu0 0.0
        %588 = vmatpush1.msra.mxu0 0.0
        %589 = vmatprep.subr.mxu0 0.0
        %590 = vmatpush1.msra.mxu0 0.0
        %591 = vmatprep.subr.mxu0 0.0
        %592 = vmatpush1.msra.mxu0 0.0
        %593 = vmatprep.subr.mxu0 0.0
        %594 = vmatpush1.msra.mxu0 0.0
        %595 = vmatprep.mubr.f32.mxu0 0.0
        %596 = vmatmul.mubr.f32.gmra.mrb[0].mxu0 %v529
        %v597 = vpop.f32.mrb[0].mxu0
        %v598 = vadd.f32 0.0, %v597
        %v599 = vpop.f32.mrb[0].mxu0
        %600 = vdwg.mxu0
        %v601 = vadd.f32 %v530, %v598
        %v602 = vtanh.pop %v601
        %603 = vst [vmem:[%s305] sm:$0xff] %v602
        %s604 = scalar_lea.vmem [#allocation3], 8
        %v605 = vld [vmem:[%s604] sm:$0xff]
        %606 = vmatprep.subr.mxu0 0.0
        %607 = vmatpush1.msra.mxu0 %v513
        %608 = vmatprep.subr.mxu0 0.0
        %609 = vmatpush1.msra.mxu0 %v514
        %610 = vmatprep.subr.mxu0 0.0
        %611 = vmatpush1.msra.mxu0 %v515
        %612 = vmatprep.subr.mxu0 0.0
        %613 = vmatpush1.msra.mxu0 %v516
        %614 = vmatprep.subr.mxu0 0.0
        %615 = vmatpush1.msra.mxu0 %v517
        %616 = vmatprep.subr.mxu0 0.0
        %617 = vmatpush1.msra.mxu0 %v518
        %618 = vmatprep.subr.mxu0 0.0
        %619 = vmatpush1.msra.mxu0 %v519
        %620 = vmatprep.subr.mxu0 0.0
        %621 = vmatpush1.msra.mxu0 %v520
        %622 = vmatprep.subr.mxu0 0.0
        %623 = vmatpush1.msra.mxu0 %v521
        %624 = vmatprep.subr.mxu0 0.0
        %625 = vmatpush1.msra.mxu0 %v522
        %626 = vmatprep.subr.mxu0 0.0
        %627 = vmatpush1.msra.mxu0 %v523
        %628 = vmatprep.subr.mxu0 0.0
        %629 = vmatpush1.msra.mxu0 %v524
        %630 = vmatprep.subr.mxu0 0.0
        %631 = vmatpush1.msra.mxu0 %v525
        %632 = vmatprep.subr.mxu0 0.0
        %633 = vmatpush1.msra.mxu0 %v526
        %634 = vmatprep.subr.mxu0 0.0
        %635 = vmatpush1.msra.mxu0 %v527
        %636 = vmatprep.subr.mxu0 0.0
        %637 = vmatpush1.msra.mxu0 %v528
        %638 = vmatprep.subr.mxu0 0.0
        %639 = vmatpush1.msra.mxu0 0.0
        %640 = vmatprep.subr.mxu0 0.0
        %641 = vmatpush1.msra.mxu0 0.0
        %642 = vmatprep.subr.mxu0 0.0
        %643 = vmatpush1.msra.mxu0 0.0
        %644 = vmatprep.subr.mxu0 0.0
        %645 = vmatpush1.msra.mxu0 0.0
        %646 = vmatprep.subr.mxu0 0.0
        %647 = vmatpush1.msra.mxu0 0.0
        %648 = vmatprep.subr.mxu0 0.0
        %649 = vmatpush1.msra.mxu0 0.0
        %650 = vmatprep.subr.mxu0 0.0
        %651 = vmatpush1.msra.mxu0 0.0
        %652 = vmatprep.subr.mxu0 0.0
        %653 = vmatpush1.msra.mxu0 0.0
        %654 = vmatprep.subr.mxu0 0.0
        %655 = vmatpush1.msra.mxu0 0.0
        %656 = vmatprep.subr.mxu0 0.0
        %657 = vmatpush1.msra.mxu0 0.0
        %658 = vmatprep.subr.mxu0 0.0
        %659 = vmatpush1.msra.mxu0 0.0
        %660 = vmatprep.subr.mxu0 0.0
        %661 = vmatpush1.msra.mxu0 0.0
        %662 = vmatprep.subr.mxu0 0.0
        %663 = vmatpush1.msra.mxu0 0.0
        %664 = vmatprep.subr.mxu0 0.0
        %665 = vmatpush1.msra.mxu0 0.0
        %666 = vmatprep.subr.mxu0 0.0
        %667 = vmatpush1.msra.mxu0 0.0
        %668 = vmatprep.subr.mxu0 0.0
        %669 = vmatpush1.msra.mxu0 0.0
        %670 = vmatprep.mubr.f32.mxu0 0.0
        %671 = vmatmul.mubr.f32.gmra.mrb[0].mxu0 %v602
        %v672 = vpop.f32.mrb[0].mxu0
        %v673 = vadd.f32 0.0, %v672
        %v674 = vpop.f32.mrb[0].mxu0
        %675 = vdwg.mxu0
        %v676 = vadd.f32 %v605, %v673
        %v677 = vtanh.pop %v676
        %s678 = scalar_lea.vmem %s305, 8
        %679 = vst [vmem:[%s678] sm:$0xff] %v677
        %s680 = scalar_lea.vmem [#allocation3], 16
        %v681 = vld [vmem:[%s680] sm:$0xff]
        %682 = vmatprep.subr.mxu0 0.0
        %683 = vmatpush1.msra.mxu0 %v513
        %684 = vmatprep.subr.mxu0 0.0
        %685 = vmatpush1.msra.mxu0 %v514
        %686 = vmatprep.subr.mxu0 0.0
        %687 = vmatpush1.msra.mxu0 %v515
        %688 = vmatprep.subr.mxu0 0.0
        %689 = vmatpush1.msra.mxu0 %v516
        %690 = vmatprep.subr.mxu0 0.0
        %691 = vmatpush1.msra.mxu0 %v517
        %692 = vmatprep.subr.mxu0 0.0
        %693 = vmatpush1.msra.mxu0 %v518
        %694 = vmatprep.subr.mxu0 0.0
        %695 = vmatpush1.msra.mxu0 %v519
        %696 = vmatprep.subr.mxu0 0.0
        %697 = vmatpush1.msra.mxu0 %v520
        %698 = vmatprep.subr.mxu0 0.0
        %699 = vmatpush1.msra.mxu0 %v521
        %700 = vmatprep.subr.mxu0 0.0
        %701 = vmatpush1.msra.mxu0 %v522
        %702 = vmatprep.subr.mxu0 0.0
        %703 = vmatpush1.msra.mxu0 %v523
        %704 = vmatprep.subr.mxu0 0.0
        %705 = vmatpush1.msra.mxu0 %v524
        %706 = vmatprep.subr.mxu0 0.0
        %707 = vmatpush1.msra.mxu0 %v525
        %708 = vmatprep.subr.mxu0 0.0
        %709 = vmatpush1.msra.mxu0 %v526
        %710 = vmatprep.subr.mxu0 0.0
        %711 = vmatpush1.msra.mxu0 %v527
        %712 = vmatprep.subr.mxu0 0.0
        %713 = vmatpush1.msra.mxu0 %v528
        %714 = vmatprep.subr.mxu0 0.0
        %715 = vmatpush1.msra.mxu0 0.0
        %716 = vmatprep.subr.mxu0 0.0
        %717 = vmatpush1.msra.mxu0 0.0
        %718 = vmatprep.subr.mxu0 0.0
        %719 = vmatpush1.msra.mxu0 0.0
        %720 = vmatprep.subr.mxu0 0.0
        %721 = vmatpush1.msra.mxu0 0.0
        %722 = vmatprep.subr.mxu0 0.0
        %723 = vmatpush1.msra.mxu0 0.0
        %724 = vmatprep.subr.mxu0 0.0
        %725 = vmatpush1.msra.mxu0 0.0
        %726 = vmatprep.subr.mxu0 0.0
        %727 = vmatpush1.msra.mxu0 0.0
        %728 = vmatprep.subr.mxu0 0.0
        %729 = vmatpush1.msra.mxu0 0.0
        %730 = vmatprep.subr.mxu0 0.0
        %731 = vmatpush1.msra.mxu0 0.0
        %732 = vmatprep.subr.mxu0 0.0
        %733 = vmatpush1.msra.mxu0 0.0
        %734 = vmatprep.subr.mxu0 0.0
        %735 = vmatpush1.msra.mxu0 0.0
        %736 = vmatprep.subr.mxu0 0.0
        %737 = vmatpush1.msra.mxu0 0.0
        %738 = vmatprep.subr.mxu0 0.0
        %739 = vmatpush1.msra.mxu0 0.0
        %740 = vmatprep.subr.mxu0 0.0
        %741 = vmatpush1.msra.mxu0 0.0
        %742 = vmatprep.subr.mxu0 0.0
        %743 = vmatpush1.msra.mxu0 0.0
        %744 = vmatprep.subr.mxu0 0.0
        %745 = vmatpush1.msra.mxu0 0.0
        %746 = vmatprep.mubr.f32.mxu0 0.0
        %747 = vmatmul.mubr.f32.gmra.mrb[0].mxu0 %v677
        %v748 = vpop.f32.mrb[0].mxu0
        %v749 = vadd.f32 0.0, %v748
        %v750 = vpop.f32.mrb[0].mxu0
        %751 = vdwg.mxu0
        %v752 = vadd.f32 %v681, %v749
        %v753 = vtanh.pop %v752
        %s754 = scalar_lea.vmem %s305, 16
        %755 = vst [vmem:[%s754] sm:$0xff] %v753
        %s756 = scalar_lea.vmem [#allocation3], 24
        %v757 = vld [vmem:[%s756] sm:$0xff]
        %758 = vmatprep.subr.mxu0 0.0
        %759 = vmatpush1.msra.mxu0 %v513
        %760 = vmatprep.subr.mxu0 0.0
        %761 = vmatpush1.msra.mxu0 %v514
        %762 = vmatprep.subr.mxu0 0.0
        %763 = vmatpush1.msra.mxu0 %v515
        %764 = vmatprep.subr.mxu0 0.0
        %765 = vmatpush1.msra.mxu0 %v516
        %766 = vmatprep.subr.mxu0 0.0
        %767 = vmatpush1.msra.mxu0 %v517
        %768 = vmatprep.subr.mxu0 0.0
        %769 = vmatpush1.msra.mxu0 %v518
        %770 = vmatprep.subr.mxu0 0.0
        %771 = vmatpush1.msra.mxu0 %v519
        %772 = vmatprep.subr.mxu0 0.0
        %773 = vmatpush1.msra.mxu0 %v520
        %774 = vmatprep.subr.mxu0 0.0
        %775 = vmatpush1.msra.mxu0 %v521
        %776 = vmatprep.subr.mxu0 0.0
        %777 = vmatpush1.msra.mxu0 %v522
        %778 = vmatprep.subr.mxu0 0.0
        %779 = vmatpush1.msra.mxu0 %v523
        %780 = vmatprep.subr.mxu0 0.0
        %781 = vmatpush1.msra.mxu0 %v524
        %782 = vmatprep.subr.mxu0 0.0
        %783 = vmatpush1.msra.mxu0 %v525
        %784 = vmatprep.subr.mxu0 0.0
        %785 = vmatpush1.msra.mxu0 %v526
        %786 = vmatprep.subr.mxu0 0.0
        %787 = vmatpush1.msra.mxu0 %v527
        %788 = vmatprep.subr.mxu0 0.0
        %789 = vmatpush1.msra.mxu0 %v528
        %790 = vmatprep.subr.mxu0 0.0
        %791 = vmatpush1.msra.mxu0 0.0
        %792 = vmatprep.subr.mxu0 0.0
        %793 = vmatpush1.msra.mxu0 0.0
        %794 = vmatprep.subr.mxu0 0.0
        %795 = vmatpush1.msra.mxu0 0.0
        %796 = vmatprep.subr.mxu0 0.0
        %797 = vmatpush1.msra.mxu0 0.0
        %798 = vmatprep.subr.mxu0 0.0
        %799 = vmatpush1.msra.mxu0 0.0
        %800 = vmatprep.subr.mxu0 0.0
        %801 = vmatpush1.msra.mxu0 0.0
        %802 = vmatprep.subr.mxu0 0.0
        %803 = vmatpush1.msra.mxu0 0.0
        %804 = vmatprep.subr.mxu0 0.0
        %805 = vmatpush1.msra.mxu0 0.0
        %806 = vmatprep.subr.mxu0 0.0
        %807 = vmatpush1.msra.mxu0 0.0
        %808 = vmatprep.subr.mxu0 0.0
        %809 = vmatpush1.msra.mxu0 0.0
        %810 = vmatprep.subr.mxu0 0.0
        %811 = vmatpush1.msra.mxu0 0.0
        %812 = vmatprep.subr.mxu0 0.0
        %813 = vmatpush1.msra.mxu0 0.0
        %814 = vmatprep.subr.mxu0 0.0
        %815 = vmatpush1.msra.mxu0 0.0
        %816 = vmatprep.subr.mxu0 0.0
        %817 = vmatpush1.msra.mxu0 0.0
        %818 = vmatprep.subr.mxu0 0.0
        %819 = vmatpush1.msra.mxu0 0.0
        %820 = vmatprep.subr.mxu0 0.0
        %821 = vmatpush1.msra.mxu0 0.0
        %822 = vmatprep.mubr.f32.mxu0 0.0
        %823 = vmatmul.mubr.f32.gmra.mrb[0].mxu0 %v753
        %v824 = vpop.f32.mrb[0].mxu0
        %v825 = vadd.f32 0.0, %v824
        %v826 = vpop.f32.mrb[0].mxu0
        %827 = vdwg.mxu0
        %v828 = vadd.f32 %v757, %v825
        %v829 = vtanh.pop %v828
        %s830 = scalar_lea.vmem %s305, 24
        %831 = vst [vmem:[%s830] sm:$0xff] %v829
        %s832 = scalar_lea.vmem [#allocation3], 32
        %v833 = vld [vmem:[%s832] sm:$0xff]
        %834 = vmatprep.subr.mxu0 0.0
        %835 = vmatpush1.msra.mxu0 %v513
        %836 = vmatprep.subr.mxu0 0.0
        %837 = vmatpush1.msra.mxu0 %v514
        %838 = vmatprep.subr.mxu0 0.0
        %839 = vmatpush1.msra.mxu0 %v515
        %840 = vmatprep.subr.mxu0 0.0
        %841 = vmatpush1.msra.mxu0 %v516
        %842 = vmatprep.subr.mxu0 0.0
        %843 = vmatpush1.msra.mxu0 %v517
        %844 = vmatprep.subr.mxu0 0.0
        %845 = vmatpush1.msra.mxu0 %v518
        %846 = vmatprep.subr.mxu0 0.0
        %847 = vmatpush1.msra.mxu0 %v519
        %848 = vmatprep.subr.mxu0 0.0
        %849 = vmatpush1.msra.mxu0 %v520
        %850 = vmatprep.subr.mxu0 0.0
        %851 = vmatpush1.msra.mxu0 %v521
        %852 = vmatprep.subr.mxu0 0.0
        %853 = vmatpush1.msra.mxu0 %v522
        %854 = vmatprep.subr.mxu0 0.0
        %855 = vmatpush1.msra.mxu0 %v523
        %856 = vmatprep.subr.mxu0 0.0
        %857 = vmatpush1.msra.mxu0 %v524
        %858 = vmatprep.subr.mxu0 0.0
        %859 = vmatpush1.msra.mxu0 %v525
        %860 = vmatprep.subr.mxu0 0.0
        %861 = vmatpush1.msra.mxu0 %v526
        %862 = vmatprep.subr.mxu0 0.0
        %863 = vmatpush1.msra.mxu0 %v527
        %864 = vmatprep.subr.mxu0 0.0
        %865 = vmatpush1.msra.mxu0 %v528
        %866 = vmatprep.subr.mxu0 0.0
        %867 = vmatpush1.msra.mxu0 0.0
        %868 = vmatprep.subr.mxu0 0.0
        %869 = vmatpush1.msra.mxu0 0.0
        %870 = vmatprep.subr.mxu0 0.0
        %871 = vmatpush1.msra.mxu0 0.0
        %872 = vmatprep.subr.mxu0 0.0
        %873 = vmatpush1.msra.mxu0 0.0
        %874 = vmatprep.subr.mxu0 0.0
        %875 = vmatpush1.msra.mxu0 0.0
        %876 = vmatprep.subr.mxu0 0.0
        %877 = vmatpush1.msra.mxu0 0.0
        %878 = vmatprep.subr.mxu0 0.0
        %879 = vmatpush1.msra.mxu0 0.0
        %880 = vmatprep.subr.mxu0 0.0
        %881 = vmatpush1.msra.mxu0 0.0
        %882 = vmatprep.subr.mxu0 0.0
        %883 = vmatpush1.msra.mxu0 0.0
        %884 = vmatprep.subr.mxu0 0.0
        %885 = vmatpush1.msra.mxu0 0.0
        %886 = vmatprep.subr.mxu0 0.0
        %887 = vmatpush1.msra.mxu0 0.0
        %888 = vmatprep.subr.mxu0 0.0
        %889 = vmatpush1.msra.mxu0 0.0
        %890 = vmatprep.subr.mxu0 0.0
        %891 = vmatpush1.msra.mxu0 0.0
        %892 = vmatprep.subr.mxu0 0.0
        %893 = vmatpush1.msra.mxu0 0.0
        %894 = vmatprep.subr.mxu0 0.0
        %895 = vmatpush1.msra.mxu0 0.0
        %896 = vmatprep.subr.mxu0 0.0
        %897 = vmatpush1.msra.mxu0 0.0
        %898 = vmatprep.mubr.f32.mxu0 0.0
        %899 = vmatmul.mubr.f32.gmra.mrb[0].mxu0 %v829
        %v900 = vpop.f32.mrb[0].mxu0
        %v901 = vadd.f32 0.0, %v900
        %v902 = vpop.f32.mrb[0].mxu0
        %903 = vdwg.mxu0
        %v904 = vadd.f32 %v833, %v901
        %v905 = vtanh.pop %v904
        %s906 = scalar_lea.vmem %s305, 32
        %907 = vst [vmem:[%s906] sm:$0xff] %v905
        %s908 = scalar_lea.vmem [#allocation3], 40
        %v909 = vld [vmem:[%s908] sm:$0xff]
        %910 = vmatprep.subr.mxu0 0.0
        %911 = vmatpush1.msra.mxu0 %v513
        %912 = vmatprep.subr.mxu0 0.0
        %913 = vmatpush1.msra.mxu0 %v514
        %914 = vmatprep.subr.mxu0 0.0
        %915 = vmatpush1.msra.mxu0 %v515
        %916 = vmatprep.subr.mxu0 0.0
        %917 = vmatpush1.msra.mxu0 %v516
        %918 = vmatprep.subr.mxu0 0.0
        %919 = vmatpush1.msra.mxu0 %v517
        %920 = vmatprep.subr.mxu0 0.0
        %921 = vmatpush1.msra.mxu0 %v518
        %922 = vmatprep.subr.mxu0 0.0
        %923 = vmatpush1.msra.mxu0 %v519
        %924 = vmatprep.subr.mxu0 0.0
        %925 = vmatpush1.msra.mxu0 %v520
        %926 = vmatprep.subr.mxu0 0.0
        %927 = vmatpush1.msra.mxu0 %v521
        %928 = vmatprep.subr.mxu0 0.0
        %929 = vmatpush1.msra.mxu0 %v522
        %930 = vmatprep.subr.mxu0 0.0
        %931 = vmatpush1.msra.mxu0 %v523
        %932 = vmatprep.subr.mxu0 0.0
        %933 = vmatpush1.msra.mxu0 %v524
        %934 = vmatprep.subr.mxu0 0.0
        %935 = vmatpush1.msra.mxu0 %v525
        %936 = vmatprep.subr.mxu0 0.0
        %937 = vmatpush1.msra.mxu0 %v526
        %938 = vmatprep.subr.mxu0 0.0
        %939 = vmatpush1.msra.mxu0 %v527
        %940 = vmatprep.subr.mxu0 0.0
        %941 = vmatpush1.msra.mxu0 %v528
        %942 = vmatprep.subr.mxu0 0.0
        %943 = vmatpush1.msra.mxu0 0.0
        %944 = vmatprep.subr.mxu0 0.0
        %945 = vmatpush1.msra.mxu0 0.0
        %946 = vmatprep.subr.mxu0 0.0
        %947 = vmatpush1.msra.mxu0 0.0
        %948 = vmatprep.subr.mxu0 0.0
        %949 = vmatpush1.msra.mxu0 0.0
        %950 = vmatprep.subr.mxu0 0.0
        %951 = vmatpush1.msra.mxu0 0.0
        %952 = vmatprep.subr.mxu0 0.0
        %953 = vmatpush1.msra.mxu0 0.0
        %954 = vmatprep.subr.mxu0 0.0
        %955 = vmatpush1.msra.mxu0 0.0
        %956 = vmatprep.subr.mxu0 0.0
        %957 = vmatpush1.msra.mxu0 0.0
        %958 = vmatprep.subr.mxu0 0.0
        %959 = vmatpush1.msra.mxu0 0.0
        %960 = vmatprep.subr.mxu0 0.0
        %961 = vmatpush1.msra.mxu0 0.0
        %962 = vmatprep.subr.mxu0 0.0
        %963 = vmatpush1.msra.mxu0 0.0
        %964 = vmatprep.subr.mxu0 0.0
        %965 = vmatpush1.msra.mxu0 0.0
        %966 = vmatprep.subr.mxu0 0.0
        %967 = vmatpush1.msra.mxu0 0.0
        %968 = vmatprep.subr.mxu0 0.0
        %969 = vmatpush1.msra.mxu0 0.0
        %970 = vmatprep.subr.mxu0 0.0
        %971 = vmatpush1.msra.mxu0 0.0
        %972 = vmatprep.subr.mxu0 0.0
        %973 = vmatpush1.msra.mxu0 0.0
        %974 = vmatprep.mubr.f32.mxu0 0.0
        %975 = vmatmul.mubr.f32.gmra.mrb[0].mxu0 %v905
        %v976 = vpop.f32.mrb[0].mxu0
        %v977 = vadd.f32 0.0, %v976
        %v978 = vpop.f32.mrb[0].mxu0
        %979 = vdwg.mxu0
        %v980 = vadd.f32 %v909, %v977
        %v981 = vtanh.pop %v980
        %s982 = scalar_lea.vmem %s305, 40
        %983 = vst [vmem:[%s982] sm:$0xff] %v981
        %s984 = scalar_lea.vmem [#allocation3], 48
        %v985 = vld [vmem:[%s984] sm:$0xff]
        %986 = vmatprep.subr.mxu0 0.0
        %987 = vmatpush1.msra.mxu0 %v513
        %988 = vmatprep.subr.mxu0 0.0
        %989 = vmatpush1.msra.mxu0 %v514
        %990 = vmatprep.subr.mxu0 0.0
        %991 = vmatpush1.msra.mxu0 %v515
        %992 = vmatprep.subr.mxu0 0.0
        %993 = vmatpush1.msra.mxu0 %v516
        %994 = vmatprep.subr.mxu0 0.0
        %995 = vmatpush1.msra.mxu0 %v517
        %996 = vmatprep.subr.mxu0 0.0
        %997 = vmatpush1.msra.mxu0 %v518
        %998 = vmatprep.subr.mxu0 0.0
        %999 = vmatpush1.msra.mxu0 %v519
        %1000 = vmatprep.subr.mxu0 0.0
        %1001 = vmatpush1.msra.mxu0 %v520
        %1002 = vmatprep.subr.mxu0 0.0
        %1003 = vmatpush1.msra.mxu0 %v521
        %1004 = vmatprep.subr.mxu0 0.0
        %1005 = vmatpush1.msra.mxu0 %v522
        %1006 = vmatprep.subr.mxu0 0.0
        %1007 = vmatpush1.msra.mxu0 %v523
        %1008 = vmatprep.subr.mxu0 0.0
        %1009 = vmatpush1.msra.mxu0 %v524
        %1010 = vmatprep.subr.mxu0 0.0
        %1011 = vmatpush1.msra.mxu0 %v525
        %1012 = vmatprep.subr.mxu0 0.0
        %1013 = vmatpush1.msra.mxu0 %v526
        %1014 = vmatprep.subr.mxu0 0.0
        %1015 = vmatpush1.msra.mxu0 %v527
        %1016 = vmatprep.subr.mxu0 0.0
        %1017 = vmatpush1.msra.mxu0 %v528
        %1018 = vmatprep.subr.mxu0 0.0
        %1019 = vmatpush1.msra.mxu0 0.0
        %1020 = vmatprep.subr.mxu0 0.0
        %1021 = vmatpush1.msra.mxu0 0.0
        %1022 = vmatprep.subr.mxu0 0.0
        %1023 = vmatpush1.msra.mxu0 0.0
        %1024 = vmatprep.subr.mxu0 0.0
        %1025 = vmatpush1.msra.mxu0 0.0
        %1026 = vmatprep.subr.mxu0 0.0
        %1027 = vmatpush1.msra.mxu0 0.0
        %1028 = vmatprep.subr.mxu0 0.0
        %1029 = vmatpush1.msra.mxu0 0.0
        %1030 = vmatprep.subr.mxu0 0.0
        %1031 = vmatpush1.msra.mxu0 0.0
        %1032 = vmatprep.subr.mxu0 0.0
        %1033 = vmatpush1.msra.mxu0 0.0
        %1034 = vmatprep.subr.mxu0 0.0
        %1035 = vmatpush1.msra.mxu0 0.0
        %1036 = vmatprep.subr.mxu0 0.0
        %1037 = vmatpush1.msra.mxu0 0.0
        %1038 = vmatprep.subr.mxu0 0.0
        %1039 = vmatpush1.msra.mxu0 0.0
        %1040 = vmatprep.subr.mxu0 0.0
        %1041 = vmatpush1.msra.mxu0 0.0
        %1042 = vmatprep.subr.mxu0 0.0
        %1043 = vmatpush1.msra.mxu0 0.0
        %1044 = vmatprep.subr.mxu0 0.0
        %1045 = vmatpush1.msra.mxu0 0.0
        %1046 = vmatprep.subr.mxu0 0.0
        %1047 = vmatpush1.msra.mxu0 0.0
        %1048 = vmatprep.subr.mxu0 0.0
        %1049 = vmatpush1.msra.mxu0 0.0
        %1050 = vmatprep.mubr.f32.mxu0 0.0
        %1051 = vmatmul.mubr.f32.gmra.mrb[0].mxu0 %v981
        %v1052 = vpop.f32.mrb[0].mxu0
        %v1053 = vadd.f32 0.0, %v1052
        %v1054 = vpop.f32.mrb[0].mxu0
        %1055 = vdwg.mxu0
        %v1056 = vadd.f32 %v985, %v1053
        %v1057 = vtanh.pop %v1056
        %s1058 = scalar_lea.vmem %s305, 48
        %1059 = vst [vmem:[%s1058] sm:$0xff] %v1057
        %s1060 = scalar_lea.vmem [#allocation3], 56
        %v1061 = vld [vmem:[%s1060] sm:$0xff]
        %1062 = vmatprep.subr.mxu0 0.0
        %1063 = vmatpush1.msra.mxu0 %v513
        %1064 = vmatprep.subr.mxu0 0.0
        %1065 = vmatpush1.msra.mxu0 %v514
        %1066 = vmatprep.subr.mxu0 0.0
        %1067 = vmatpush1.msra.mxu0 %v515
        %1068 = vmatprep.subr.mxu0 0.0
        %1069 = vmatpush1.msra.mxu0 %v516
        %1070 = vmatprep.subr.mxu0 0.0
        %1071 = vmatpush1.msra.mxu0 %v517
        %1072 = vmatprep.subr.mxu0 0.0
        %1073 = vmatpush1.msra.mxu0 %v518
        %1074 = vmatprep.subr.mxu0 0.0
        %1075 = vmatpush1.msra.mxu0 %v519
        %1076 = vmatprep.subr.mxu0 0.0
        %1077 = vmatpush1.msra.mxu0 %v520
        %1078 = vmatprep.subr.mxu0 0.0
        %1079 = vmatpush1.msra.mxu0 %v521
        %1080 = vmatprep.subr.mxu0 0.0
        %1081 = vmatpush1.msra.mxu0 %v522
        %1082 = vmatprep.subr.mxu0 0.0
        %1083 = vmatpush1.msra.mxu0 %v523
        %1084 = vmatprep.subr.mxu0 0.0
        %1085 = vmatpush1.msra.mxu0 %v524
        %1086 = vmatprep.subr.mxu0 0.0
        %1087 = vmatpush1.msra.mxu0 %v525
        %1088 = vmatprep.subr.mxu0 0.0
        %1089 = vmatpush1.msra.mxu0 %v526
        %1090 = vmatprep.subr.mxu0 0.0
        %1091 = vmatpush1.msra.mxu0 %v527
        %1092 = vmatprep.subr.mxu0 0.0
        %1093 = vmatpush1.msra.mxu0 %v528
        %1094 = vmatprep.subr.mxu0 0.0
        %1095 = vmatpush1.msra.mxu0 0.0
        %1096 = vmatprep.subr.mxu0 0.0
        %1097 = vmatpush1.msra.mxu0 0.0
        %1098 = vmatprep.subr.mxu0 0.0
        %1099 = vmatpush1.msra.mxu0 0.0
        %1100 = vmatprep.subr.mxu0 0.0
        %1101 = vmatpush1.msra.mxu0 0.0
        %1102 = vmatprep.subr.mxu0 0.0
        %1103 = vmatpush1.msra.mxu0 0.0
        %1104 = vmatprep.subr.mxu0 0.0
        %1105 = vmatpush1.msra.mxu0 0.0
        %1106 = vmatprep.subr.mxu0 0.0
        %1107 = vmatpush1.msra.mxu0 0.0
        %1108 = vmatprep.subr.mxu0 0.0
        %1109 = vmatpush1.msra.mxu0 0.0
        %1110 = vmatprep.subr.mxu0 0.0
        %1111 = vmatpush1.msra.mxu0 0.0
        %1112 = vmatprep.subr.mxu0 0.0
        %1113 = vmatpush1.msra.mxu0 0.0
        %1114 = vmatprep.subr.mxu0 0.0
        %1115 = vmatpush1.msra.mxu0 0.0
        %1116 = vmatprep.subr.mxu0 0.0
        %1117 = vmatpush1.msra.mxu0 0.0
        %1118 = vmatprep.subr.mxu0 0.0
        %1119 = vmatpush1.msra.mxu0 0.0
        %1120 = vmatprep.subr.mxu0 0.0
        %1121 = vmatpush1.msra.mxu0 0.0
        %1122 = vmatprep.subr.mxu0 0.0
        %1123 = vmatpush1.msra.mxu0 0.0
        %1124 = vmatprep.subr.mxu0 0.0
        %1125 = vmatpush1.msra.mxu0 0.0
        %1126 = vmatprep.mubr.f32.mxu0 0.0
        %1127 = vmatmul.mubr.f32.gmra.mrb[0].mxu0 %v1057
        %v1128 = vpop.f32.mrb[0].mxu0
        %v1129 = vadd.f32 0.0, %v1128
        %v1130 = vpop.f32.mrb[0].mxu0
        %1131 = vdwg.mxu0
        %v1132 = vadd.f32 %v1061, %v1129
        %v1133 = vtanh.pop %v1132
        %s1134 = scalar_lea.vmem %s305, 56
        %1135 = vst [vmem:[%s1134] sm:$0xff] %v1133
        %s1136 = scalar_lea.vmem [#allocation3], 64
        %v1137 = vld [vmem:[%s1136] sm:$0xff]
        %1138 = vmatprep.subr.mxu0 0.0
        %1139 = vmatpush1.msra.mxu0 %v513
        %1140 = vmatprep.subr.mxu0 0.0
        %1141 = vmatpush1.msra.mxu0 %v514
        %1142 = vmatprep.subr.mxu0 0.0
        %1143 = vmatpush1.msra.mxu0 %v515
        %1144 = vmatprep.subr.mxu0 0.0
        %1145 = vmatpush1.msra.mxu0 %v516
        %1146 = vmatprep.subr.mxu0 0.0
        %1147 = vmatpush1.msra.mxu0 %v517
        %1148 = vmatprep.subr.mxu0 0.0
        %1149 = vmatpush1.msra.mxu0 %v518
        %1150 = vmatprep.subr.mxu0 0.0
        %1151 = vmatpush1.msra.mxu0 %v519
        %1152 = vmatprep.subr.mxu0 0.0
        %1153 = vmatpush1.msra.mxu0 %v520
        %1154 = vmatprep.subr.mxu0 0.0
        %1155 = vmatpush1.msra.mxu0 %v521
        %1156 = vmatprep.subr.mxu0 0.0
        %1157 = vmatpush1.msra.mxu0 %v522
        %1158 = vmatprep.subr.mxu0 0.0
        %1159 = vmatpush1.msra.mxu0 %v523
        %1160 = vmatprep.subr.mxu0 0.0
        %1161 = vmatpush1.msra.mxu0 %v524
        %1162 = vmatprep.subr.mxu0 0.0
        %1163 = vmatpush1.msra.mxu0 %v525
        %1164 = vmatprep.subr.mxu0 0.0
        %1165 = vmatpush1.msra.mxu0 %v526
        %1166 = vmatprep.subr.mxu0 0.0
        %1167 = vmatpush1.msra.mxu0 %v527
        %1168 = vmatprep.subr.mxu0 0.0
        %1169 = vmatpush1.msra.mxu0 %v528
        %1170 = vmatprep.subr.mxu0 0.0
        %1171 = vmatpush1.msra.mxu0 0.0
        %1172 = vmatprep.subr.mxu0 0.0
        %1173 = vmatpush1.msra.mxu0 0.0
        %1174 = vmatprep.subr.mxu0 0.0
        %1175 = vmatpush1.msra.mxu0 0.0
        %1176 = vmatprep.subr.mxu0 0.0
        %1177 = vmatpush1.msra.mxu0 0.0
        %1178 = vmatprep.subr.mxu0 0.0
        %1179 = vmatpush1.msra.mxu0 0.0
        %1180 = vmatprep.subr.mxu0 0.0
        %1181 = vmatpush1.msra.mxu0 0.0
        %1182 = vmatprep.subr.mxu0 0.0
        %1183 = vmatpush1.msra.mxu0 0.0
        %1184 = vmatprep.subr.mxu0 0.0
        %1185 = vmatpush1.msra.mxu0 0.0
        %1186 = vmatprep.subr.mxu0 0.0
        %1187 = vmatpush1.msra.mxu0 0.0
        %1188 = vmatprep.subr.mxu0 0.0
        %1189 = vmatpush1.msra.mxu0 0.0
        %1190 = vmatprep.subr.mxu0 0.0
        %1191 = vmatpush1.msra.mxu0 0.0
        %1192 = vmatprep.subr.mxu0 0.0
        %1193 = vmatpush1.msra.mxu0 0.0
        %1194 = vmatprep.subr.mxu0 0.0
        %1195 = vmatpush1.msra.mxu0 0.0
        %1196 = vmatprep.subr.mxu0 0.0
        %1197 = vmatpush1.msra.mxu0 0.0
        %1198 = vmatprep.subr.mxu0 0.0
        %1199 = vmatpush1.msra.mxu0 0.0
        %1200 = vmatprep.subr.mxu0 0.0
        %1201 = vmatpush1.msra.mxu0 0.0
        %1202 = vmatprep.mubr.f32.mxu0 0.0
        %1203 = vmatmul.mubr.f32.gmra.mrb[0].mxu0 %v1133
        %v1204 = vpop.f32.mrb[0].mxu0
        %v1205 = vadd.f32 0.0, %v1204
        %v1206 = vpop.f32.mrb[0].mxu0
        %1207 = vdwg.mxu0
        %v1208 = vadd.f32 %v1137, %v1205
        %v1209 = vtanh.pop %v1208
        %s1210 = scalar_lea.vmem %s305, 64
        %1211 = vst [vmem:[%s1210] sm:$0xff] %v1209
        %s1212 = scalar_lea.vmem [#allocation3], 72
        %v1213 = vld [vmem:[%s1212] sm:$0xff]
        %1214 = vmatprep.subr.mxu0 0.0
        %1215 = vmatpush1.msra.mxu0 %v513
        %1216 = vmatprep.subr.mxu0 0.0
        %1217 = vmatpush1.msra.mxu0 %v514
        %1218 = vmatprep.subr.mxu0 0.0
        %1219 = vmatpush1.msra.mxu0 %v515
        %1220 = vmatprep.subr.mxu0 0.0
        %1221 = vmatpush1.msra.mxu0 %v516
        %1222 = vmatprep.subr.mxu0 0.0
        %1223 = vmatpush1.msra.mxu0 %v517
        %1224 = vmatprep.subr.mxu0 0.0
        %1225 = vmatpush1.msra.mxu0 %v518
        %1226 = vmatprep.subr.mxu0 0.0
        %1227 = vmatpush1.msra.mxu0 %v519
        %1228 = vmatprep.subr.mxu0 0.0
        %1229 = vmatpush1.msra.mxu0 %v520
        %1230 = vmatprep.subr.mxu0 0.0
        %1231 = vmatpush1.msra.mxu0 %v521
        %1232 = vmatprep.subr.mxu0 0.0
        %1233 = vmatpush1.msra.mxu0 %v522
        %1234 = vmatprep.subr.mxu0 0.0
        %1235 = vmatpush1.msra.mxu0 %v523
        %1236 = vmatprep.subr.mxu0 0.0
        %1237 = vmatpush1.msra.mxu0 %v524
        %1238 = vmatprep.subr.mxu0 0.0
        %1239 = vmatpush1.msra.mxu0 %v525
        %1240 = vmatprep.subr.mxu0 0.0
        %1241 = vmatpush1.msra.mxu0 %v526
        %1242 = vmatprep.subr.mxu0 0.0
        %1243 = vmatpush1.msra.mxu0 %v527
        %1244 = vmatprep.subr.mxu0 0.0
        %1245 = vmatpush1.msra.mxu0 %v528
        %1246 = vmatprep.subr.mxu0 0.0
        %1247 = vmatpush1.msra.mxu0 0.0
        %1248 = vmatprep.subr.mxu0 0.0
        %1249 = vmatpush1.msra.mxu0 0.0
        %1250 = vmatprep.subr.mxu0 0.0
        %1251 = vmatpush1.msra.mxu0 0.0
        %1252 = vmatprep.subr.mxu0 0.0
        %1253 = vmatpush1.msra.mxu0 0.0
        %1254 = vmatprep.subr.mxu0 0.0
        %1255 = vmatpush1.msra.mxu0 0.0
        %1256 = vmatprep.subr.mxu0 0.0
        %1257 = vmatpush1.msra.mxu0 0.0
        %1258 = vmatprep.subr.mxu0 0.0
        %1259 = vmatpush1.msra.mxu0 0.0
        %1260 = vmatprep.subr.mxu0 0.0
        %1261 = vmatpush1.msra.mxu0 0.0
        %1262 = vmatprep.subr.mxu0 0.0
        %1263 = vmatpush1.msra.mxu0 0.0
        %1264 = vmatprep.subr.mxu0 0.0
        %1265 = vmatpush1.msra.mxu0 0.0
        %1266 = vmatprep.subr.mxu0 0.0
        %1267 = vmatpush1.msra.mxu0 0.0
        %1268 = vmatprep.subr.mxu0 0.0
        %1269 = vmatpush1.msra.mxu0 0.0
        %1270 = vmatprep.subr.mxu0 0.0
        %1271 = vmatpush1.msra.mxu0 0.0
        %1272 = vmatprep.subr.mxu0 0.0
        %1273 = vmatpush1.msra.mxu0 0.0
        %1274 = vmatprep.subr.mxu0 0.0
        %1275 = vmatpush1.msra.mxu0 0.0
        %1276 = vmatprep.subr.mxu0 0.0
        %1277 = vmatpush1.msra.mxu0 0.0
        %1278 = vmatprep.mubr.f32.mxu0 0.0
        %1279 = vmatmul.mubr.f32.gmra.mrb[0].mxu0 %v1209
        %v1280 = vpop.f32.mrb[0].mxu0
        %v1281 = vadd.f32 0.0, %v1280
        %v1282 = vpop.f32.mrb[0].mxu0
        %1283 = vdwg.mxu0
        %v1284 = vadd.f32 %v1213, %v1281
        %v1285 = vtanh.pop %v1284
        %s1286 = scalar_lea.vmem %s305, 72
        %1287 = vst [vmem:[%s1286] sm:$0xff] %v1285
        %s1288 = scalar_lea.vmem [#allocation3], 80
        %v1289 = vld [vmem:[%s1288] sm:$0xff]
        %1290 = vmatprep.subr.mxu0 0.0
        %1291 = vmatpush1.msra.mxu0 %v513
        %1292 = vmatprep.subr.mxu0 0.0
        %1293 = vmatpush1.msra.mxu0 %v514
        %1294 = vmatprep.subr.mxu0 0.0
        %1295 = vmatpush1.msra.mxu0 %v515
        %1296 = vmatprep.subr.mxu0 0.0
        %1297 = vmatpush1.msra.mxu0 %v516
        %1298 = vmatprep.subr.mxu0 0.0
        %1299 = vmatpush1.msra.mxu0 %v517
        %1300 = vmatprep.subr.mxu0 0.0
        %1301 = vmatpush1.msra.mxu0 %v518
        %1302 = vmatprep.subr.mxu0 0.0
        %1303 = vmatpush1.msra.mxu0 %v519
        %1304 = vmatprep.subr.mxu0 0.0
        %1305 = vmatpush1.msra.mxu0 %v520
        %1306 = vmatprep.subr.mxu0 0.0
        %1307 = vmatpush1.msra.mxu0 %v521
        %1308 = vmatprep.subr.mxu0 0.0
        %1309 = vmatpush1.msra.mxu0 %v522
        %1310 = vmatprep.subr.mxu0 0.0
        %1311 = vmatpush1.msra.mxu0 %v523
        %1312 = vmatprep.subr.mxu0 0.0
        %1313 = vmatpush1.msra.mxu0 %v524
        %1314 = vmatprep.subr.mxu0 0.0
        %1315 = vmatpush1.msra.mxu0 %v525
        %1316 = vmatprep.subr.mxu0 0.0
        %1317 = vmatpush1.msra.mxu0 %v526
        %1318 = vmatprep.subr.mxu0 0.0
        %1319 = vmatpush1.msra.mxu0 %v527
        %1320 = vmatprep.subr.mxu0 0.0
        %1321 = vmatpush1.msra.mxu0 %v528
        %1322 = vmatprep.subr.mxu0 0.0
        %1323 = vmatpush1.msra.mxu0 0.0
        %1324 = vmatprep.subr.mxu0 0.0
        %1325 = vmatpush1.msra.mxu0 0.0
        %1326 = vmatprep.subr.mxu0 0.0
        %1327 = vmatpush1.msra.mxu0 0.0
        %1328 = vmatprep.subr.mxu0 0.0
        %1329 = vmatpush1.msra.mxu0 0.0
        %1330 = vmatprep.subr.mxu0 0.0
        %1331 = vmatpush1.msra.mxu0 0.0
        %1332 = vmatprep.subr.mxu0 0.0
        %1333 = vmatpush1.msra.mxu0 0.0
        %1334 = vmatprep.subr.mxu0 0.0
        %1335 = vmatpush1.msra.mxu0 0.0
        %1336 = vmatprep.subr.mxu0 0.0
        %1337 = vmatpush1.msra.mxu0 0.0
        %1338 = vmatprep.subr.mxu0 0.0
        %1339 = vmatpush1.msra.mxu0 0.0
        %1340 = vmatprep.subr.mxu0 0.0
        %1341 = vmatpush1.msra.mxu0 0.0
        %1342 = vmatprep.subr.mxu0 0.0
        %1343 = vmatpush1.msra.mxu0 0.0
        %1344 = vmatprep.subr.mxu0 0.0
        %1345 = vmatpush1.msra.mxu0 0.0
        %1346 = vmatprep.subr.mxu0 0.0
        %1347 = vmatpush1.msra.mxu0 0.0
        %1348 = vmatprep.subr.mxu0 0.0
        %1349 = vmatpush1.msra.mxu0 0.0
        %1350 = vmatprep.subr.mxu0 0.0
        %1351 = vmatpush1.msra.mxu0 0.0
        %1352 = vmatprep.subr.mxu0 0.0
        %1353 = vmatpush1.msra.mxu0 0.0
        %1354 = vmatprep.mubr.f32.mxu0 0.0
        %1355 = vmatmul.mubr.f32.gmra.mrb[0].mxu0 %v1285
        %v1356 = vpop.f32.mrb[0].mxu0
        %v1357 = vadd.f32 0.0, %v1356
        %v1358 = vpop.f32.mrb[0].mxu0
        %1359 = vdwg.mxu0
        %v1360 = vadd.f32 %v1289, %v1357
        %v1361 = vtanh.pop %v1360
        %s1362 = scalar_lea.vmem %s305, 80
        %1363 = vst [vmem:[%s1362] sm:$0xff] %v1361
        %s1364 = scalar_lea.vmem [#allocation3], 88
        %v1365 = vld [vmem:[%s1364] sm:$0xff]
        %1366 = vmatprep.subr.mxu0 0.0
        %1367 = vmatpush1.msra.mxu0 %v513
        %1368 = vmatprep.subr.mxu0 0.0
        %1369 = vmatpush1.msra.mxu0 %v514
        %1370 = vmatprep.subr.mxu0 0.0
        %1371 = vmatpush1.msra.mxu0 %v515
        %1372 = vmatprep.subr.mxu0 0.0
        %1373 = vmatpush1.msra.mxu0 %v516
        %1374 = vmatprep.subr.mxu0 0.0
        %1375 = vmatpush1.msra.mxu0 %v517
        %1376 = vmatprep.subr.mxu0 0.0
        %1377 = vmatpush1.msra.mxu0 %v518
        %1378 = vmatprep.subr.mxu0 0.0
        %1379 = vmatpush1.msra.mxu0 %v519
        %1380 = vmatprep.subr.mxu0 0.0
        %1381 = vmatpush1.msra.mxu0 %v520
        %1382 = vmatprep.subr.mxu0 0.0
        %1383 = vmatpush1.msra.mxu0 %v521
        %1384 = vmatprep.subr.mxu0 0.0
        %1385 = vmatpush1.msra.mxu0 %v522
        %1386 = vmatprep.subr.mxu0 0.0
        %1387 = vmatpush1.msra.mxu0 %v523
        %1388 = vmatprep.subr.mxu0 0.0
        %1389 = vmatpush1.msra.mxu0 %v524
        %1390 = vmatprep.subr.mxu0 0.0
        %1391 = vmatpush1.msra.mxu0 %v525
        %1392 = vmatprep.subr.mxu0 0.0
        %1393 = vmatpush1.msra.mxu0 %v526
        %1394 = vmatprep.subr.mxu0 0.0
        %1395 = vmatpush1.msra.mxu0 %v527
        %1396 = vmatprep.subr.mxu0 0.0
        %1397 = vmatpush1.msra.mxu0 %v528
        %1398 = vmatprep.subr.mxu0 0.0
        %1399 = vmatpush1.msra.mxu0 0.0
        %1400 = vmatprep.subr.mxu0 0.0
        %1401 = vmatpush1.msra.mxu0 0.0
        %1402 = vmatprep.subr.mxu0 0.0
        %1403 = vmatpush1.msra.mxu0 0.0
        %1404 = vmatprep.subr.mxu0 0.0
        %1405 = vmatpush1.msra.mxu0 0.0
        %1406 = vmatprep.subr.mxu0 0.0
        %1407 = vmatpush1.msra.mxu0 0.0
        %1408 = vmatprep.subr.mxu0 0.0
        %1409 = vmatpush1.msra.mxu0 0.0
        %1410 = vmatprep.subr.mxu0 0.0
        %1411 = vmatpush1.msra.mxu0 0.0
        %1412 = vmatprep.subr.mxu0 0.0
        %1413 = vmatpush1.msra.mxu0 0.0
        %1414 = vmatprep.subr.mxu0 0.0
        %1415 = vmatpush1.msra.mxu0 0.0
        %1416 = vmatprep.subr.mxu0 0.0
        %1417 = vmatpush1.msra.mxu0 0.0
        %1418 = vmatprep.subr.mxu0 0.0
        %1419 = vmatpush1.msra.mxu0 0.0
        %1420 = vmatprep.subr.mxu0 0.0
        %1421 = vmatpush1.msra.mxu0 0.0
        %1422 = vmatprep.subr.mxu0 0.0
        %1423 = vmatpush1.msra.mxu0 0.0
        %1424 = vmatprep.subr.mxu0 0.0
        %1425 = vmatpush1.msra.mxu0 0.0
        %1426 = vmatprep.subr.mxu0 0.0
        %1427 = vmatpush1.msra.mxu0 0.0
        %1428 = vmatprep.subr.mxu0 0.0
        %1429 = vmatpush1.msra.mxu0 0.0
        %1430 = vmatprep.mubr.f32.mxu0 0.0
        %1431 = vmatmul.mubr.f32.gmra.mrb[0].mxu0 %v1361
        %v1432 = vpop.f32.mrb[0].mxu0
        %v1433 = vadd.f32 0.0, %v1432
        %v1434 = vpop.f32.mrb[0].mxu0
        %1435 = vdwg.mxu0
        %v1436 = vadd.f32 %v1365, %v1433
        %v1437 = vtanh.pop %v1436
        %s1438 = scalar_lea.vmem %s305, 88
        %1439 = vst [vmem:[%s1438] sm:$0xff] %v1437
        %s1440 = scalar_lea.vmem [#allocation3], 96
        %v1441 = vld [vmem:[%s1440] sm:$0xff]
        %1442 = vmatprep.subr.mxu0 0.0
        %1443 = vmatpush1.msra.mxu0 %v513
        %1444 = vmatprep.subr.mxu0 0.0
        %1445 = vmatpush1.msra.mxu0 %v514
        %1446 = vmatprep.subr.mxu0 0.0
        %1447 = vmatpush1.msra.mxu0 %v515
        %1448 = vmatprep.subr.mxu0 0.0
        %1449 = vmatpush1.msra.mxu0 %v516
        %1450 = vmatprep.subr.mxu0 0.0
        %1451 = vmatpush1.msra.mxu0 %v517
        %1452 = vmatprep.subr.mxu0 0.0
        %1453 = vmatpush1.msra.mxu0 %v518
        %1454 = vmatprep.subr.mxu0 0.0
        %1455 = vmatpush1.msra.mxu0 %v519
        %1456 = vmatprep.subr.mxu0 0.0
        %1457 = vmatpush1.msra.mxu0 %v520
        %1458 = vmatprep.subr.mxu0 0.0
        %1459 = vmatpush1.msra.mxu0 %v521
        %1460 = vmatprep.subr.mxu0 0.0
        %1461 = vmatpush1.msra.mxu0 %v522
        %1462 = vmatprep.subr.mxu0 0.0
        %1463 = vmatpush1.msra.mxu0 %v523
        %1464 = vmatprep.subr.mxu0 0.0
        %1465 = vmatpush1.msra.mxu0 %v524
        %1466 = vmatprep.subr.mxu0 0.0
        %1467 = vmatpush1.msra.mxu0 %v525
        %1468 = vmatprep.subr.mxu0 0.0
        %1469 = vmatpush1.msra.mxu0 %v526
        %1470 = vmatprep.subr.mxu0 0.0
        %1471 = vmatpush1.msra.mxu0 %v527
        %1472 = vmatprep.subr.mxu0 0.0
        %1473 = vmatpush1.msra.mxu0 %v528
        %1474 = vmatprep.subr.mxu0 0.0
        %1475 = vmatpush1.msra.mxu0 0.0
        %1476 = vmatprep.subr.mxu0 0.0
        %1477 = vmatpush1.msra.mxu0 0.0
        %1478 = vmatprep.subr.mxu0 0.0
        %1479 = vmatpush1.msra.mxu0 0.0
        %1480 = vmatprep.subr.mxu0 0.0
        %1481 = vmatpush1.msra.mxu0 0.0
        %1482 = vmatprep.subr.mxu0 0.0
        %1483 = vmatpush1.msra.mxu0 0.0
        %1484 = vmatprep.subr.mxu0 0.0
        %1485 = vmatpush1.msra.mxu0 0.0
        %1486 = vmatprep.subr.mxu0 0.0
        %1487 = vmatpush1.msra.mxu0 0.0
        %1488 = vmatprep.subr.mxu0 0.0
        %1489 = vmatpush1.msra.mxu0 0.0
        %1490 = vmatprep.subr.mxu0 0.0
        %1491 = vmatpush1.msra.mxu0 0.0
        %1492 = vmatprep.subr.mxu0 0.0
        %1493 = vmatpush1.msra.mxu0 0.0
        %1494 = vmatprep.subr.mxu0 0.0
        %1495 = vmatpush1.msra.mxu0 0.0
        %1496 = vmatprep.subr.mxu0 0.0
        %1497 = vmatpush1.msra.mxu0 0.0
        %1498 = vmatprep.subr.mxu0 0.0
        %1499 = vmatpush1.msra.mxu0 0.0
        %1500 = vmatprep.subr.mxu0 0.0
        %1501 = vmatpush1.msra.mxu0 0.0
        %1502 = vmatprep.subr.mxu0 0.0
        %1503 = vmatpush1.msra.mxu0 0.0
        %1504 = vmatprep.subr.mxu0 0.0
        %1505 = vmatpush1.msra.mxu0 0.0
        %1506 = vmatprep.mubr.f32.mxu0 0.0
        %1507 = vmatmul.mubr.f32.gmra.mrb[0].mxu0 %v1437
        %v1508 = vpop.f32.mrb[0].mxu0
        %v1509 = vadd.f32 0.0, %v1508
        %v1510 = vpop.f32.mrb[0].mxu0
        %1511 = vdwg.mxu0
        %v1512 = vadd.f32 %v1441, %v1509
        %v1513 = vtanh.pop %v1512
        %s1514 = scalar_lea.vmem %s305, 96
        %1515 = vst [vmem:[%s1514] sm:$0xff] %v1513
        %s1516 = scalar_lea.vmem [#allocation3], 104
        %v1517 = vld [vmem:[%s1516] sm:$0xff]
        %1518 = vmatprep.subr.mxu0 0.0
        %1519 = vmatpush1.msra.mxu0 %v513
        %1520 = vmatprep.subr.mxu0 0.0
        %1521 = vmatpush1.msra.mxu0 %v514
        %1522 = vmatprep.subr.mxu0 0.0
        %1523 = vmatpush1.msra.mxu0 %v515
        %1524 = vmatprep.subr.mxu0 0.0
        %1525 = vmatpush1.msra.mxu0 %v516
        %1526 = vmatprep.subr.mxu0 0.0
        %1527 = vmatpush1.msra.mxu0 %v517
        %1528 = vmatprep.subr.mxu0 0.0
        %1529 = vmatpush1.msra.mxu0 %v518
        %1530 = vmatprep.subr.mxu0 0.0
        %1531 = vmatpush1.msra.mxu0 %v519
        %1532 = vmatprep.subr.mxu0 0.0
        %1533 = vmatpush1.msra.mxu0 %v520
        %1534 = vmatprep.subr.mxu0 0.0
        %1535 = vmatpush1.msra.mxu0 %v521
        %1536 = vmatprep.subr.mxu0 0.0
        %1537 = vmatpush1.msra.mxu0 %v522
        %1538 = vmatprep.subr.mxu0 0.0
        %1539 = vmatpush1.msra.mxu0 %v523
        %1540 = vmatprep.subr.mxu0 0.0
        %1541 = vmatpush1.msra.mxu0 %v524
        %1542 = vmatprep.subr.mxu0 0.0
        %1543 = vmatpush1.msra.mxu0 %v525
        %1544 = vmatprep.subr.mxu0 0.0
        %1545 = vmatpush1.msra.mxu0 %v526
        %1546 = vmatprep.subr.mxu0 0.0
        %1547 = vmatpush1.msra.mxu0 %v527
        %1548 = vmatprep.subr.mxu0 0.0
        %1549 = vmatpush1.msra.mxu0 %v528
        %1550 = vmatprep.subr.mxu0 0.0
        %1551 = vmatpush1.msra.mxu0 0.0
        %1552 = vmatprep.subr.mxu0 0.0
        %1553 = vmatpush1.msra.mxu0 0.0
        %1554 = vmatprep.subr.mxu0 0.0
        %1555 = vmatpush1.msra.mxu0 0.0
        %1556 = vmatprep.subr.mxu0 0.0
        %1557 = vmatpush1.msra.mxu0 0.0
        %1558 = vmatprep.subr.mxu0 0.0
        %1559 = vmatpush1.msra.mxu0 0.0
        %1560 = vmatprep.subr.mxu0 0.0
        %1561 = vmatpush1.msra.mxu0 0.0
        %1562 = vmatprep.subr.mxu0 0.0
        %1563 = vmatpush1.msra.mxu0 0.0
        %1564 = vmatprep.subr.mxu0 0.0
        %1565 = vmatpush1.msra.mxu0 0.0
        %1566 = vmatprep.subr.mxu0 0.0
        %1567 = vmatpush1.msra.mxu0 0.0
        %1568 = vmatprep.subr.mxu0 0.0
        %1569 = vmatpush1.msra.mxu0 0.0
        %1570 = vmatprep.subr.mxu0 0.0
        %1571 = vmatpush1.msra.mxu0 0.0
        %1572 = vmatprep.subr.mxu0 0.0
        %1573 = vmatpush1.msra.mxu0 0.0
        %1574 = vmatprep.subr.mxu0 0.0
        %1575 = vmatpush1.msra.mxu0 0.0
        %1576 = vmatprep.subr.mxu0 0.0
        %1577 = vmatpush1.msra.mxu0 0.0
        %1578 = vmatprep.subr.mxu0 0.0
        %1579 = vmatpush1.msra.mxu0 0.0
        %1580 = vmatprep.subr.mxu0 0.0
        %1581 = vmatpush1.msra.mxu0 0.0
        %1582 = vmatprep.mubr.f32.mxu0 0.0
        %1583 = vmatmul.mubr.f32.gmra.mrb[0].mxu0 %v1513
        %v1584 = vpop.f32.mrb[0].mxu0
        %v1585 = vadd.f32 0.0, %v1584
        %v1586 = vpop.f32.mrb[0].mxu0
        %1587 = vdwg.mxu0
        %v1588 = vadd.f32 %v1517, %v1585
        %v1589 = vtanh.pop %v1588
        %s1590 = scalar_lea.vmem %s305, 104
        %1591 = vst [vmem:[%s1590] sm:$0xff] %v1589
        %s1592 = scalar_lea.vmem [#allocation3], 112
        %v1593 = vld [vmem:[%s1592] sm:$0xff]
        %1594 = vmatprep.subr.mxu0 0.0
        %1595 = vmatpush1.msra.mxu0 %v513
        %1596 = vmatprep.subr.mxu0 0.0
        %1597 = vmatpush1.msra.mxu0 %v514
        %1598 = vmatprep.subr.mxu0 0.0
        %1599 = vmatpush1.msra.mxu0 %v515
        %1600 = vmatprep.subr.mxu0 0.0
        %1601 = vmatpush1.msra.mxu0 %v516
        %1602 = vmatprep.subr.mxu0 0.0
        %1603 = vmatpush1.msra.mxu0 %v517
        %1604 = vmatprep.subr.mxu0 0.0
        %1605 = vmatpush1.msra.mxu0 %v518
        %1606 = vmatprep.subr.mxu0 0.0
        %1607 = vmatpush1.msra.mxu0 %v519
        %1608 = vmatprep.subr.mxu0 0.0
        %1609 = vmatpush1.msra.mxu0 %v520
        %1610 = vmatprep.subr.mxu0 0.0
        %1611 = vmatpush1.msra.mxu0 %v521
        %1612 = vmatprep.subr.mxu0 0.0
        %1613 = vmatpush1.msra.mxu0 %v522
        %1614 = vmatprep.subr.mxu0 0.0
        %1615 = vmatpush1.msra.mxu0 %v523
        %1616 = vmatprep.subr.mxu0 0.0
        %1617 = vmatpush1.msra.mxu0 %v524
        %1618 = vmatprep.subr.mxu0 0.0
        %1619 = vmatpush1.msra.mxu0 %v525
        %1620 = vmatprep.subr.mxu0 0.0
        %1621 = vmatpush1.msra.mxu0 %v526
        %1622 = vmatprep.subr.mxu0 0.0
        %1623 = vmatpush1.msra.mxu0 %v527
        %1624 = vmatprep.subr.mxu0 0.0
        %1625 = vmatpush1.msra.mxu0 %v528
        %1626 = vmatprep.subr.mxu0 0.0
        %1627 = vmatpush1.msra.mxu0 0.0
        %1628 = vmatprep.subr.mxu0 0.0
        %1629 = vmatpush1.msra.mxu0 0.0
        %1630 = vmatprep.subr.mxu0 0.0
        %1631 = vmatpush1.msra.mxu0 0.0
        %1632 = vmatprep.subr.mxu0 0.0
        %1633 = vmatpush1.msra.mxu0 0.0
        %1634 = vmatprep.subr.mxu0 0.0
        %1635 = vmatpush1.msra.mxu0 0.0
        %1636 = vmatprep.subr.mxu0 0.0
        %1637 = vmatpush1.msra.mxu0 0.0
        %1638 = vmatprep.subr.mxu0 0.0
        %1639 = vmatpush1.msra.mxu0 0.0
        %1640 = vmatprep.subr.mxu0 0.0
        %1641 = vmatpush1.msra.mxu0 0.0
        %1642 = vmatprep.subr.mxu0 0.0
        %1643 = vmatpush1.msra.mxu0 0.0
        %1644 = vmatprep.subr.mxu0 0.0
        %1645 = vmatpush1.msra.mxu0 0.0
        %1646 = vmatprep.subr.mxu0 0.0
        %1647 = vmatpush1.msra.mxu0 0.0
        %1648 = vmatprep.subr.mxu0 0.0
        %1649 = vmatpush1.msra.mxu0 0.0
        %1650 = vmatprep.subr.mxu0 0.0
        %1651 = vmatpush1.msra.mxu0 0.0
        %1652 = vmatprep.subr.mxu0 0.0
        %1653 = vmatpush1.msra.mxu0 0.0
        %1654 = vmatprep.subr.mxu0 0.0
        %1655 = vmatpush1.msra.mxu0 0.0
        %1656 = vmatprep.subr.mxu0 0.0
        %1657 = vmatpush1.msra.mxu0 0.0
        %1658 = vmatprep.mubr.f32.mxu0 0.0
        %1659 = vmatmul.mubr.f32.gmra.mrb[0].mxu0 %v1589
        %v1660 = vpop.f32.mrb[0].mxu0
        %v1661 = vadd.f32 0.0, %v1660
        %v1662 = vpop.f32.mrb[0].mxu0
        %1663 = vdwg.mxu0
        %v1664 = vadd.f32 %v1593, %v1661
        %v1665 = vtanh.pop %v1664
        %s1666 = scalar_lea.vmem %s305, 112
        %1667 = vst [vmem:[%s1666] sm:$0xff] %v1665
        %s1668 = scalar_lea.vmem [#allocation3], 120
        %v1669 = vld [vmem:[%s1668] sm:$0xff]
        %1670 = vmatprep.subr.mxu0 0.0
        %1671 = vmatpush1.msra.mxu0 %v513
        %1672 = vmatprep.subr.mxu0 0.0
        %1673 = vmatpush1.msra.mxu0 %v514
        %1674 = vmatprep.subr.mxu0 0.0
        %1675 = vmatpush1.msra.mxu0 %v515
        %1676 = vmatprep.subr.mxu0 0.0
        %1677 = vmatpush1.msra.mxu0 %v516
        %1678 = vmatprep.subr.mxu0 0.0
        %1679 = vmatpush1.msra.mxu0 %v517
        %1680 = vmatprep.subr.mxu0 0.0
        %1681 = vmatpush1.msra.mxu0 %v518
        %1682 = vmatprep.subr.mxu0 0.0
        %1683 = vmatpush1.msra.mxu0 %v519
        %1684 = vmatprep.subr.mxu0 0.0
        %1685 = vmatpush1.msra.mxu0 %v520
        %1686 = vmatprep.subr.mxu0 0.0
        %1687 = vmatpush1.msra.mxu0 %v521
        %1688 = vmatprep.subr.mxu0 0.0
        %1689 = vmatpush1.msra.mxu0 %v522
        %1690 = vmatprep.subr.mxu0 0.0
        %1691 = vmatpush1.msra.mxu0 %v523
        %1692 = vmatprep.subr.mxu0 0.0
        %1693 = vmatpush1.msra.mxu0 %v524
        %1694 = vmatprep.subr.mxu0 0.0
        %1695 = vmatpush1.msra.mxu0 %v525
        %1696 = vmatprep.subr.mxu0 0.0
        %1697 = vmatpush1.msra.mxu0 %v526
        %1698 = vmatprep.subr.mxu0 0.0
        %1699 = vmatpush1.msra.mxu0 %v527
        %1700 = vmatprep.subr.mxu0 0.0
        %1701 = vmatpush1.msra.mxu0 %v528
        %1702 = vmatprep.subr.mxu0 0.0
        %1703 = vmatpush1.msra.mxu0 0.0
        %1704 = vmatprep.subr.mxu0 0.0
        %1705 = vmatpush1.msra.mxu0 0.0
        %1706 = vmatprep.subr.mxu0 0.0
        %1707 = vmatpush1.msra.mxu0 0.0
        %1708 = vmatprep.subr.mxu0 0.0
        %1709 = vmatpush1.msra.mxu0 0.0
        %1710 = vmatprep.subr.mxu0 0.0
        %1711 = vmatpush1.msra.mxu0 0.0
        %1712 = vmatprep.subr.mxu0 0.0
        %1713 = vmatpush1.msra.mxu0 0.0
        %1714 = vmatprep.subr.mxu0 0.0
        %1715 = vmatpush1.msra.mxu0 0.0
        %1716 = vmatprep.subr.mxu0 0.0
        %1717 = vmatpush1.msra.mxu0 0.0
        %1718 = vmatprep.subr.mxu0 0.0
        %1719 = vmatpush1.msra.mxu0 0.0
        %1720 = vmatprep.subr.mxu0 0.0
        %1721 = vmatpush1.msra.mxu0 0.0
        %1722 = vmatprep.subr.mxu0 0.0
        %1723 = vmatpush1.msra.mxu0 0.0
        %1724 = vmatprep.subr.mxu0 0.0
        %1725 = vmatpush1.msra.mxu0 0.0
        %1726 = vmatprep.subr.mxu0 0.0
        %1727 = vmatpush1.msra.mxu0 0.0
        %1728 = vmatprep.subr.mxu0 0.0
        %1729 = vmatpush1.msra.mxu0 0.0
        %1730 = vmatprep.subr.mxu0 0.0
        %1731 = vmatpush1.msra.mxu0 0.0
        %1732 = vmatprep.subr.mxu0 0.0
        %1733 = vmatpush1.msra.mxu0 0.0
        %1734 = vmatprep.mubr.f32.mxu0 0.0
        %1735 = vmatmul.mubr.f32.gmra.mrb[0].mxu0 %v1665
        %v1736 = vpop.f32.mrb[0].mxu0
        %v1737 = vadd.f32 0.0, %v1736
        %v1738 = vpop.f32.mrb[0].mxu0
        %1739 = vdwg.mxu0
        %v1740 = vadd.f32 %v1669, %v1737
        %v1741 = vtanh.pop %v1740
        %s1742 = scalar_lea.vmem %s305, 120
        %1743 = vst [vmem:[%s1742] sm:$0xff] %v1741
        %1744 = vst [vmem:[#allocation2] sm:$0xff] %v1741
        %p1745 = scmp.eq.s32.totalorder %s24, 1
        // Predicated region
        $region45: #{_lambda_.2} parent=39 // pred_check
          %p1746 = pneg %p1745
        $region46: #{_lambda_.2} parent=39 // pred_check_branch
          %1748 = sbr.rel (%p1746) target = $region48
        $region47: #{_lambda_.2} parent=39 // pred_region
          %1749 = vst [vmem:[#allocation4] sm:$0xff] %v1741
        $region48: #{_lambda_.2} parent=39 // pred_fallthru
          _
        %s1750 = smul.u32 16, %s24
        %p1751 = scmp.lt.s32.totalorder %s1750, 31
        %s1752 = scalar_select %p1751, %s1750, 31
        %p1753 = scmp.lt.s32.totalorder %s23, 0
        %s1754 = scalar_select %p1753, %s23, 0
        %s1755 = sadd.s32 %s1754, %s1752
        %s1756 = smul.addr %s1755, 8
        %s1757 = scalar_lea.vmem %s5, %s1756
        // Predicated region
        $region49: #{_lambda_.2} parent=39 // pred_check
          %p1758 = pneg %p168
        $region50: #{_lambda_.2} parent=39 // pred_check_branch
          %1760 = sbr.rel (%p1758) target = $region52
        $region51: #{_lambda_.2} parent=39 // pred_region
          %s1761 = smul.u32 16, %s24
        $region52: #{_lambda_.2} parent=39 // pred_fallthru
          _
        // Predicated region
        $region53: #{_lambda_.2} parent=39 // pred_check
          %p1762 = pneg %p194
        $region54: #{_lambda_.2} parent=39 // pred_check_branch
          %1764 = sbr.rel (%p1762) target = $region56
        $region55: #{_lambda_.2} parent=39 // pred_region
          %s1766 = ssub.s32 128, 128
          %1767 = vsyncadd [#allocation5], %s1766
          %s1768 = smul.addr %s23, 128
          %s1769 = scalar_lea.hbm %s6, %s1768
          %s1771 = sshll.u32 [#allocation4], 4
          %s1772 = int_to_ptr.vmem [resolvable:$true] %s1771
          %1774 = dma.vmem_to_hbm [thread:$0]  %s1772, 128, %s1769, [#allocation5]
        $region56: #{_lambda_.2} parent=39 // pred_fallthru
          _
        // Predicated region
        $region57: #{_lambda_.2} parent=39 // pred_check
          %p1775 = pneg %p194
        $region58: #{_lambda_.2} parent=39 // pred_check_branch
          %1777 = sbr.rel (%p1775) target = $region60
        $region59: #{_lambda_.2} parent=39 // pred_region
          %1778 = dma.done [#allocation5], 128
        $region60: #{_lambda_.2} parent=39 // pred_fallthru
          _
      $region40: #{_lambda_.2} parent=5 // pred_fallthru
        _
      %p1779 = scmp.le.s32.totalorder 2, %s14
      // Predicated region
      $region61: #{_lambda_.2} parent=5 // pred_check
        %p1780 = pneg %p1779
      $region62: #{_lambda_.2} parent=5 // pred_check_branch
        %1782 = sbr.rel (%p1780) target = $region64
      $region63: #{_lambda_.2} parent=5 // pred_region
        %s1783 = ssub.s32 %s14, 2
        // Predicated region
        $region65: #{_lambda_.2} parent=63 // pred_check
          %p1784 = pneg %p174
        $region66: #{_lambda_.2} parent=63 // pred_check_branch
          %1786 = sbr.rel (%p1784) target = $region68
        $region67: #{_lambda_.2} parent=63 // pred_region
          %s1787 = smul.u32 16, %s26
          %p1788 = scmp.lt.s32.totalorder %s1787, 31
          %s1789 = scalar_select %p1788, %s1787, 31
          %p1790 = scmp.lt.s32.totalorder %s25, 0
          %s1791 = scalar_select %p1790, %s25, 0
          %s1792 = sadd.s32 %s1791, %s1789
          %s1793 = smul.addr %s1792, 8
          %s1794 = scalar_lea.vmem %s5, %s1793
        $region68: #{_lambda_.2} parent=63 // pred_fallthru
          _
      $region64: #{_lambda_.2} parent=5 // pred_fallthru
        _
    $region6: #{_lambda_.2} parent=1 // loop_footer
      %s18 = sadd.s32 1, %s14
    $region7: #{_lambda_.2} parent=1 // loop_footer_branch
      %13 = sbr.rel target = $region3
    $region8: #{_lambda_.2} parent=1 // loop_exit
      _
    %1795 = vsyncpa [#allocation5], 1
    %s1796 = scalar_lea.sflag [#allocation5], 1
    %1797 = vsyncpa %s1796, 1

</llo_original>
